<compile_context>
chip_gen: v7x
topology: tpu7x:2x2x1
jax: 0.10.0
libtpu: 0.0.40
codegen_flags: <defaults>
</compile_context>

<pallas_src>
import math
import functools

import jax
import jax.numpy as jnp
import numpy as np
from jax import lax
from jax.experimental import pallas as pl
from jax.experimental.pallas import tpu as pltpu


def _modconv_kernel(s_ref, wbase_ref, x_ref, o_ref, wmod_ref, *,
                    kk, th, wcols, eps, demodulate):
    """One (batch, row-block) tile of the modulated conv.

    s_ref     : (1, Cin, 1)  f32   precomputed EqualLinear(style) for this batch elem
    wbase_ref : (KK, Cin, Cout) bf16  scale * conv weight, tap-major (ky*k+kx)
    x_ref     : (1, 1, TH+2p, W+2p, Cin) bf16  padded NHWC rows (with halo) of this tile
    o_ref     : (1, TH, W, Cout) f32
    wmod_ref  : (KK, Cin, Cout) bf16 VMEM scratch -- per-batch modulated weight (persistent)
    """
    j = pl.program_id(1)  # spatial (row-block) index

    # ---- per-batch weight modulation + demodulation, hoisted to the first spatial tile ----
    @pl.when(j == 0)
    def _compute_modulated_weight():
        w = wbase_ref[...].astype(jnp.float32) * s_ref[0]          # (KK, Cin, Cout), f32
        if demodulate:
            ssq = jnp.sum(w * w, axis=(0, 1), keepdims=True)       # (1, 1, Cout)
            w = w * lax.rsqrt(ssq + eps)
        wmod_ref[...] = w.astype(wmod_ref.dtype)

    # ---- convolution: accumulate k*k shifted matmuls on the MXU (f32 accumulation) ----
    xv = x_ref.at[0, 0]                                            # (TH+2p, W+2p, Cin) view
    acc = None
    for ky in range(kk):
        for kx in range(kk):
            xs = xv[ky:ky + th, kx:kx + wcols, :]                  # (TH, W, Cin) bf16
            xs = xs.reshape(th * wcols, xs.shape[-1])
            part = jnp.dot(xs, wmod_ref[ky * kk + kx],
                           preferred_element_type=jnp.float32)     # (TH*W, Cout)
            acc = part if acc is None else acc + part
    o_ref[0] = acc.reshape(th, wcols, acc.shape[-1]).astype(o_ref.dtype)


def _pick_row_block(H, W, Cin, Cout, pad, budget_bytes=4 * 1024 * 1024):
    """Largest divisor of H whose per-tile blocks stay under a small VMEM budget."""
    best = 1
    for th in range(1, H + 1):
        if H % th:
            continue
        x_blk = (th + 2 * pad) * (W + 2 * pad) * Cin * 2   # bf16 input block
        o_blk = th * W * Cout * 4                          # f32 output block
        acc = th * W * Cout * 4                            # f32 accumulator
        if max(x_blk, o_blk, acc) <= budget_bytes:
            best = th
    return best


def _vmem_limit_bytes():
    try:
        cap = pltpu.get_tpu_info().vmem_capacity_bytes
    except Exception:
        cap = 64 * 1024 * 1024
    return min(int(cap * 3 // 4), 100 * 1024 * 1024)


def modulated_conv2d(x, style, conv_weight, mod_weight, mod_bias,
                     *, demodulate=True, eps=1e-8, row_block=None):
    """x: (B, Cin, H, W) NCHW; style: (B, D);
    conv_weight: (1, Cout, Cin, k, k); mod_weight: (Cin, D); mod_bias: (Cin,)."""
    B, Cin, H, W = x.shape
    _, Cout, _, k, _ = conv_weight.shape
    D = style.shape[1]
    KK = k * k
    pad = k // 2
    Wp = W + 2 * pad

    w_scale = 1.0 / math.sqrt(Cin * k * k)     # ModulatedConv2d.scale
    lin_scale = 1.0 / math.sqrt(D)             # EqualLinear.scale (lr_mul = 1)

    # ---- EqualLinear modulation (tiny GEMM, done once in the wrapper) ----
    s = (style.astype(jnp.float32) @ (mod_weight.astype(jnp.float32) * lin_scale).T
         + mod_bias.astype(jnp.float32))                           # (B, Cin)
    s_col = s[:, :, None]                                          # (B, Cin, 1)

    # ---- base weight: (Cout, Cin, k, k) -> (KK, Cin, Cout), tap = ky*k + kx ----
    wbase = jnp.transpose(w_scale * conv_weight[0].astype(jnp.float32),
                          (2, 3, 1, 0)).reshape(KK, Cin, Cout).astype(jnp.bfloat16)

    # ---- activations: NCHW -> padded NHWC, bf16, split into overlapping row blocks ----
    x_nhwc = jnp.transpose(x, (0, 2, 3, 1)).astype(jnp.bfloat16)   # (B, H, W, Cin)
    x_padded = jnp.pad(x_nhwc, ((0, 0), (pad, pad), (pad, pad), (0, 0)))

    if row_block is None:
        TH = _pick_row_block(H, W, Cin, Cout, pad)
    else:
        TH = min(row_block, H)
        assert H % TH == 0, f"row_block={TH} must divide H={H}"
    nblk = H // TH
    # halo materialization: only 2*pad rows duplicated per block
    xb = jnp.stack([x_padded[:, j * TH: j * TH + TH + 2 * pad] for j in range(nblk)],
                   axis=1)                                         # (B, nblk, TH+2p, Wp, Cin)

    kernel = functools.partial(_modconv_kernel, kk=k, th=TH, wcols=W,
                               eps=eps, demodulate=demodulate)

    out = pl.pallas_call(
        kernel,
        out_shape=jax.ShapeDtypeStruct((B, H, W, Cout), jnp.float32),
        grid_spec=pltpu.PrefetchScalarGridSpec(
            num_scalar_prefetch=0,
            grid=(B, nblk),
            in_specs=[
                pl.BlockSpec((1, Cin, 1), lambda b, j: (b, 0, 0)),          # style mod s
                pl.BlockSpec((KK, Cin, Cout), lambda b, j: (0, 0, 0)),      # base weight
                pl.BlockSpec((1, 1, TH + 2 * pad, Wp, Cin),
                             lambda b, j: (b, j, 0, 0, 0)),                 # padded rows
            ],
            out_specs=pl.BlockSpec((1, TH, W, Cout), lambda b, j: (b, j, 0, 0)),
            scratch_shapes=[pltpu.VMEM((KK, Cin, Cout), jnp.bfloat16)],     # per-batch w
        ),
        compiler_params=pltpu.CompilerParams(
            dimension_semantics=("parallel", "arbitrary"),
            vmem_limit_bytes=_vmem_limit_bytes(),
        ),
    )(s_col, wbase, xb)

    # NHWC -> NCHW to match the PyTorch module's output layout.
    return jnp.transpose(out, (0, 3, 1, 2))


def _ref_modulated_conv2d(x, style, conv_weight, mod_weight, mod_bias,
                          *, demodulate=True, eps=1e-8):
    """Pure-JAX f32 reference matching the PyTorch forward (default path)."""
    B, Cin, H, W = x.shape
    _, Cout, _, k, _ = conv_weight.shape
    D = style.shape[1]
    pad = k // 2
    lin_scale = 1.0 / math.sqrt(D)
    w_scale = 1.0 / math.sqrt(Cin * k * k)

    s = style @ (mod_weight * lin_scale).T + mod_bias            # (B, Cin)
    w = w_scale * conv_weight * s[:, None, :, None, None]        # (B, Cout, Cin, k, k)
    if demodulate:
        demod = lax.rsqrt(jnp.sum(w * w, axis=(2, 3, 4)) + eps)
        w = w * demod[:, :, None, None, None]

    def conv_one(xi, wi):
        return lax.conv_general_dilated(
            xi[None], wi, window_strides=(1, 1),
            padding=[(pad, pad), (pad, pad)],
            dimension_numbers=('NCHW', 'OIHW', 'NCHW'))[0]

    return jax.vmap(conv_one)(x, w)


if __name__ == "__main__":
    B, Cin, Cout, k, D, H, W = 2, 4, 8, 3, 32, 16, 16

    key = jax.random.PRNGKey(0)
    k1, k2, k3, k4 = jax.random.split(key, 4)
    x = jax.random.normal(k1, (B, Cin, H, W), jnp.float32)
    style = jax.random.normal(k2, (B, D), jnp.float32)
    conv_weight = jax.random.normal(k3, (1, Cout, Cin, k, k), jnp.float32)  # nn.Parameter randn
    mod_weight = jax.random.normal(k4, (Cin, D), jnp.float32)               # EqualLinear randn
    mod_bias = jnp.ones((Cin,), jnp.float32)                                # bias_init = 1

    ref = _ref_modulated_conv2d(x, style, conv_weight, mod_weight, mod_bias)

    # default (auto) row tiling
    out = modulated_conv2d(x, style, conv_weight, mod_weight, mod_bias)
    out = jax.block_until_ready(out)
    assert out.shape == (B, Cout, H, W), out.shape
    np.testing.assert_allclose(np.asarray(out), np.asarray(ref), rtol=3e-2, atol=3e-2)

    # forced multi-tile spatial path (nblk > 1) to exercise the pl.when weight hoist
    out_tiled = modulated_conv2d(x, style, conv_weight, mod_weight, mod_bias, row_block=4)
    out_tiled = jax.block_until_ready(out_tiled)
    np.testing.assert_allclose(np.asarray(out_tiled), np.asarray(ref), rtol=3e-2, atol=3e-2)

    print("KERNEL_OK")
</pallas_src>

<mosaic_0001>
module attributes {stable_mosaic.version = 11 : i64} {
  func.func @_modconv_kernel(%arg0: i32, %arg1: i32, %arg2: memref<1x4x1xf32, #tpu.memory_space<vmem>>, %arg3: memref<9x4x8xbf16, #tpu.memory_space<vmem>>, %arg4: memref<1x1x18x18x4xbf16, #tpu.memory_space<vmem>>, %arg5: memref<1x16x16x8xf32, #tpu.memory_space<vmem>>, %arg6: memref<9x4x8xbf16, #tpu.memory_space<vmem>>) attributes {dimension_semantics = [#tpu.dimension_semantics<parallel>, #tpu.dimension_semantics<arbitrary>], iteration_bounds = array<i64: 2, 1>, scalar_prefetch = 0 : i64, scratch_operands = 1 : i64, tpu.core_type = #tpu.core_type<tc>, window_params = [{transform_indices = @transform_0, window_bounds = array<i64: 1, 4, 1>}, {pipeline_mode = #tpu.pipeline_mode<synchronous>, transform_indices = @transform_1, window_bounds = array<i64: 9, 4, 8>}, {transform_indices = @transform_2, window_bounds = array<i64: 1, 1, 18, 18, 4>}, {transform_indices = @transform_3, window_bounds = array<i64: 1, 16, 16, 8>}]} {
    %c0_i32 = arith.constant 0 : i32
    %0 = arith.cmpi eq, %arg1, %c0_i32 : i32
    %1 = arith.extui %0 : i1 to i32
    %c0_i32_0 = arith.constant 0 : i32
    %2 = arith.cmpi ne, %1, %c0_i32_0 : i32
    scf.if %2 {
      %c0_103 = arith.constant 0 : index
      %c0_104 = arith.constant 0 : index
      %c0_105 = arith.constant 0 : index
      %78 = vector.load %arg3[%c0_103, %c0_104, %c0_105] : memref<9x4x8xbf16, #tpu.memory_space<vmem>>, vector<9x4x8xbf16>
      %79 = arith.extf %78 : vector<9x4x8xbf16> to vector<9x4x8xf32>
      %c0_106 = arith.constant 0 : index
      %c0_107 = arith.constant 0 : index
      %c0_108 = arith.constant 0 : index
      %80 = vector.load %arg2[%c0_106, %c0_107, %c0_108] : memref<1x4x1xf32, #tpu.memory_space<vmem>>, vector<1x4x1xf32>
      %81 = vector.shape_cast %80 : vector<1x4x1xf32> to vector<4x1xf32>
      %82 = vector.shape_cast %81 : vector<4x1xf32> to vector<1x4x1xf32>
      %83 = vector.broadcast %82 : vector<1x4x1xf32> to vector<9x4x8xf32>
      %84 = arith.mulf %79, %83 : vector<9x4x8xf32>
      %85 = arith.mulf %84, %84 : vector<9x4x8xf32>
      %cst_109 = arith.constant dense<0.000000e+00> : vector<8xf32>
      %86 = vector.multi_reduction <add>, %85, %cst_109 [0, 1] : vector<9x4x8xf32> to vector<8xf32>
      %87 = vector.shape_cast %86 : vector<8xf32> to vector<1x1x8xf32>
      %cst_110 = arith.constant 9.99999993E-9 : f32
      %88 = vector.broadcast %cst_110 : f32 to vector<1x1x8xf32>
      %89 = arith.addf %87, %88 : vector<1x1x8xf32>
      %90 = math.rsqrt %89 : vector<1x1x8xf32>
      %91 = vector.broadcast %90 : vector<1x1x8xf32> to vector<9x4x8xf32>
      %92 = arith.mulf %84, %91 : vector<9x4x8xf32>
      %93 = arith.truncf %92 : vector<9x4x8xf32> to vector<9x4x8xbf16>
      %c0_111 = arith.constant 0 : index
      %c0_112 = arith.constant 0 : index
      %c0_113 = arith.constant 0 : index
      %94 = vector.load %arg6[%c0_111, %c0_112, %c0_113] : memref<9x4x8xbf16, #tpu.memory_space<vmem>>, vector<9x4x8xbf16>
      tpu.vector_store %arg6[%c0_111, %c0_112, %c0_113], %93 {strides = array<i32>} : memref<9x4x8xbf16, #tpu.memory_space<vmem>>, vector<9x4x8xbf16>,
    } else {
    }
    %c0_i32_1 = arith.constant 0 : i32
    %c0_i32_2 = arith.constant 0 : i32
    %c0_i32_3 = arith.constant 0 : i32
    %c0_i32_4 = arith.constant 0 : i32
    %c0_i32_5 = arith.constant 0 : i32
    %3 = tpu.memref_slice %arg4[%c0_i32_1, %c0_i32_2, %c0_i32_3, %c0_i32_4, %c0_i32_5] : memref<1x1x18x18x4xbf16, #tpu.memory_space<vmem>> -> memref<1x1x18x18x4xbf16, #tpu.memory_space<vmem>>
    %4 = tpu.memref_squeeze %3 : memref<1x1x18x18x4xbf16, #tpu.memory_space<vmem>> -> memref<18x18x4xbf16, #tpu.memory_space<vmem>>
    %c0 = arith.constant 0 : index
    %c0_6 = arith.constant 0 : index
    %c0_7 = arith.constant 0 : index
    %5 = vector.load %4[%c0, %c0_6, %c0_7] : memref<18x18x4xbf16, #tpu.memory_space<vmem>>, vector<16x16x4xbf16>
    %6 = vector.shape_cast %5 : vector<16x16x4xbf16> to vector<256x4xbf16>
    %c0_8 = arith.constant 0 : index
    %c0_9 = arith.constant 0 : index
    %c0_10 = arith.constant 0 : index
    %7 = vector.load %arg6[%c0_8, %c0_9, %c0_10] : memref<9x4x8xbf16, #tpu.memory_space<vmem>>, vector<1x4x8xbf16>
    %8 = vector.shape_cast %7 : vector<1x4x8xbf16> to vector<4x8xbf16>
    %cst = arith.constant dense<0.000000e+00> : vector<256x8xf32>
    %9 = tpu.matmul %6, %8, %cst {dimension_numbers = #tpu.dot_dimension_numbers<[1], [0], [0], [1], [0, 0, 1, 1], [], []>} : vector<256x4xbf16>, vector<4x8xbf16>, vector<256x8xf32> -> vector<256x8xf32>
    %c0_i32_11 = arith.constant 0 : i32
    %c0_i32_12 = arith.constant 0 : i32
    %c0_i32_13 = arith.constant 0 : i32
    %c0_i32_14 = arith.constant 0 : i32
    %c0_i32_15 = arith.constant 0 : i32
    %10 = tpu.memref_slice %arg4[%c0_i32_11, %c0_i32_12, %c0_i32_13, %c0_i32_14, %c0_i32_15] : memref<1x1x18x18x4xbf16, #tpu.memory_space<vmem>> -> memref<1x1x18x18x4xbf16, #tpu.memory_space<vmem>>
    %11 = tpu.memref_squeeze %10 : memref<1x1x18x18x4xbf16, #tpu.memory_space<vmem>> -> memref<18x18x4xbf16, #tpu.memory_space<vmem>>
    %c0_16 = arith.constant 0 : index
    %c1 = arith.constant 1 : index
    %c0_17 = arith.constant 0 : index
    %12 = vector.load %11[%c0_16, %c1, %c0_17] : memref<18x18x4xbf16, #tpu.memory_space<vmem>>, vector<16x16x4xbf16>
    %13 = vector.shape_cast %12 : vector<16x16x4xbf16> to vector<256x4xbf16>
    %c1_18 = arith.constant 1 : index
    %c0_19 = arith.constant 0 : index
    %c0_20 = arith.constant 0 : index
    %14 = vector.load %arg6[%c1_18, %c0_19, %c0_20] : memref<9x4x8xbf16, #tpu.memory_space<vmem>>, vector<1x4x8xbf16>
    %15 = vector.shape_cast %14 : vector<1x4x8xbf16> to vector<4x8xbf16>
    %cst_21 = arith.constant dense<0.000000e+00> : vector<256x8xf32>
    %16 = tpu.matmul %13, %15, %cst_21 {dimension_numbers = #tpu.dot_dimension_numbers<[1], [0], [0], [1], [0, 0, 1, 1], [], []>} : vector<256x4xbf16>, vector<4x8xbf16>, vector<256x8xf32> -> vector<256x8xf32>
    %17 = arith.addf %9, %16 : vector<256x8xf32>
    %c0_i32_22 = arith.constant 0 : i32
    %c0_i32_23 = arith.constant 0 : i32
    %c0_i32_24 = arith.constant 0 : i32
    %c0_i32_25 = arith.constant 0 : i32
    %c0_i32_26 = arith.constant 0 : i32
    %18 = tpu.memref_slice %arg4[%c0_i32_22, %c0_i32_23, %c0_i32_24, %c0_i32_25, %c0_i32_26] : memref<1x1x18x18x4xbf16, #tpu.memory_space<vmem>> -> memref<1x1x18x18x4xbf16, #tpu.memory_space<vmem>>
    %19 = tpu.memref_squeeze %18 : memref<1x1x18x18x4xbf16, #tpu.memory_space<vmem>> -> memref<18x18x4xbf16, #tpu.memory_space<vmem>>
    %c0_27 = arith.constant 0 : index
    %c2 = arith.constant 2 : index
    %c0_28 = arith.constant 0 : index
    %20 = vector.load %19[%c0_27, %c2, %c0_28] : memref<18x18x4xbf16, #tpu.memory_space<vmem>>, vector<16x16x4xbf16>
    %21 = vector.shape_cast %20 : vector<16x16x4xbf16> to vector<256x4xbf16>
    %c2_29 = arith.constant 2 : index
    %c0_30 = arith.constant 0 : index
    %c0_31 = arith.constant 0 : index
    %22 = vector.load %arg6[%c2_29, %c0_30, %c0_31] : memref<9x4x8xbf16, #tpu.memory_space<vmem>>, vector<1x4x8xbf16>
    %23 = vector.shape_cast %22 : vector<1x4x8xbf16> to vector<4x8xbf16>
    %cst_32 = arith.constant dense<0.000000e+00> : vector<256x8xf32>
    %24 = tpu.matmul %21, %23, %cst_32 {dimension_numbers = #tpu.dot_dimension_numbers<[1], [0], [0], [1], [0, 0, 1, 1], [], []>} : vector<256x4xbf16>, vector<4x8xbf16>, vector<256x8xf32> -> vector<256x8xf32>
    %25 = arith.addf %17, %24 : vector<256x8xf32>
    %c0_i32_33 = arith.constant 0 : i32
    %c0_i32_34 = arith.constant 0 : i32
    %c0_i32_35 = arith.constant 0 : i32
    %c0_i32_36 = arith.constant 0 : i32
    %c0_i32_37 = arith.constant 0 : i32
    %26 = tpu.memref_slice %arg4[%c0_i32_33, %c0_i32_34, %c0_i32_35, %c0_i32_36, %c0_i32_37] : memref<1x1x18x18x4xbf16, #tpu.memory_space<vmem>> -> memref<1x1x18x18x4xbf16, #tpu.memory_space<vmem>>
    %27 = tpu.memref_squeeze %26 : memref<1x1x18x18x4xbf16, #tpu.memory_space<vmem>> -> memref<18x18x4xbf16, #tpu.memory_space<vmem>>
    %c1_38 = arith.constant 1 : index
    %c0_39 = arith.constant 0 : index
    %c0_40 = arith.constant 0 : index
    %28 = vector.load %27[%c1_38, %c0_39, %c0_40] : memref<18x18x4xbf16, #tpu.memory_space<vmem>>, vector<16x16x4xbf16>
    %29 = vector.shape_cast %28 : vector<16x16x4xbf16> to vector<256x4xbf16>
    %c3 = arith.constant 3 : index
    %c0_41 = arith.constant 0 : index
    %c0_42 = arith.constant 0 : index
    %30 = vector.load %arg6[%c3, %c0_41, %c0_42] : memref<9x4x8xbf16, #tpu.memory_space<vmem>>, vector<1x4x8xbf16>
    %31 = vector.shape_cast %30 : vector<1x4x8xbf16> to vector<4x8xbf16>
    %cst_43 = arith.constant dense<0.000000e+00> : vector<256x8xf32>
    %32 = tpu.matmul %29, %31, %cst_43 {dimension_numbers = #tpu.dot_dimension_numbers<[1], [0], [0], [1], [0, 0, 1, 1], [], []>} : vector<256x4xbf16>, vector<4x8xbf16>, vector<256x8xf32> -> vector<256x8xf32>
    %33 = arith.addf %25, %32 : vector<256x8xf32>
    %c0_i32_44 = arith.constant 0 : i32
    %c0_i32_45 = arith.constant 0 : i32
    %c0_i32_46 = arith.constant 0 : i32
    %c0_i32_47 = arith.constant 0 : i32
    %c0_i32_48 = arith.constant 0 : i32
    %34 = tpu.memref_slice %arg4[%c0_i32_44, %c0_i32_45, %c0_i32_46, %c0_i32_47, %c0_i32_48] : memref<1x1x18x18x4xbf16, #tpu.memory_space<vmem>> -> memref<1x1x18x18x4xbf16, #tpu.memory_space<vmem>>
    %35 = tpu.memref_squeeze %34 : memref<1x1x18x18x4xbf16, #tpu.memory_space<vmem>> -> memref<18x18x4xbf16, #tpu.memory_space<vmem>>
    %c1_49 = arith.constant 1 : index
    %c1_50 = arith.constant 1 : index
    %c0_51 = arith.constant 0 : index
    %36 = vector.load %35[%c1_49, %c1_50, %c0_51] : memref<18x18x4xbf16, #tpu.memory_space<vmem>>, vector<16x16x4xbf16>
    %37 = vector.shape_cast %36 : vector<16x16x4xbf16> to vector<256x4xbf16>
    %c4 = arith.constant 4 : index
    %c0_52 = arith.constant 0 : index
    %c0_53 = arith.constant 0 : index
    %38 = vector.load %arg6[%c4, %c0_52, %c0_53] : memref<9x4x8xbf16, #tpu.memory_space<vmem>>, vector<1x4x8xbf16>
    %39 = vector.shape_cast %38 : vector<1x4x8xbf16> to vector<4x8xbf16>
    %cst_54 = arith.constant dense<0.000000e+00> : vector<256x8xf32>
    %40 = tpu.matmul %37, %39, %cst_54 {dimension_numbers = #tpu.dot_dimension_numbers<[1], [0], [0], [1], [0, 0, 1, 1], [], []>} : vector<256x4xbf16>, vector<4x8xbf16>, vector<256x8xf32> -> vector<256x8xf32>
    %41 = arith.addf %33, %40 : vector<256x8xf32>
    %c0_i32_55 = arith.constant 0 : i32
    %c0_i32_56 = arith.constant 0 : i32
    %c0_i32_57 = arith.constant 0 : i32
    %c0_i32_58 = arith.constant 0 : i32
    %c0_i32_59 = arith.constant 0 : i32
    %42 = tpu.memref_slice %arg4[%c0_i32_55, %c0_i32_56, %c0_i32_57, %c0_i32_58, %c0_i32_59] : memref<1x1x18x18x4xbf16, #tpu.memory_space<vmem>> -> memref<1x1x18x18x4xbf16, #tpu.memory_space<vmem>>
    %43 = tpu.memref_squeeze %42 : memref<1x1x18x18x4xbf16, #tpu.memory_space<vmem>> -> memref<18x18x4xbf16, #tpu.memory_space<vmem>>
    %c1_60 = arith.constant 1 : index
    %c2_61 = arith.constant 2 : index
    %c0_62 = arith.constant 0 : index
    %44 = vector.load %43[%c1_60, %c2_61, %c0_62] : memref<18x18x4xbf16, #tpu.memory_space<vmem>>, vector<16x16x4xbf16>
    %45 = vector.shape_cast %44 : vector<16x16x4xbf16> to vector<256x4xbf16>
    %c5 = arith.constant 5 : index
    %c0_63 = arith.constant 0 : index
    %c0_64 = arith.constant 0 : index
    %46 = vector.load %arg6[%c5, %c0_63, %c0_64] : memref<9x4x8xbf16, #tpu.memory_space<vmem>>, vector<1x4x8xbf16>
    %47 = vector.shape_cast %46 : vector<1x4x8xbf16> to vector<4x8xbf16>
    %cst_65 = arith.constant dense<0.000000e+00> : vector<256x8xf32>
    %48 = tpu.matmul %45, %47, %cst_65 {dimension_numbers = #tpu.dot_dimension_numbers<[1], [0], [0], [1], [0, 0, 1, 1], [], []>} : vector<256x4xbf16>, vector<4x8xbf16>, vector<256x8xf32> -> vector<256x8xf32>
    %49 = arith.addf %41, %48 : vector<256x8xf32>
    %c0_i32_66 = arith.constant 0 : i32
    %c0_i32_67 = arith.constant 0 : i32
    %c0_i32_68 = arith.constant 0 : i32
    %c0_i32_69 = arith.constant 0 : i32
    %c0_i32_70 = arith.constant 0 : i32
    %50 = tpu.memref_slice %arg4[%c0_i32_66, %c0_i32_67, %c0_i32_68, %c0_i32_69, %c0_i32_70] : memref<1x1x18x18x4xbf16, #tpu.memory_space<vmem>> -> memref<1x1x18x18x4xbf16, #tpu.memory_space<vmem>>
    %51 = tpu.memref_squeeze %50 : memref<1x1x18x18x4xbf16, #tpu.memory_space<vmem>> -> memref<18x18x4xbf16, #tpu.memory_space<vmem>>
    %c2_71 = arith.constant 2 : index
    %c0_72 = arith.constant 0 : index
    %c0_73 = arith.constant 0 : index
    %52 = vector.load %51[%c2_71, %c0_72, %c0_73] : memref<18x18x4xbf16, #tpu.memory_space<vmem>>, vector<16x16x4xbf16>
    %53 = vector.shape_cast %52 : vector<16x16x4xbf16> to vector<256x4xbf16>
    %c6 = arith.constant 6 : index
    %c0_74 = arith.constant 0 : index
    %c0_75 = arith.constant 0 : index
    %54 = vector.load %arg6[%c6, %c0_74, %c0_75] : memref<9x4x8xbf16, #tpu.memory_space<vmem>>, vector<1x4x8xbf16>
    %55 = vector.shape_cast %54 : vector<1x4x8xbf16> to vector<4x8xbf16>
    %cst_76 = arith.constant dense<0.000000e+00> : vector<256x8xf32>
    %56 = tpu.matmul %53, %55, %cst_76 {dimension_numbers = #tpu.dot_dimension_numbers<[1], [0], [0], [1], [0, 0, 1, 1], [], []>} : vector<256x4xbf16>, vector<4x8xbf16>, vector<256x8xf32> -> vector<256x8xf32>
    %57 = arith.addf %49, %56 : vector<256x8xf32>
    %c0_i32_77 = arith.constant 0 : i32
    %c0_i32_78 = arith.constant 0 : i32
    %c0_i32_79 = arith.constant 0 : i32
    %c0_i32_80 = arith.constant 0 : i32
    %c0_i32_81 = arith.constant 0 : i32
    %58 = tpu.memref_slice %arg4[%c0_i32_77, %c0_i32_78, %c0_i32_79, %c0_i32_80, %c0_i32_81] : memref<1x1x18x18x4xbf16, #tpu.memory_space<vmem>> -> memref<1x1x18x18x4xbf16, #tpu.memory_space<vmem>>
    %59 = tpu.memref_squeeze %58 : memref<1x1x18x18x4xbf16, #tpu.memory_space<vmem>> -> memref<18x18x4xbf16, #tpu.memory_space<vmem>>
    %c2_82 = arith.constant 2 : index
    %c1_83 = arith.constant 1 : index
    %c0_84 = arith.constant 0 : index
    %60 = vector.load %59[%c2_82, %c1_83, %c0_84] : memref<18x18x4xbf16, #tpu.memory_space<vmem>>, vector<16x16x4xbf16>
    %61 = vector.shape_cast %60 : vector<16x16x4xbf16> to vector<256x4xbf16>
    %c7 = arith.constant 7 : index
    %c0_85 = arith.constant 0 : index
    %c0_86 = arith.constant 0 : index
    %62 = vector.load %arg6[%c7, %c0_85, %c0_86] : memref<9x4x8xbf16, #tpu.memory_space<vmem>>, vector<1x4x8xbf16>
    %63 = vector.shape_cast %62 : vector<1x4x8xbf16> to vector<4x8xbf16>
    %cst_87 = arith.constant dense<0.000000e+00> : vector<256x8xf32>
    %64 = tpu.matmul %61, %63, %cst_87 {dimension_numbers = #tpu.dot_dimension_numbers<[1], [0], [0], [1], [0, 0, 1, 1], [], []>} : vector<256x4xbf16>, vector<4x8xbf16>, vector<256x8xf32> -> vector<256x8xf32>
    %65 = arith.addf %57, %64 : vector<256x8xf32>
    %c0_i32_88 = arith.constant 0 : i32
    %c0_i32_89 = arith.constant 0 : i32
    %c0_i32_90 = arith.constant 0 : i32
    %c0_i32_91 = arith.constant 0 : i32
    %c0_i32_92 = arith.constant 0 : i32
    %66 = tpu.memref_slice %arg4[%c0_i32_88, %c0_i32_89, %c0_i32_90, %c0_i32_91, %c0_i32_92] : memref<1x1x18x18x4xbf16, #tpu.memory_space<vmem>> -> memref<1x1x18x18x4xbf16, #tpu.memory_space<vmem>>
    %67 = tpu.memref_squeeze %66 : memref<1x1x18x18x4xbf16, #tpu.memory_space<vmem>> -> memref<18x18x4xbf16, #tpu.memory_space<vmem>>
    %c2_93 = arith.constant 2 : index
    %c2_94 = arith.constant 2 : index
    %c0_95 = arith.constant 0 : index
    %68 = vector.load %67[%c2_93, %c2_94, %c0_95] : memref<18x18x4xbf16, #tpu.memory_space<vmem>>, vector<16x16x4xbf16>
    %69 = vector.shape_cast %68 : vector<16x16x4xbf16> to vector<256x4xbf16>
    %c8 = arith.constant 8 : index
    %c0_96 = arith.constant 0 : index
    %c0_97 = arith.constant 0 : index
    %70 = vector.load %arg6[%c8, %c0_96, %c0_97] : memref<9x4x8xbf16, #tpu.memory_space<vmem>>, vector<1x4x8xbf16>
    %71 = vector.shape_cast %70 : vector<1x4x8xbf16> to vector<4x8xbf16>
    %cst_98 = arith.constant dense<0.000000e+00> : vector<256x8xf32>
    %72 = tpu.matmul %69, %71, %cst_98 {dimension_numbers = #tpu.dot_dimension_numbers<[1], [0], [0], [1], [0, 0, 1, 1], [], []>} : vector<256x4xbf16>, vector<4x8xbf16>, vector<256x8xf32> -> vector<256x8xf32>
    %73 = arith.addf %65, %72 : vector<256x8xf32>
    %74 = vector.shape_cast %73 : vector<256x8xf32> to vector<16x16x8xf32>
    %c0_99 = arith.constant 0 : index
    %c0_100 = arith.constant 0 : index
    %c0_101 = arith.constant 0 : index
    %c0_102 = arith.constant 0 : index
    %75 = vector.load %arg5[%c0_99, %c0_100, %c0_101, %c0_102] : memref<1x16x16x8xf32, #tpu.memory_space<vmem>>, vector<1x16x16x8xf32>
    %76 = vector.shape_cast %75 : vector<1x16x16x8xf32> to vector<16x16x8xf32>
    %77 = vector.shape_cast %74 : vector<16x16x8xf32> to vector<1x16x16x8xf32>
    tpu.vector_store %arg5[%c0_99, %c0_100, %c0_101, %c0_102], %77 {strides = array<i32>} : memref<1x16x16x8xf32, #tpu.memory_space<vmem>>, vector<1x16x16x8xf32>,
    return
  }
  func.func @transform_0(%arg0: i32, %arg1: i32) -> (i32, i32, i32) {
    %c0_i32 = arith.constant 0 : i32
    %c0_i32_0 = arith.constant 0 : i32
    %c0_i32_1 = arith.constant 0 : i32
    return %arg0, %c0_i32, %c0_i32_0 : i32, i32, i32
  }
  func.func @transform_1(%arg0: i32, %arg1: i32) -> (i32, i32, i32) {
    %c0_i32 = arith.constant 0 : i32
    %c0_i32_0 = arith.constant 0 : i32
    %c0_i32_1 = arith.constant 0 : i32
    %c0_i32_2 = arith.constant 0 : i32
    return %c0_i32, %c0_i32_0, %c0_i32_1 : i32, i32, i32
  }
  func.func @transform_2(%arg0: i32, %arg1: i32) -> (i32, i32, i32, i32, i32) {
    %c0_i32 = arith.constant 0 : i32
    %c0_i32_0 = arith.constant 0 : i32
    %c0_i32_1 = arith.constant 0 : i32
    %c0_i32_2 = arith.constant 0 : i32
    return %arg0, %arg1, %c0_i32, %c0_i32_0, %c0_i32_1 : i32, i32, i32, i32, i32
  }
  func.func @transform_3(%arg0: i32, %arg1: i32) -> (i32, i32, i32, i32) {
    %c0_i32 = arith.constant 0 : i32
    %c0_i32_0 = arith.constant 0 : i32
    %c0_i32_1 = arith.constant 0 : i32
    return %arg0, %arg1, %c0_i32, %c0_i32_0 : i32, i32, i32, i32
  }
}

</mosaic_0001>

<llo_original>
// kernel: tpu_custom_call.1
$region0: #{tpu_custom_call.1}
  #allocation0 [shape = 'u32[]', space=smem, size = 0x4, offset = 0x4, fixed_abs, tag = 'smem constant byte address 0x4 - core index']
  #allocation1 [shape = 'u32[144,128]{1,0:T(1,128)}', space=vmem, size = 0x12000, scoped, tag = 'internal scratch']
  #allocation2 [shape = 'bf16[9,4,8]{2,1,0:T(4,128)(2,1)}', space=vmem, size = 0x2400, scoped, tag = 'scratch operand']
  %s0 = inlined_call_operand.vmem [shape: f32[2,4,1], index: 0, kind: input, shape index: {}]
  %s1 = inlined_call_operand.vmem [shape: bf16[9,4,8], index: 1, kind: input, shape index: {}]
  %s2 = inlined_call_operand.vmem [shape: bf16[2,1,18,18,4], index: 2, kind: input, shape index: {}]
  %s3 = inlined_call_operand.vmem [shape: f32[2,16,16,8], index: 3, kind: output, shape index: {}]
  %s4 = sld [smem:[#allocation0]]
  $region49: #{tpu_custom_call.1} parent=0
    _
  %s6 = ssub.s32 1, %s4
  %s7 = scalar_select 0, %s6, %s4
  loop: start=0, step=1, limit=4
  $region2: #{tpu_custom_call.1} parent=0 // loop_pre_header
    _
  $region3: #{tpu_custom_call.1} parent=0 // loop_header
    %s9 = sphi 0, %s13
    %p10 = scmp.ge.s32.totalorder %s9, 4
    %s16 = sphi 0, %s28
    %s17 = sphi 0, %s24
    %s18 = sphi 0, %s16
    %s19 = sphi 0, %s17
    %s20 = sphi 0, %s18
    %s21 = sphi 0, %s19
    %s31 = sphi 0, %s33
    %s34 = sphi 0, %s31
    %s35 = sphi 0, %s34
    %s51 = sphi 0, %s35
    %s55 = sphi 0, %s55
    %s57 = sphi 0, %s55
    %s58 = sphi 0, %s57
    %s72 = sphi 0, %s58
    %s80 = sphi 0, %s82
    %s83 = sphi 0, %s80
    %s84 = sphi 0, %s83
    %s100 = sphi 0, %s84
    %s108 = sphi 0, %s110
    %s111 = sphi 0, %s108
    %s112 = sphi 0, %s111
    %s128 = sphi 0, %s112
  $region4: #{tpu_custom_call.1} parent=0 // loop_header_branch
    %12 = sbr.rel (%p10) target = $region8
  $region5: #{tpu_custom_call.1} parent=0 // loop_body
    %s14 = ssub.s32 %s9, 1
    %s15 = ssub.s32 %s9, 2
    %s22 = sadd.s32 1, %s17
    %p23 = scmp.ge.s32.totalorder %s22, 1
    %s24 = scalar_select %p23, 0, %s22
    %s25 = sadd.s32 1, %s16
    %s26 = scalar_select %p23, %s25, %s16
    %p27 = scmp.ge.s32.totalorder %s26, 2
    %s28 = scalar_select %p27, 0, %s26
    %s29 = ssub.s32 %s16, %s28
    %p30 = scmp.eq.s32.totalorder %s29, 0
    %s32 = sadd.s32 %s31, 1
    %s33 = scalar_select %p30, %s31, %s32
    %p36 = pneg %p30
    %p37 = scmp.eq.s32.totalorder %s9, 1
    %p38 = por %p36, %p37
    %p39 = scmp.ne.s32.totalorder %s31, %s34
    %p40 = scmp.eq.s32.totalorder %s9, 0
    %p41 = por %p39, %p40
    %p42 = scmp.ne.s32.totalorder %s31, %s34
    %p43 = scmp.eq.s32.totalorder %s14, 1
    %p44 = por %p42, %p43
    %p45 = scmp.ne.s32.totalorder %s34, %s35
    %p46 = scmp.eq.s32.totalorder %s14, 0
    %p47 = por %p45, %p46
    %p48 = scmp.ne.s32.totalorder %s34, %s35
    %p49 = scmp.eq.s32.totalorder %s15, 1
    %p50 = por %p48, %p49
    %p52 = scmp.ne.s32.totalorder %s35, %s51
    %p53 = scmp.eq.s32.totalorder %s15, 0
    %p54 = por %p52, %p53
    %s56 = sadd.s32 %s55, 1
    %p59 = scmp.eq.s32.totalorder %s9, 1
    %p60 = scmp.ne.s32.totalorder %s55, %s57
    %p61 = scmp.eq.s32.totalorder %s9, 0
    %p62 = por %p60, %p61
    %p63 = scmp.ne.s32.totalorder %s55, %s57
    %p64 = scmp.eq.s32.totalorder %s14, 1
    %p65 = por %p63, %p64
    %p66 = scmp.ne.s32.totalorder %s57, %s58
    %p67 = scmp.eq.s32.totalorder %s14, 0
    %p68 = por %p66, %p67
    %p69 = scmp.ne.s32.totalorder %s57, %s58
    %p70 = scmp.eq.s32.totalorder %s15, 1
    %p71 = por %p69, %p70
    %p73 = scmp.ne.s32.totalorder %s58, %s72
    %p74 = scmp.eq.s32.totalorder %s15, 0
    %p75 = por %p73, %p74
    %s76 = ssub.s32 %s16, %s28
    %s77 = ssub.s32 %s17, %s24
    %s78 = sor.u32 %s76, %s77
    %p79 = scmp.eq.s32.totalorder %s78, 0
    %s81 = sadd.s32 %s80, 1
    %s82 = scalar_select %p79, %s80, %s81
    %p85 = pneg %p79
    %p86 = scmp.eq.s32.totalorder %s9, 1
    %p87 = por %p85, %p86
    %p88 = scmp.ne.s32.totalorder %s80, %s83
    %p89 = scmp.eq.s32.totalorder %s9, 0
    %p90 = por %p88, %p89
    %p91 = scmp.ne.s32.totalorder %s80, %s83
    %p92 = scmp.eq.s32.totalorder %s14, 1
    %p93 = por %p91, %p92
    %p94 = scmp.ne.s32.totalorder %s83, %s84
    %p95 = scmp.eq.s32.totalorder %s14, 0
    %p96 = por %p94, %p95
    %p97 = scmp.ne.s32.totalorder %s83, %s84
    %p98 = scmp.eq.s32.totalorder %s15, 1
    %p99 = por %p97, %p98
    %p101 = scmp.ne.s32.totalorder %s84, %s100
    %p102 = scmp.eq.s32.totalorder %s15, 0
    %p103 = por %p101, %p102
    %s104 = ssub.s32 %s16, %s28
    %s105 = ssub.s32 %s17, %s24
    %s106 = sor.u32 %s104, %s105
    %p107 = scmp.eq.s32.totalorder %s106, 0
    %s109 = sadd.s32 %s108, 1
    %s110 = scalar_select %p107, %s108, %s109
    %p113 = pneg %p107
    %p114 = scmp.eq.s32.totalorder %s9, 1
    %p115 = por %p113, %p114
    %p116 = scmp.ne.s32.totalorder %s108, %s111
    %p117 = scmp.eq.s32.totalorder %s9, 0
    %p118 = por %p116, %p117
    %p119 = scmp.ne.s32.totalorder %s108, %s111
    %p120 = scmp.eq.s32.totalorder %s14, 1
    %p121 = por %p119, %p120
    %p122 = scmp.ne.s32.totalorder %s111, %s112
    %p123 = scmp.eq.s32.totalorder %s14, 0
    %p124 = por %p122, %p123
    %p125 = scmp.ne.s32.totalorder %s111, %s112
    %p126 = scmp.eq.s32.totalorder %s15, 1
    %p127 = por %p125, %p126
    %p129 = scmp.ne.s32.totalorder %s112, %s128
    %p130 = scmp.eq.s32.totalorder %s15, 0
    %p131 = por %p129, %p130
    %p132 = scmp.le.s32.totalorder 1, %s9
    %p133 = scmp.lt.s32.totalorder %s9, 3
    %p134 = pnand %p132, %p133
    %p135 = pneg %p134
    // Predicated region
    $region9: #{tpu_custom_call.1} parent=5 // pred_check
      _
    $region10: #{tpu_custom_call.1} parent=5 // pred_check_branch
      %137 = sbr.rel (%p134) target = $region12
    $region11: #{tpu_custom_call.1} parent=5 // pred_region
      %s138 = ssub.s32 %s9, 1
      // Predicated region
      $region13: #{tpu_custom_call.1} parent=11 // pred_check
        %p139 = pneg %p68
      $region14: #{tpu_custom_call.1} parent=11 // pred_check_branch
        %141 = sbr.rel (%p139) target = $region16
      $region15: #{tpu_custom_call.1} parent=11 // pred_region
        _
      $region16: #{tpu_custom_call.1} parent=11 // pred_fallthru
        _
    $region12: #{tpu_custom_call.1} parent=5 // pred_fallthru
      _
    %p142 = scmp.lt.s32.totalorder %s9, 2
    // Predicated region
    $region17: #{tpu_custom_call.1} parent=5 // pred_check
      %p143 = pneg %p142
    $region18: #{tpu_custom_call.1} parent=5 // pred_check_branch
      %145 = sbr.rel (%p143) target = $region20
    $region19: #{tpu_custom_call.1} parent=5 // pred_region
      // Predicated region
      $region21: #{tpu_custom_call.1} parent=19 // pred_check
        %p146 = pneg %p41
      $region22: #{tpu_custom_call.1} parent=19 // pred_check_branch
        %148 = sbr.rel (%p146) target = $region24
      $region23: #{tpu_custom_call.1} parent=19 // pred_region
        %p149 = scmp.lt.s32.totalorder %s16, 1
        %s150 = scalar_select %p149, %s16, 1
        %s151 = smul.addr %s150, 4
        %s152 = scalar_lea.vmem %s0, %s151
      $region24: #{tpu_custom_call.1} parent=19 // pred_fallthru
        _
      // Predicated region
      $region25: #{tpu_custom_call.1} parent=19 // pred_check
        %p153 = pneg %p90
      $region26: #{tpu_custom_call.1} parent=19 // pred_check_branch
        %155 = sbr.rel (%p153) target = $region28
      $region27: #{tpu_custom_call.1} parent=19 // pred_region
        %p156 = scmp.lt.s32.totalorder %s16, 1
        %s157 = scalar_select %p156, %s16, 1
        %p158 = scmp.lt.s32.totalorder %s17, 0
        %s159 = scalar_select %p158, %s17, 0
        %s160 = smul.addr %s159, 54
        %s161 = smul.addr %s157, 54
        %s162 = sadd.s32 %s160, %s161
        %s163 = smul.addr %s162, 4
        %s164 = scalar_lea.vmem %s2, %s163
      $region28: #{tpu_custom_call.1} parent=19 // pred_fallthru
        _
    $region20: #{tpu_custom_call.1} parent=5 // pred_fallthru
      _
    %p165 = scmp.le.s32.totalorder 1, %s9
    %p166 = scmp.lt.s32.totalorder %s9, 3
    %p167 = pnand %p165, %p166
    %p168 = pneg %p167
    // Predicated region
    $region29: #{tpu_custom_call.1} parent=5 // pred_check
      _
    $region30: #{tpu_custom_call.1} parent=5 // pred_check_branch
      %170 = sbr.rel (%p167) target = $region32
    $region31: #{tpu_custom_call.1} parent=5 // pred_region
      %s171 = ssub.s32 %s9, 1
      %p172 = scmp.lt.s32.totalorder %s18, 1
      %s173 = scalar_select %p172, %s18, 1
      %s174 = smul.addr %s173, 4
      %s175 = scalar_lea.vmem %s0, %s174
      %p176 = pneg %p47
      %p177 = pneg %p44
      %p178 = pneg %p68
      %p179 = pneg %p65
      %p180 = scmp.lt.s32.totalorder %s18, 1
      %s181 = scalar_select %p180, %s18, 1
      %p182 = scmp.lt.s32.totalorder %s19, 0
      %s183 = scalar_select %p182, %s19, 0
      %s184 = smul.addr %s183, 54
      %s185 = smul.addr %s181, 54
      %s186 = sadd.s32 %s184, %s185
      %s187 = smul.addr %s186, 4
      %s188 = scalar_lea.vmem %s2, %s187
      %p189 = pneg %p96
      %p190 = pneg %p93
      %p191 = pneg %p124
      %p192 = pneg %p121
      %s193 = smul.u32 16, %s19
      %p194 = scmp.lt.s32.totalorder %s18, 1
      %s195 = scalar_select %p194, %s18, 1
      %p196 = scmp.lt.s32.totalorder %s193, 15
      %s197 = scalar_select %p196, %s193, 15
      %s198 = smul.addr %s197, 2
      %s199 = smul.addr %s195, 32
      %s200 = sadd.s32 %s198, %s199
      %s201 = smul.addr %s200, 8
      %s202 = scalar_lea.vmem %s3, %s201
      %p203 = scmp.lt.s32.totalorder %s18, 1
      %s204 = scalar_select %p203, %s18, 1
      %s205 = smul.addr %s204, 4
      %s206 = scalar_lea.vmem %s0, %s205
      %p207 = scmp.lt.s32.totalorder %s18, 1
      %s208 = scalar_select %p207, %s18, 1
      %p209 = scmp.lt.s32.totalorder %s19, 0
      %s210 = scalar_select %p209, %s19, 0
      %s211 = smul.addr %s210, 54
      %s212 = smul.addr %s208, 54
      %s213 = sadd.s32 %s211, %s212
      %s214 = smul.addr %s213, 4
      %s215 = scalar_lea.vmem %s2, %s214
      %s216 = smul.u32 16, %s19
      %p217 = scmp.lt.s32.totalorder %s18, 1
      %s218 = scalar_select %p217, %s18, 1
      %p219 = scmp.lt.s32.totalorder %s216, 15
      %s220 = scalar_select %p219, %s216, 15
      %s221 = smul.addr %s220, 2
      %s222 = smul.addr %s218, 32
      %s223 = sadd.s32 %s221, %s222
      %s224 = smul.addr %s223, 8
      %s225 = scalar_lea.vmem %s3, %s224
      %s226 = smul.u32 16, %s19
      %p228 = scmp.eq.s32.totalorder %s19, 0
      // Predicated region
      $region33: #{tpu_custom_call.1} parent=31 // pred_check
        %p229 = pneg %p228
      $region34: #{tpu_custom_call.1} parent=31 // pred_check_branch
        %231 = sbr.rel (%p229) target = $region36
      $region35: #{tpu_custom_call.1} parent=31 // pred_region
        %v232 = vld [vmem:[%s1] sm:$0x3]
        %v233 = vld [vmem:[%s1 + $0x2] sm:$0x3]
        %v234 = vld [vmem:[%s1 + $0x4] sm:$0x3]
        %v235 = vld [vmem:[%s1 + $0x6] sm:$0x3]
        %v236 = vld [vmem:[%s1 + $0x8] sm:$0x3]
        %v237 = vld [vmem:[%s1 + $0xa] sm:$0x3]
        %v238 = vld [vmem:[%s1 + $0xc] sm:$0x3]
        %v239 = vld [vmem:[%s1 + $0xe] sm:$0x3]
        %v240 = vld [vmem:[%s1 + $0x10] sm:$0x3]
        %v241 = vunpack.c.l.bf16 %v232
        %v242 = vunpack.c.l.bf16 %v233
        %v243 = vunpack.c.l.bf16 %v234
        %v244 = vunpack.c.l.bf16 %v235
        %v245 = vunpack.c.l.bf16 %v236
        %v246 = vunpack.c.l.bf16 %v237
        %v247 = vunpack.c.l.bf16 %v238
        %v248 = vunpack.c.l.bf16 %v239
        %v249 = vunpack.c.l.bf16 %v240
        %v250 = vld [vmem:[%s206] sm:$0xf]
        %252 = vset.pattern.permute.xlu0 0
        %253 = vperm.xlu0 %252, %v250
        %v254 = vpop.permute.xlu0 %253
        %v256 = vmul.f32 %v241, %v254
        %v257 = vmul.f32 %v242, %v254
        %v258 = vmul.f32 %v243, %v254
        %v259 = vmul.f32 %v244, %v254
        %v260 = vmul.f32 %v245, %v254
        %v261 = vmul.f32 %v246, %v254
        %v262 = vmul.f32 %v247, %v254
        %v263 = vmul.f32 %v248, %v254
        %v264 = vmul.f32 %v249, %v254
        %v265 = vmul.f32 %v256, %v256
        %v266 = vmul.f32 %v257, %v257
        %v267 = vmul.f32 %v258, %v258
        %v268 = vmul.f32 %v259, %v259
        %v269 = vmul.f32 %v260, %v260
        %v270 = vmul.f32 %v261, %v261
        %v271 = vmul.f32 %v262, %v262
        %v272 = vmul.f32 %v263, %v263
        %v273 = vmul.f32 %v264, %v264
        %vm274 = vcmask 60416
        %v275 = vsel %vm274, %v265, 0.0
        %v276 = vsel %vm274, %v266, 0.0
        %v277 = vadd.f32 %v275, %v276
        %v278 = vsel %vm274, %v267, 0.0
        %v279 = vadd.f32 %v277, %v278
        %v280 = vsel %vm274, %v268, 0.0
        %v281 = vadd.f32 %v279, %v280
        %v282 = vsel %vm274, %v269, 0.0
        %v283 = vadd.f32 %v281, %v282
        %v284 = vsel %vm274, %v270, 0.0
        %v285 = vadd.f32 %v283, %v284
        %v286 = vsel %vm274, %v271, 0.0
        %v287 = vadd.f32 %v285, %v286
        %v288 = vsel %vm274, %v272, 0.0
        %v289 = vadd.f32 %v287, %v288
        %v290 = vsel %vm274, %v273, 0.0
        %v291 = vadd.f32 %v289, %v290
        %v292 = vrot.slane %v291, 4
        %v293 = vadd.f32 %v291, %v292
        %v294 = vrot.slane %v293, 2
        %v295 = vadd.f32 %v293, %v294
        %v296 = vrot.slane %v295, 1
        %v297 = vadd.f32 %v295, %v296
        %v298 = vadd.f32 %v297, 1e-08
        %v299 = vrsqrt.pop %v298
        %v300 = vmul.f32 %v256, %v299
        %v301 = vmul.f32 %v257, %v299
        %v302 = vmul.f32 %v258, %v299
        %v303 = vmul.f32 %v259, %v299
        %v304 = vmul.f32 %v260, %v299
        %v305 = vmul.f32 %v261, %v299
        %v306 = vmul.f32 %v262, %v299
        %v307 = vmul.f32 %v263, %v299
        %v308 = vmul.f32 %v264, %v299
        %v309 = vpack.c.bf16 %v300, %v300
        %v310 = vpack.c.bf16 %v301, %v301
        %v311 = vpack.c.bf16 %v302, %v302
        %v312 = vpack.c.bf16 %v303, %v303
        %v313 = vpack.c.bf16 %v304, %v304
        %v314 = vpack.c.bf16 %v305, %v305
        %v315 = vpack.c.bf16 %v306, %v306
        %v316 = vpack.c.bf16 %v307, %v307
        %v317 = vpack.c.bf16 %v308, %v308
        %vm318 = vcmask 58368
        %319 = vst.msk [vmem:[#allocation2] sm:$0x3] %vm318, %v309
        %320 = vst.msk [vmem:[#allocation2 + $0x2] sm:$0x3] %vm318, %v310
        %321 = vst.msk [vmem:[#allocation2 + $0x4] sm:$0x3] %vm318, %v311
        %322 = vst.msk [vmem:[#allocation2 + $0x6] sm:$0x3] %vm318, %v312
        %323 = vst.msk [vmem:[#allocation2 + $0x8] sm:$0x3] %vm318, %v313
        %324 = vst.msk [vmem:[#allocation2 + $0xa] sm:$0x3] %vm318, %v314
        %325 = vst.msk [vmem:[#allocation2 + $0xc] sm:$0x3] %vm318, %v315
        %326 = vst.msk [vmem:[#allocation2 + $0xe] sm:$0x3] %vm318, %v316
        %327 = vst.msk [vmem:[#allocation2 + $0x10] sm:$0x3] %vm318, %v317
      $region36: #{tpu_custom_call.1} parent=31 // pred_fallthru
        _
      %v328 = vld [vmem:[%s215] sm:$0xf]
      %v329 = vld [vmem:[%s215 + $0x4] sm:$0xf]
      %v330 = vld [vmem:[%s215 + $0xc] sm:$0xf]
      %v331 = vld [vmem:[%s215 + $0x10] sm:$0xf]
      %v332 = vld [vmem:[%s215 + $0x18] sm:$0xf]
      %v333 = vld [vmem:[%s215 + $0x1c] sm:$0xf]
      %v334 = vld [vmem:[%s215 + $0x24] sm:$0xf]
      %v335 = vld [vmem:[%s215 + $0x28] sm:$0xf]
      %v336 = vld [vmem:[%s215 + $0x30] sm:$0xf]
      %v337 = vld [vmem:[%s215 + $0x34] sm:$0xf]
      %v338 = vld [vmem:[%s215 + $0x3c] sm:$0xf]
      %v339 = vld [vmem:[%s215 + $0x40] sm:$0xf]
      %v340 = vld [vmem:[%s215 + $0x48] sm:$0xf]
      %v341 = vld [vmem:[%s215 + $0x4c] sm:$0xf]
      %v342 = vld [vmem:[%s215 + $0x54] sm:$0xf]
      %v343 = vld [vmem:[%s215 + $0x58] sm:$0xf]
      %v344 = vld [vmem:[%s215 + $0x60] sm:$0xf]
      %v345 = vld [vmem:[%s215 + $0x64] sm:$0xf]
      %v346 = vld [vmem:[%s215 + $0x6c] sm:$0xf]
      %v347 = vld [vmem:[%s215 + $0x70] sm:$0xf]
      %v348 = vld [vmem:[%s215 + $0x78] sm:$0xf]
      %v349 = vld [vmem:[%s215 + $0x7c] sm:$0xf]
      %v350 = vld [vmem:[%s215 + $0x84] sm:$0xf]
      %v351 = vld [vmem:[%s215 + $0x88] sm:$0xf]
      %v352 = vld [vmem:[%s215 + $0x90] sm:$0xf]
      %v353 = vld [vmem:[%s215 + $0x94] sm:$0xf]
      %v354 = vld [vmem:[%s215 + $0x9c] sm:$0xf]
      %v355 = vld [vmem:[%s215 + $0xa0] sm:$0xf]
      %v356 = vld [vmem:[%s215 + $0xa8] sm:$0xf]
      %v357 = vld [vmem:[%s215 + $0xac] sm:$0xf]
      %v358 = vld [vmem:[%s215 + $0xb4] sm:$0xf]
      %v359 = vld [vmem:[%s215 + $0xb8] sm:$0xf]
      %v360 = vld [vmem:[#allocation2] sm:$0x3]
      %v361 = vld [vmem:[%s215 + $0x8] sm:$0x1]
      %v362 = vld [vmem:[%s215 + $0x14] sm:$0x1]
      %v363 = vld [vmem:[%s215 + $0x20] sm:$0x1]
      %v364 = vld [vmem:[%s215 + $0x2c] sm:$0x1]
      %v365 = vld [vmem:[%s215 + $0x38] sm:$0x1]
      %v366 = vld [vmem:[%s215 + $0x44] sm:$0x1]
      %v367 = vld [vmem:[%s215 + $0x50] sm:$0x1]
      %v368 = vld [vmem:[%s215 + $0x5c] sm:$0x1]
      %v369 = vld [vmem:[%s215 + $0x68] sm:$0x1]
      %v370 = vld [vmem:[%s215 + $0x74] sm:$0x1]
      %v371 = vld [vmem:[%s215 + $0x80] sm:$0x1]
      %v372 = vld [vmem:[%s215 + $0x8c] sm:$0x1]
      %v373 = vld [vmem:[%s215 + $0x98] sm:$0x1]
      %v374 = vld [vmem:[%s215 + $0xa4] sm:$0x1]
      %v375 = vld [vmem:[%s215 + $0xb0] sm:$0x1]
      %v376 = vld [vmem:[%s215 + $0xbc] sm:$0x1]
      %vm377 = vsmask.f32 3328
      %vm378 = vsmask.f32 7440
      %vm379 = vmor %vm377, %vm378
      %v381 = vshrl.u32 %v328, 16
      %v383 = vrot.slane %v381, 4
      %v384 = vshll.u32 %v328, 16
      %v386 = vrot.slane %v384, 5
      %v387 = vor.u32 %v383, %v386
      %v388 = vrot.slane %v387, 4
      %v390 = vshll.u32 %v329, 16
      %v392 = vrot.slane %v390, 5
      %v393 = vsel %vm379, %v388, %v392
      %v394 = vshrl.u32 %v329, 16
      %v396 = vrot.slane %v394, 4
      %v397 = vor.u32 %v396, %v392
      %v398 = vrot.slane %v397, 4
      %v400 = vshll.u32 %v361, 16
      %v402 = vrot.slane %v400, 5
      %v403 = vsel %vm379, %v398, %v402
      %v405 = vshrl.u32 %v330, 16
      %v407 = vrot.slane %v405, 4
      %v408 = vshll.u32 %v330, 16
      %v410 = vrot.slane %v408, 5
      %v411 = vor.u32 %v407, %v410
      %v412 = vrot.slane %v411, 4
      %v414 = vshll.u32 %v331, 16
      %v416 = vrot.slane %v414, 5
      %v417 = vsel %vm379, %v412, %v416
      %v418 = vshrl.u32 %v331, 16
      %v420 = vrot.slane %v418, 4
      %v421 = vor.u32 %v420, %v416
      %v422 = vrot.slane %v421, 4
      %v424 = vshll.u32 %v362, 16
      %v426 = vrot.slane %v424, 5
      %v427 = vsel %vm379, %v422, %v426
      %v429 = vshrl.u32 %v332, 16
      %v431 = vrot.slane %v429, 4
      %v432 = vshll.u32 %v332, 16
      %v434 = vrot.slane %v432, 5
      %v435 = vor.u32 %v431, %v434
      %v436 = vrot.slane %v435, 4
      %v438 = vshll.u32 %v333, 16
      %v440 = vrot.slane %v438, 5
      %v441 = vsel %vm379, %v436, %v440
      %v442 = vshrl.u32 %v333, 16
      %v444 = vrot.slane %v442, 4
      %v445 = vor.u32 %v444, %v440
      %v446 = vrot.slane %v445, 4
      %v448 = vshll.u32 %v363, 16
      %v450 = vrot.slane %v448, 5
      %v451 = vsel %vm379, %v446, %v450
      %v453 = vshrl.u32 %v334, 16
      %v455 = vrot.slane %v453, 4
      %v456 = vshll.u32 %v334, 16
      %v458 = vrot.slane %v456, 5
      %v459 = vor.u32 %v455, %v458
      %v460 = vrot.slane %v459, 4
      %v462 = vshll.u32 %v335, 16
      %v464 = vrot.slane %v462, 5
      %v465 = vsel %vm379, %v460, %v464
      %v466 = vshrl.u32 %v335, 16
      %v468 = vrot.slane %v466, 4
      %v469 = vor.u32 %v468, %v464
      %v470 = vrot.slane %v469, 4
      %v472 = vshll.u32 %v364, 16
      %v474 = vrot.slane %v472, 5
      %v475 = vsel %vm379, %v470, %v474
      %v477 = vshrl.u32 %v336, 16
      %v479 = vrot.slane %v477, 4
      %v480 = vshll.u32 %v336, 16
      %v482 = vrot.slane %v480, 5
      %v483 = vor.u32 %v479, %v482
      %v484 = vrot.slane %v483, 4
      %v486 = vshll.u32 %v337, 16
      %v488 = vrot.slane %v486, 5
      %v489 = vsel %vm379, %v484, %v488
      %v490 = vshrl.u32 %v337, 16
      %v492 = vrot.slane %v490, 4
      %v493 = vor.u32 %v492, %v488
      %v494 = vrot.slane %v493, 4
      %v496 = vshll.u32 %v365, 16
      %v498 = vrot.slane %v496, 5
      %v499 = vsel %vm379, %v494, %v498
      %v501 = vshrl.u32 %v338, 16
      %v503 = vrot.slane %v501, 4
      %v504 = vshll.u32 %v338, 16
      %v506 = vrot.slane %v504, 5
      %v507 = vor.u32 %v503, %v506
      %v508 = vrot.slane %v507, 4
      %v510 = vshll.u32 %v339, 16
      %v512 = vrot.slane %v510, 5
      %v513 = vsel %vm379, %v508, %v512
      %v514 = vshrl.u32 %v339, 16
      %v516 = vrot.slane %v514, 4
      %v517 = vor.u32 %v516, %v512
      %v518 = vrot.slane %v517, 4
      %v520 = vshll.u32 %v366, 16
      %v522 = vrot.slane %v520, 5
      %v523 = vsel %vm379, %v518, %v522
      %v525 = vshrl.u32 %v340, 16
      %v527 = vrot.slane %v525, 4
      %v528 = vshll.u32 %v340, 16
      %v530 = vrot.slane %v528, 5
      %v531 = vor.u32 %v527, %v530
      %v532 = vrot.slane %v531, 4
      %v534 = vshll.u32 %v341, 16
      %v536 = vrot.slane %v534, 5
      %v537 = vsel %vm379, %v532, %v536
      %v538 = vshrl.u32 %v341, 16
      %v540 = vrot.slane %v538, 4
      %v541 = vor.u32 %v540, %v536
      %v542 = vrot.slane %v541, 4
      %v544 = vshll.u32 %v367, 16
      %v546 = vrot.slane %v544, 5
      %v547 = vsel %vm379, %v542, %v546
      %v549 = vshrl.u32 %v342, 16
      %v551 = vrot.slane %v549, 4
      %v552 = vshll.u32 %v342, 16
      %v554 = vrot.slane %v552, 5
      %v555 = vor.u32 %v551, %v554
      %v556 = vrot.slane %v555, 4
      %v558 = vshll.u32 %v343, 16
      %v560 = vrot.slane %v558, 5
      %v561 = vsel %vm379, %v556, %v560
      %v562 = vshrl.u32 %v343, 16
      %v564 = vrot.slane %v562, 4
      %v565 = vor.u32 %v564, %v560
      %v566 = vrot.slane %v565, 4
      %v568 = vshll.u32 %v368, 16
      %v570 = vrot.slane %v568, 5
      %v571 = vsel %vm379, %v566, %v570
      %v573 = vshrl.u32 %v344, 16
      %v575 = vrot.slane %v573, 4
      %v576 = vshll.u32 %v344, 16
      %v578 = vrot.slane %v576, 5
      %v579 = vor.u32 %v575, %v578
      %v580 = vrot.slane %v579, 4
      %v582 = vshll.u32 %v345, 16
      %v584 = vrot.slane %v582, 5
      %v585 = vsel %vm379, %v580, %v584
      %v586 = vshrl.u32 %v345, 16
      %v588 = vrot.slane %v586, 4
      %v589 = vor.u32 %v588, %v584
      %v590 = vrot.slane %v589, 4
      %v592 = vshll.u32 %v369, 16
      %v594 = vrot.slane %v592, 5
      %v595 = vsel %vm379, %v590, %v594
      %v597 = vshrl.u32 %v346, 16
      %v599 = vrot.slane %v597, 4
      %v600 = vshll.u32 %v346, 16
      %v602 = vrot.slane %v600, 5
      %v603 = vor.u32 %v599, %v602
      %v604 = vrot.slane %v603, 4
      %v606 = vshll.u32 %v347, 16
      %v608 = vrot.slane %v606, 5
      %v609 = vsel %vm379, %v604, %v608
      %v610 = vshrl.u32 %v347, 16
      %v612 = vrot.slane %v610, 4
      %v613 = vor.u32 %v612, %v608
      %v614 = vrot.slane %v613, 4
      %v616 = vshll.u32 %v370, 16
      %v618 = vrot.slane %v616, 5
      %v619 = vsel %vm379, %v614, %v618
      %v621 = vshrl.u32 %v348, 16
      %v623 = vrot.slane %v621, 4
      %v624 = vshll.u32 %v348, 16
      %v626 = vrot.slane %v624, 5
      %v627 = vor.u32 %v623, %v626
      %v628 = vrot.slane %v627, 4
      %v630 = vshll.u32 %v349, 16
      %v632 = vrot.slane %v630, 5
      %v633 = vsel %vm379, %v628, %v632
      %v634 = vshrl.u32 %v349, 16
      %v636 = vrot.slane %v634, 4
      %v637 = vor.u32 %v636, %v632
      %v638 = vrot.slane %v637, 4
      %v640 = vshll.u32 %v371, 16
      %v642 = vrot.slane %v640, 5
      %v643 = vsel %vm379, %v638, %v642
      %v645 = vshrl.u32 %v350, 16
      %v647 = vrot.slane %v645, 4
      %v648 = vshll.u32 %v350, 16
      %v650 = vrot.slane %v648, 5
      %v651 = vor.u32 %v647, %v650
      %v652 = vrot.slane %v651, 4
      %v654 = vshll.u32 %v351, 16
      %v656 = vrot.slane %v654, 5
      %v657 = vsel %vm379, %v652, %v656
      %v658 = vshrl.u32 %v351, 16
      %v660 = vrot.slane %v658, 4
      %v661 = vor.u32 %v660, %v656
      %v662 = vrot.slane %v661, 4
      %v664 = vshll.u32 %v372, 16
      %v666 = vrot.slane %v664, 5
      %v667 = vsel %vm379, %v662, %v666
      %v669 = vshrl.u32 %v352, 16
      %v671 = vrot.slane %v669, 4
      %v672 = vshll.u32 %v352, 16
      %v674 = vrot.slane %v672, 5
      %v675 = vor.u32 %v671, %v674
      %v676 = vrot.slane %v675, 4
      %v678 = vshll.u32 %v353, 16
      %v680 = vrot.slane %v678, 5
      %v681 = vsel %vm379, %v676, %v680
      %v682 = vshrl.u32 %v353, 16
      %v684 = vrot.slane %v682, 4
      %v685 = vor.u32 %v684, %v680
      %v686 = vrot.slane %v685, 4
      %v688 = vshll.u32 %v373, 16
      %v690 = vrot.slane %v688, 5
      %v691 = vsel %vm379, %v686, %v690
      %v693 = vshrl.u32 %v354, 16
      %v695 = vrot.slane %v693, 4
      %v696 = vshll.u32 %v354, 16
      %v698 = vrot.slane %v696, 5
      %v699 = vor.u32 %v695, %v698
      %v700 = vrot.slane %v699, 4
      %v702 = vshll.u32 %v355, 16
      %v704 = vrot.slane %v702, 5
      %v705 = vsel %vm379, %v700, %v704
      %v706 = vshrl.u32 %v355, 16
      %v708 = vrot.slane %v706, 4
      %v709 = vor.u32 %v708, %v704
      %v710 = vrot.slane %v709, 4
      %v712 = vshll.u32 %v374, 16
      %v714 = vrot.slane %v712, 5
      %v715 = vsel %vm379, %v710, %v714
      %v717 = vshrl.u32 %v356, 16
      %v719 = vrot.slane %v717, 4
      %v720 = vshll.u32 %v356, 16
      %v722 = vrot.slane %v720, 5
      %v723 = vor.u32 %v719, %v722
      %v724 = vrot.slane %v723, 4
      %v726 = vshll.u32 %v357, 16
      %v728 = vrot.slane %v726, 5
      %v729 = vsel %vm379, %v724, %v728
      %v730 = vshrl.u32 %v357, 16
      %v732 = vrot.slane %v730, 4
      %v733 = vor.u32 %v732, %v728
      %v734 = vrot.slane %v733, 4
      %v736 = vshll.u32 %v375, 16
      %v738 = vrot.slane %v736, 5
      %v739 = vsel %vm379, %v734, %v738
      %v741 = vshrl.u32 %v358, 16
      %v743 = vrot.slane %v741, 4
      %v744 = vshll.u32 %v358, 16
      %v746 = vrot.slane %v744, 5
      %v747 = vor.u32 %v743, %v746
      %v748 = vrot.slane %v747, 4
      %v750 = vshll.u32 %v359, 16
      %v752 = vrot.slane %v750, 5
      %v753 = vsel %vm379, %v748, %v752
      %v754 = vshrl.u32 %v359, 16
      %v756 = vrot.slane %v754, 4
      %v757 = vor.u32 %v756, %v752
      %v758 = vrot.slane %v757, 4
      %v760 = vshll.u32 %v376, 16
      %v762 = vrot.slane %v760, 5
      %v763 = vsel %vm379, %v758, %v762
      %s764 = scalar_lea.vmem [#allocation2], 2
      %v765 = vld [vmem:[%s764] sm:$0x3]
      %v766 = vunpack.c.l.b16 %v393
      %v767 = vunpack.c.l.b16 %v403
      %v768 = vunpack.c.l.b16 %v417
      %v769 = vunpack.c.l.b16 %v427
      %v770 = vunpack.c.l.b16 %v441
      %v771 = vunpack.c.l.b16 %v451
      %v772 = vunpack.c.l.b16 %v465
      %v773 = vunpack.c.l.b16 %v475
      %v774 = vunpack.c.l.b16 %v489
      %v775 = vunpack.c.l.b16 %v499
      %v776 = vunpack.c.l.b16 %v513
      %v777 = vunpack.c.l.b16 %v523
      %v778 = vunpack.c.l.b16 %v537
      %v779 = vunpack.c.l.b16 %v547
      %v780 = vunpack.c.l.b16 %v561
      %v781 = vunpack.c.l.b16 %v571
      %v782 = vunpack.c.l.b16 %v585
      %v783 = vunpack.c.l.b16 %v595
      %v784 = vunpack.c.l.b16 %v609
      %v785 = vunpack.c.l.b16 %v619
      %v786 = vunpack.c.l.b16 %v633
      %v787 = vunpack.c.l.b16 %v643
      %v788 = vunpack.c.l.b16 %v657
      %v789 = vunpack.c.l.b16 %v667
      %v790 = vunpack.c.l.b16 %v681
      %v791 = vunpack.c.l.b16 %v691
      %v792 = vunpack.c.l.b16 %v705
      %v793 = vunpack.c.l.b16 %v715
      %v794 = vunpack.c.l.b16 %v729
      %v795 = vunpack.c.l.b16 %v739
      %v796 = vunpack.c.l.b16 %v753
      %v797 = vunpack.c.l.b16 %v763
      %v798 = vpack.c.b16 %v767, %v766
      %v799 = vpack.c.b16 %v769, %v768
      %v800 = vpack.c.b16 %v771, %v770
      %v801 = vpack.c.b16 %v773, %v772
      %v802 = vpack.c.b16 %v775, %v774
      %v803 = vpack.c.b16 %v777, %v776
      %v804 = vpack.c.b16 %v779, %v778
      %v805 = vpack.c.b16 %v781, %v780
      %v806 = vpack.c.b16 %v783, %v782
      %v807 = vpack.c.b16 %v785, %v784
      %v808 = vpack.c.b16 %v787, %v786
      %v809 = vpack.c.b16 %v789, %v788
      %v810 = vpack.c.b16 %v791, %v790
      %v811 = vpack.c.b16 %v793, %v792
      %v812 = vpack.c.b16 %v795, %v794
      %v813 = vpack.c.b16 %v797, %v796
      %vm814 = vcmask 31744
      %v816 = vsel %vm814, %v798, 0
      %v819 = vsel %vm814, %v799, 0
      %v822 = vsel %vm814, %v800, 0
      %v825 = vsel %vm814, %v801, 0
      %v828 = vsel %vm814, %v802, 0
      %v831 = vsel %vm814, %v803, 0
      %v834 = vsel %vm814, %v804, 0
      %v837 = vsel %vm814, %v805, 0
      %v840 = vsel %vm814, %v806, 0
      %v843 = vsel %vm814, %v807, 0
      %v846 = vsel %vm814, %v808, 0
      %v849 = vsel %vm814, %v809, 0
      %v852 = vsel %vm814, %v810, 0
      %v855 = vsel %vm814, %v811, 0
      %v858 = vsel %vm814, %v812, 0
      %v861 = vsel %vm814, %v813, 0
      %vm863 = vcmask 1041408
      %v865 = vsel %vm863, %v765, 0
      %867 = vmatprep.subr.bf16.mxu0 0
      %868 = vmatpush1.bf16.msra.mxu0 %v865
      %869 = vmatprep.subr.bf16.mxu0 0
      %870 = vmatpush1.bf16.msra.mxu0 0
      %871 = vmatprep.subr.bf16.mxu0 0
      %872 = vmatpush1.bf16.msra.mxu0 0
      %873 = vmatprep.subr.bf16.mxu0 0
      %874 = vmatpush1.bf16.msra.mxu0 0
      %875 = vmatprep.subr.bf16.mxu0 0
      %876 = vmatpush1.bf16.msra.mxu0 0
      %877 = vmatprep.subr.bf16.mxu0 0
      %878 = vmatpush1.bf16.msra.mxu0 0
      %879 = vmatprep.subr.bf16.mxu0 0
      %880 = vmatpush1.bf16.msra.mxu0 0
      %881 = vmatprep.subr.bf16.mxu0 0
      %882 = vmatpush1.bf16.msra.mxu0 0
      %883 = vmatprep.subr.bf16.mxu0 0
      %884 = vmatpush1.bf16.msra.mxu0 0
      %885 = vmatprep.subr.bf16.mxu0 0
      %886 = vmatpush1.bf16.msra.mxu0 0
      %887 = vmatprep.subr.bf16.mxu0 0
      %888 = vmatpush1.bf16.msra.mxu0 0
      %889 = vmatprep.subr.bf16.mxu0 0
      %890 = vmatpush1.bf16.msra.mxu0 0
      %891 = vmatprep.subr.bf16.mxu0 0
      %892 = vmatpush1.bf16.msra.mxu0 0
      %893 = vmatprep.subr.bf16.mxu0 0
      %894 = vmatpush1.bf16.msra.mxu0 0
      %895 = vmatprep.subr.bf16.mxu0 0
      %896 = vmatpush1.bf16.msra.mxu0 0
      %897 = vmatprep.subr.bf16.mxu0 0
      %898 = vmatpush1.bf16.msra.mxu0 0
      %899 = vmatprep.mubr.bf16.mxu0 0
      %900 = vmatmul.mubr.bf16.gmra.mrb[0].mxu0 %v816
      %v901 = vpop.f32.mrb[0].mxu0
      %v902 = vadd.f32 0.0, %v901
      %v903 = vpop.f32.mrb[0].mxu0
      %v904 = vpop.f32.mrb[0].mxu0
      %v905 = vadd.f32 0.0, %v904
      %v906 = vpop.f32.mrb[0].mxu0
      %907 = vmatprep.mubr.bf16.mxu0 0
      %908 = vmatmul.mubr.bf16.gmra.mrb[0].mxu0 %v819
      %v909 = vpop.f32.mrb[0].mxu0
      %v910 = vadd.f32 0.0, %v909
      %v911 = vpop.f32.mrb[0].mxu0
      %v912 = vpop.f32.mrb[0].mxu0
      %v913 = vadd.f32 0.0, %v912
      %v914 = vpop.f32.mrb[0].mxu0
      %915 = vmatprep.mubr.bf16.mxu0 0
      %916 = vmatmul.mubr.bf16.gmra.mrb[0].mxu0 %v822
      %v917 = vpop.f32.mrb[0].mxu0
      %v918 = vadd.f32 0.0, %v917
      %v919 = vpop.f32.mrb[0].mxu0
      %v920 = vpop.f32.mrb[0].mxu0
      %v921 = vadd.f32 0.0, %v920
      %v922 = vpop.f32.mrb[0].mxu0
      %923 = vmatprep.mubr.bf16.mxu0 0
      %924 = vmatmul.mubr.bf16.gmra.mrb[0].mxu0 %v825
      %v925 = vpop.f32.mrb[0].mxu0
      %v926 = vadd.f32 0.0, %v925
      %v927 = vpop.f32.mrb[0].mxu0
      %v928 = vpop.f32.mrb[0].mxu0
      %v929 = vadd.f32 0.0, %v928
      %v930 = vpop.f32.mrb[0].mxu0
      %931 = vmatprep.mubr.bf16.mxu0 0
      %932 = vmatmul.mubr.bf16.gmra.mrb[0].mxu0 %v828
      %v933 = vpop.f32.mrb[0].mxu0
      %v934 = vadd.f32 0.0, %v933
      %v935 = vpop.f32.mrb[0].mxu0
      %v936 = vpop.f32.mrb[0].mxu0
      %v937 = vadd.f32 0.0, %v936
      %v938 = vpop.f32.mrb[0].mxu0
      %939 = vmatprep.mubr.bf16.mxu0 0
      %940 = vmatmul.mubr.bf16.gmra.mrb[0].mxu0 %v831
      %v941 = vpop.f32.mrb[0].mxu0
      %v942 = vadd.f32 0.0, %v941
      %v943 = vpop.f32.mrb[0].mxu0
      %v944 = vpop.f32.mrb[0].mxu0
      %v945 = vadd.f32 0.0, %v944
      %v946 = vpop.f32.mrb[0].mxu0
      %947 = vmatprep.mubr.bf16.mxu0 0
      %948 = vmatmul.mubr.bf16.gmra.mrb[0].mxu0 %v834
      %v949 = vpop.f32.mrb[0].mxu0
      %v950 = vadd.f32 0.0, %v949
      %v951 = vpop.f32.mrb[0].mxu0
      %v952 = vpop.f32.mrb[0].mxu0
      %v953 = vadd.f32 0.0, %v952
      %v954 = vpop.f32.mrb[0].mxu0
      %955 = vmatprep.mubr.bf16.mxu0 0
      %956 = vmatmul.mubr.bf16.gmra.mrb[0].mxu0 %v837
      %v957 = vpop.f32.mrb[0].mxu0
      %v958 = vadd.f32 0.0, %v957
      %v959 = vpop.f32.mrb[0].mxu0
      %v960 = vpop.f32.mrb[0].mxu0
      %v961 = vadd.f32 0.0, %v960
      %v962 = vpop.f32.mrb[0].mxu0
      %963 = vmatprep.mubr.bf16.mxu0 0
      %964 = vmatmul.mubr.bf16.gmra.mrb[0].mxu0 %v840
      %v965 = vpop.f32.mrb[0].mxu0
      %v966 = vadd.f32 0.0, %v965
      %v967 = vpop.f32.mrb[0].mxu0
      %v968 = vpop.f32.mrb[0].mxu0
      %v969 = vadd.f32 0.0, %v968
      %v970 = vpop.f32.mrb[0].mxu0
      %971 = vmatprep.mubr.bf16.mxu0 0
      %972 = vmatmul.mubr.bf16.gmra.mrb[0].mxu0 %v843
      %v973 = vpop.f32.mrb[0].mxu0
      %v974 = vadd.f32 0.0, %v973
      %v975 = vpop.f32.mrb[0].mxu0
      %v976 = vpop.f32.mrb[0].mxu0
      %v977 = vadd.f32 0.0, %v976
      %v978 = vpop.f32.mrb[0].mxu0
      %979 = vmatprep.mubr.bf16.mxu0 0
      %980 = vmatmul.mubr.bf16.gmra.mrb[0].mxu0 %v846
      %v981 = vpop.f32.mrb[0].mxu0
      %v982 = vadd.f32 0.0, %v981
      %v983 = vpop.f32.mrb[0].mxu0
      %v984 = vpop.f32.mrb[0].mxu0
      %v985 = vadd.f32 0.0, %v984
      %v986 = vpop.f32.mrb[0].mxu0
      %987 = vmatprep.mubr.bf16.mxu0 0
      %988 = vmatmul.mubr.bf16.gmra.mrb[0].mxu0 %v849
      %v989 = vpop.f32.mrb[0].mxu0
      %v990 = vadd.f32 0.0, %v989
      %v991 = vpop.f32.mrb[0].mxu0
      %v992 = vpop.f32.mrb[0].mxu0
      %v993 = vadd.f32 0.0, %v992
      %v994 = vpop.f32.mrb[0].mxu0
      %995 = vmatprep.mubr.bf16.mxu0 0
      %996 = vmatmul.mubr.bf16.gmra.mrb[0].mxu0 %v852
      %v997 = vpop.f32.mrb[0].mxu0
      %v998 = vadd.f32 0.0, %v997
      %v999 = vpop.f32.mrb[0].mxu0
      %v1000 = vpop.f32.mrb[0].mxu0
      %v1001 = vadd.f32 0.0, %v1000
      %v1002 = vpop.f32.mrb[0].mxu0
      %1003 = vmatprep.mubr.bf16.mxu0 0
      %1004 = vmatmul.mubr.bf16.gmra.mrb[0].mxu0 %v855
      %v1005 = vpop.f32.mrb[0].mxu0
      %v1006 = vadd.f32 0.0, %v1005
      %v1007 = vpop.f32.mrb[0].mxu0
      %v1008 = vpop.f32.mrb[0].mxu0
      %v1009 = vadd.f32 0.0, %v1008
      %v1010 = vpop.f32.mrb[0].mxu0
      %1011 = vmatprep.mubr.bf16.mxu0 0
      %1012 = vmatmul.mubr.bf16.gmra.mrb[0].mxu0 %v858
      %v1013 = vpop.f32.mrb[0].mxu0
      %v1014 = vadd.f32 0.0, %v1013
      %v1015 = vpop.f32.mrb[0].mxu0
      %v1016 = vpop.f32.mrb[0].mxu0
      %v1017 = vadd.f32 0.0, %v1016
      %v1018 = vpop.f32.mrb[0].mxu0
      %1019 = vmatprep.mubr.bf16.mxu0 0
      %1020 = vmatmul.mubr.bf16.gmra.mrb[0].mxu0 %v861
      %v1021 = vpop.f32.mrb[0].mxu0
      %v1022 = vadd.f32 0.0, %v1021
      %v1023 = vpop.f32.mrb[0].mxu0
      %v1024 = vpop.f32.mrb[0].mxu0
      %v1025 = vadd.f32 0.0, %v1024
      %v1026 = vpop.f32.mrb[0].mxu0
      %1027 = vdwg.mxu0
      %v1060 = vunpack.c.l.b16 %v328
      %v1061 = vunpack.c.l.b16 %v329
      %v1062 = vunpack.c.l.b16 %v330
      %v1063 = vunpack.c.l.b16 %v331
      %v1064 = vunpack.c.l.b16 %v332
      %v1065 = vunpack.c.l.b16 %v333
      %v1066 = vunpack.c.l.b16 %v334
      %v1067 = vunpack.c.l.b16 %v335
      %v1068 = vunpack.c.l.b16 %v336
      %v1069 = vunpack.c.l.b16 %v337
      %v1070 = vunpack.c.l.b16 %v338
      %v1071 = vunpack.c.l.b16 %v339
      %v1072 = vunpack.c.l.b16 %v340
      %v1073 = vunpack.c.l.b16 %v341
      %v1074 = vunpack.c.l.b16 %v342
      %v1075 = vunpack.c.l.b16 %v343
      %v1076 = vunpack.c.l.b16 %v344
      %v1077 = vunpack.c.l.b16 %v345
      %v1078 = vunpack.c.l.b16 %v346
      %v1079 = vunpack.c.l.b16 %v347
      %v1080 = vunpack.c.l.b16 %v348
      %v1081 = vunpack.c.l.b16 %v349
      %v1082 = vunpack.c.l.b16 %v350
      %v1083 = vunpack.c.l.b16 %v351
      %v1084 = vunpack.c.l.b16 %v352
      %v1085 = vunpack.c.l.b16 %v353
      %v1086 = vunpack.c.l.b16 %v354
      %v1087 = vunpack.c.l.b16 %v355
      %v1088 = vunpack.c.l.b16 %v356
      %v1089 = vunpack.c.l.b16 %v357
      %v1090 = vunpack.c.l.b16 %v358
      %v1091 = vunpack.c.l.b16 %v359
      %v1092 = vpack.c.b16 %v1061, %v1060
      %v1093 = vpack.c.b16 %v1063, %v1062
      %v1094 = vpack.c.b16 %v1065, %v1064
      %v1095 = vpack.c.b16 %v1067, %v1066
      %v1096 = vpack.c.b16 %v1069, %v1068
      %v1097 = vpack.c.b16 %v1071, %v1070
      %v1098 = vpack.c.b16 %v1073, %v1072
      %v1099 = vpack.c.b16 %v1075, %v1074
      %v1100 = vpack.c.b16 %v1077, %v1076
      %v1101 = vpack.c.b16 %v1079, %v1078
      %v1102 = vpack.c.b16 %v1081, %v1080
      %v1103 = vpack.c.b16 %v1083, %v1082
      %v1104 = vpack.c.b16 %v1085, %v1084
      %v1105 = vpack.c.b16 %v1087, %v1086
      %v1106 = vpack.c.b16 %v1089, %v1088
      %v1107 = vpack.c.b16 %v1091, %v1090
      %v1109 = vsel %vm814, %v1092, 0
      %v1112 = vsel %vm814, %v1093, 0
      %v1115 = vsel %vm814, %v1094, 0
      %v1118 = vsel %vm814, %v1095, 0
      %v1121 = vsel %vm814, %v1096, 0
      %v1124 = vsel %vm814, %v1097, 0
      %v1127 = vsel %vm814, %v1098, 0
      %v1130 = vsel %vm814, %v1099, 0
      %v1133 = vsel %vm814, %v1100, 0
      %v1136 = vsel %vm814, %v1101, 0
      %v1139 = vsel %vm814, %v1102, 0
      %v1142 = vsel %vm814, %v1103, 0
      %v1145 = vsel %vm814, %v1104, 0
      %v1148 = vsel %vm814, %v1105, 0
      %v1151 = vsel %vm814, %v1106, 0
      %v1154 = vsel %vm814, %v1107, 0
      %v1157 = vsel %vm863, %v360, 0
      %1159 = vmatprep.subr.bf16.mxu0 0
      %1160 = vmatpush1.bf16.msra.mxu0 %v1157
      %1161 = vmatprep.subr.bf16.mxu0 0
      %1162 = vmatpush1.bf16.msra.mxu0 0
      %1163 = vmatprep.subr.bf16.mxu0 0
      %1164 = vmatpush1.bf16.msra.mxu0 0
      %1165 = vmatprep.subr.bf16.mxu0 0
      %1166 = vmatpush1.bf16.msra.mxu0 0
      %1167 = vmatprep.subr.bf16.mxu0 0
      %1168 = vmatpush1.bf16.msra.mxu0 0
      %1169 = vmatprep.subr.bf16.mxu0 0
      %1170 = vmatpush1.bf16.msra.mxu0 0
      %1171 = vmatprep.subr.bf16.mxu0 0
      %1172 = vmatpush1.bf16.msra.mxu0 0
      %1173 = vmatprep.subr.bf16.mxu0 0
      %1174 = vmatpush1.bf16.msra.mxu0 0
      %1175 = vmatprep.subr.bf16.mxu0 0
      %1176 = vmatpush1.bf16.msra.mxu0 0
      %1177 = vmatprep.subr.bf16.mxu0 0
      %1178 = vmatpush1.bf16.msra.mxu0 0
      %1179 = vmatprep.subr.bf16.mxu0 0
      %1180 = vmatpush1.bf16.msra.mxu0 0
      %1181 = vmatprep.subr.bf16.mxu0 0
      %1182 = vmatpush1.bf16.msra.mxu0 0
      %1183 = vmatprep.subr.bf16.mxu0 0
      %1184 = vmatpush1.bf16.msra.mxu0 0
      %1185 = vmatprep.subr.bf16.mxu0 0
      %1186 = vmatpush1.bf16.msra.mxu0 0
      %1187 = vmatprep.subr.bf16.mxu0 0
      %1188 = vmatpush1.bf16.msra.mxu0 0
      %1189 = vmatprep.subr.bf16.mxu0 0
      %1190 = vmatpush1.bf16.msra.mxu0 0
      %1191 = vmatprep.mubr.bf16.mxu0 0
      %1192 = vmatmul.mubr.bf16.gmra.mrb[0].mxu0 %v1109
      %v1193 = vpop.f32.mrb[0].mxu0
      %v1194 = vadd.f32 %v902, %v1193
      %v1195 = vpop.f32.mrb[0].mxu0
      %v1196 = vpop.f32.mrb[0].mxu0
      %v1197 = vadd.f32 %v905, %v1196
      %v1198 = vpop.f32.mrb[0].mxu0
      %1199 = vmatprep.mubr.bf16.mxu0 0
      %1200 = vmatmul.mubr.bf16.gmra.mrb[0].mxu0 %v1112
      %v1201 = vpop.f32.mrb[0].mxu0
      %v1202 = vadd.f32 %v910, %v1201
      %v1203 = vpop.f32.mrb[0].mxu0
      %v1204 = vpop.f32.mrb[0].mxu0
      %v1205 = vadd.f32 %v913, %v1204
      %v1206 = vpop.f32.mrb[0].mxu0
      %1207 = vmatprep.mubr.bf16.mxu0 0
      %1208 = vmatmul.mubr.bf16.gmra.mrb[0].mxu0 %v1115
      %v1209 = vpop.f32.mrb[0].mxu0
      %v1210 = vadd.f32 %v918, %v1209
      %v1211 = vpop.f32.mrb[0].mxu0
      %v1212 = vpop.f32.mrb[0].mxu0
      %v1213 = vadd.f32 %v921, %v1212
      %v1214 = vpop.f32.mrb[0].mxu0
      %1215 = vmatprep.mubr.bf16.mxu0 0
      %1216 = vmatmul.mubr.bf16.gmra.mrb[0].mxu0 %v1118
      %v1217 = vpop.f32.mrb[0].mxu0
      %v1218 = vadd.f32 %v926, %v1217
      %v1219 = vpop.f32.mrb[0].mxu0
      %v1220 = vpop.f32.mrb[0].mxu0
      %v1221 = vadd.f32 %v929, %v1220
      %v1222 = vpop.f32.mrb[0].mxu0
      %1223 = vmatprep.mubr.bf16.mxu0 0
      %1224 = vmatmul.mubr.bf16.gmra.mrb[0].mxu0 %v1121
      %v1225 = vpop.f32.mrb[0].mxu0
      %v1226 = vadd.f32 %v934, %v1225
      %v1227 = vpop.f32.mrb[0].mxu0
      %v1228 = vpop.f32.mrb[0].mxu0
      %v1229 = vadd.f32 %v937, %v1228
      %v1230 = vpop.f32.mrb[0].mxu0
      %1231 = vmatprep.mubr.bf16.mxu0 0
      %1232 = vmatmul.mubr.bf16.gmra.mrb[0].mxu0 %v1124
      %v1233 = vpop.f32.mrb[0].mxu0
      %v1234 = vadd.f32 %v942, %v1233
      %v1235 = vpop.f32.mrb[0].mxu0
      %v1236 = vpop.f32.mrb[0].mxu0
      %v1237 = vadd.f32 %v945, %v1236
      %v1238 = vpop.f32.mrb[0].mxu0
      %1239 = vmatprep.mubr.bf16.mxu0 0
      %1240 = vmatmul.mubr.bf16.gmra.mrb[0].mxu0 %v1127
      %v1241 = vpop.f32.mrb[0].mxu0
      %v1242 = vadd.f32 %v950, %v1241
      %v1243 = vpop.f32.mrb[0].mxu0
      %v1244 = vpop.f32.mrb[0].mxu0
      %v1245 = vadd.f32 %v953, %v1244
      %v1246 = vpop.f32.mrb[0].mxu0
      %1247 = vmatprep.mubr.bf16.mxu0 0
      %1248 = vmatmul.mubr.bf16.gmra.mrb[0].mxu0 %v1130
      %v1249 = vpop.f32.mrb[0].mxu0
      %v1250 = vadd.f32 %v958, %v1249
      %v1251 = vpop.f32.mrb[0].mxu0
      %v1252 = vpop.f32.mrb[0].mxu0
      %v1253 = vadd.f32 %v961, %v1252
      %v1254 = vpop.f32.mrb[0].mxu0
      %1255 = vmatprep.mubr.bf16.mxu0 0
      %1256 = vmatmul.mubr.bf16.gmra.mrb[0].mxu0 %v1133
      %v1257 = vpop.f32.mrb[0].mxu0
      %v1258 = vadd.f32 %v966, %v1257
      %v1259 = vpop.f32.mrb[0].mxu0
      %v1260 = vpop.f32.mrb[0].mxu0
      %v1261 = vadd.f32 %v969, %v1260
      %v1262 = vpop.f32.mrb[0].mxu0
      %1263 = vmatprep.mubr.bf16.mxu0 0
      %1264 = vmatmul.mubr.bf16.gmra.mrb[0].mxu0 %v1136
      %v1265 = vpop.f32.mrb[0].mxu0
      %v1266 = vadd.f32 %v974, %v1265
      %v1267 = vpop.f32.mrb[0].mxu0
      %v1268 = vpop.f32.mrb[0].mxu0
      %v1269 = vadd.f32 %v977, %v1268
      %v1270 = vpop.f32.mrb[0].mxu0
      %1271 = vmatprep.mubr.bf16.mxu0 0
      %1272 = vmatmul.mubr.bf16.gmra.mrb[0].mxu0 %v1139
      %v1273 = vpop.f32.mrb[0].mxu0
      %v1274 = vadd.f32 %v982, %v1273
      %v1275 = vpop.f32.mrb[0].mxu0
      %v1276 = vpop.f32.mrb[0].mxu0
      %v1277 = vadd.f32 %v985, %v1276
      %v1278 = vpop.f32.mrb[0].mxu0
      %1279 = vmatprep.mubr.bf16.mxu0 0
      %1280 = vmatmul.mubr.bf16.gmra.mrb[0].mxu0 %v1142
      %v1281 = vpop.f32.mrb[0].mxu0
      %v1282 = vadd.f32 %v990, %v1281
      %v1283 = vpop.f32.mrb[0].mxu0
      %v1284 = vpop.f32.mrb[0].mxu0
      %v1285 = vadd.f32 %v993, %v1284
      %v1286 = vpop.f32.mrb[0].mxu0
      %1287 = vmatprep.mubr.bf16.mxu0 0
      %1288 = vmatmul.mubr.bf16.gmra.mrb[0].mxu0 %v1145
      %v1289 = vpop.f32.mrb[0].mxu0
      %v1290 = vadd.f32 %v998, %v1289
      %v1291 = vpop.f32.mrb[0].mxu0
      %v1292 = vpop.f32.mrb[0].mxu0
      %v1293 = vadd.f32 %v1001, %v1292
      %v1294 = vpop.f32.mrb[0].mxu0
      %1295 = vmatprep.mubr.bf16.mxu0 0
      %1296 = vmatmul.mubr.bf16.gmra.mrb[0].mxu0 %v1148
      %v1297 = vpop.f32.mrb[0].mxu0
      %v1298 = vadd.f32 %v1006, %v1297
      %v1299 = vpop.f32.mrb[0].mxu0
      %v1300 = vpop.f32.mrb[0].mxu0
      %v1301 = vadd.f32 %v1009, %v1300
      %v1302 = vpop.f32.mrb[0].mxu0
      %1303 = vmatprep.mubr.bf16.mxu0 0
      %1304 = vmatmul.mubr.bf16.gmra.mrb[0].mxu0 %v1151
      %v1305 = vpop.f32.mrb[0].mxu0
      %v1306 = vadd.f32 %v1014, %v1305
      %v1307 = vpop.f32.mrb[0].mxu0
      %v1308 = vpop.f32.mrb[0].mxu0
      %v1309 = vadd.f32 %v1017, %v1308
      %v1310 = vpop.f32.mrb[0].mxu0
      %1311 = vmatprep.mubr.bf16.mxu0 0
      %1312 = vmatmul.mubr.bf16.gmra.mrb[0].mxu0 %v1154
      %v1313 = vpop.f32.mrb[0].mxu0
      %v1314 = vadd.f32 %v1022, %v1313
      %v1315 = vpop.f32.mrb[0].mxu0
      %v1316 = vpop.f32.mrb[0].mxu0
      %v1317 = vadd.f32 %v1025, %v1316
      %v1318 = vpop.f32.mrb[0].mxu0
      %1319 = vdwg.mxu0
      %v1320 = vld [vmem:[%s215] sm:$0xe]
      %v1321 = vld [vmem:[%s215 + $0xc] sm:$0xe]
      %v1322 = vld [vmem:[%s215 + $0x18] sm:$0xe]
      %v1323 = vld [vmem:[%s215 + $0x24] sm:$0xe]
      %v1324 = vld [vmem:[%s215 + $0x30] sm:$0xe]
      %v1325 = vld [vmem:[%s215 + $0x3c] sm:$0xe]
      %v1326 = vld [vmem:[%s215 + $0x48] sm:$0xe]
      %v1327 = vld [vmem:[%s215 + $0x54] sm:$0xe]
      %v1328 = vld [vmem:[%s215 + $0x60] sm:$0xe]
      %v1329 = vld [vmem:[%s215 + $0x6c] sm:$0xe]
      %v1330 = vld [vmem:[%s215 + $0x78] sm:$0xe]
      %v1331 = vld [vmem:[%s215 + $0x84] sm:$0xe]
      %v1332 = vld [vmem:[%s215 + $0x90] sm:$0xe]
      %v1333 = vld [vmem:[%s215 + $0x9c] sm:$0xe]
      %v1334 = vld [vmem:[%s215 + $0xa8] sm:$0xe]
      %v1335 = vld [vmem:[%s215 + $0xb4] sm:$0xe]
      %vm1368 = vcmask 1042432
      %vm1369 = vcmask 1046532
      %vm1370 = vmor %vm1368, %vm1369
      %v1371 = vrot.slane %v1320, 5
      %v1372 = vrot.slane %v1371, 4
      %v1373 = vrot.slane %v329, 5
      %v1374 = vsel %vm1370, %v1372, %v1373
      %v1375 = vrot.slane %v1373, 4
      %v1376 = vrot.slane %v361, 5
      %v1377 = vsel %vm1370, %v1375, %v1376
      %v1378 = vrot.slane %v1321, 5
      %v1379 = vrot.slane %v1378, 4
      %v1380 = vrot.slane %v331, 5
      %v1381 = vsel %vm1370, %v1379, %v1380
      %v1382 = vrot.slane %v1380, 4
      %v1383 = vrot.slane %v362, 5
      %v1384 = vsel %vm1370, %v1382, %v1383
      %v1385 = vrot.slane %v1322, 5
      %v1386 = vrot.slane %v1385, 4
      %v1387 = vrot.slane %v333, 5
      %v1388 = vsel %vm1370, %v1386, %v1387
      %v1389 = vrot.slane %v1387, 4
      %v1390 = vrot.slane %v363, 5
      %v1391 = vsel %vm1370, %v1389, %v1390
      %v1392 = vrot.slane %v1323, 5
      %v1393 = vrot.slane %v1392, 4
      %v1394 = vrot.slane %v335, 5
      %v1395 = vsel %vm1370, %v1393, %v1394
      %v1396 = vrot.slane %v1394, 4
      %v1397 = vrot.slane %v364, 5
      %v1398 = vsel %vm1370, %v1396, %v1397
      %v1399 = vrot.slane %v1324, 5
      %v1400 = vrot.slane %v1399, 4
      %v1401 = vrot.slane %v337, 5
      %v1402 = vsel %vm1370, %v1400, %v1401
      %v1403 = vrot.slane %v1401, 4
      %v1404 = vrot.slane %v365, 5
      %v1405 = vsel %vm1370, %v1403, %v1404
      %v1406 = vrot.slane %v1325, 5
      %v1407 = vrot.slane %v1406, 4
      %v1408 = vrot.slane %v339, 5
      %v1409 = vsel %vm1370, %v1407, %v1408
      %v1410 = vrot.slane %v1408, 4
      %v1411 = vrot.slane %v366, 5
      %v1412 = vsel %vm1370, %v1410, %v1411
      %v1413 = vrot.slane %v1326, 5
      %v1414 = vrot.slane %v1413, 4
      %v1415 = vrot.slane %v341, 5
      %v1416 = vsel %vm1370, %v1414, %v1415
      %v1417 = vrot.slane %v1415, 4
      %v1418 = vrot.slane %v367, 5
      %v1419 = vsel %vm1370, %v1417, %v1418
      %v1420 = vrot.slane %v1327, 5
      %v1421 = vrot.slane %v1420, 4
      %v1422 = vrot.slane %v343, 5
      %v1423 = vsel %vm1370, %v1421, %v1422
      %v1424 = vrot.slane %v1422, 4
      %v1425 = vrot.slane %v368, 5
      %v1426 = vsel %vm1370, %v1424, %v1425
      %v1427 = vrot.slane %v1328, 5
      %v1428 = vrot.slane %v1427, 4
      %v1429 = vrot.slane %v345, 5
      %v1430 = vsel %vm1370, %v1428, %v1429
      %v1431 = vrot.slane %v1429, 4
      %v1432 = vrot.slane %v369, 5
      %v1433 = vsel %vm1370, %v1431, %v1432
      %v1434 = vrot.slane %v1329, 5
      %v1435 = vrot.slane %v1434, 4
      %v1436 = vrot.slane %v347, 5
      %v1437 = vsel %vm1370, %v1435, %v1436
      %v1438 = vrot.slane %v1436, 4
      %v1439 = vrot.slane %v370, 5
      %v1440 = vsel %vm1370, %v1438, %v1439
      %v1441 = vrot.slane %v1330, 5
      %v1442 = vrot.slane %v1441, 4
      %v1443 = vrot.slane %v349, 5
      %v1444 = vsel %vm1370, %v1442, %v1443
      %v1445 = vrot.slane %v1443, 4
      %v1446 = vrot.slane %v371, 5
      %v1447 = vsel %vm1370, %v1445, %v1446
      %v1448 = vrot.slane %v1331, 5
      %v1449 = vrot.slane %v1448, 4
      %v1450 = vrot.slane %v351, 5
      %v1451 = vsel %vm1370, %v1449, %v1450
      %v1452 = vrot.slane %v1450, 4
      %v1453 = vrot.slane %v372, 5
      %v1454 = vsel %vm1370, %v1452, %v1453
      %v1455 = vrot.slane %v1332, 5
      %v1456 = vrot.slane %v1455, 4
      %v1457 = vrot.slane %v353, 5
      %v1458 = vsel %vm1370, %v1456, %v1457
      %v1459 = vrot.slane %v1457, 4
      %v1460 = vrot.slane %v373, 5
      %v1461 = vsel %vm1370, %v1459, %v1460
      %v1462 = vrot.slane %v1333, 5
      %v1463 = vrot.slane %v1462, 4
      %v1464 = vrot.slane %v355, 5
      %v1465 = vsel %vm1370, %v1463, %v1464
      %v1466 = vrot.slane %v1464, 4
      %v1467 = vrot.slane %v374, 5
      %v1468 = vsel %vm1370, %v1466, %v1467
      %v1469 = vrot.slane %v1334, 5
      %v1470 = vrot.slane %v1469, 4
      %v1471 = vrot.slane %v357, 5
      %v1472 = vsel %vm1370, %v1470, %v1471
      %v1473 = vrot.slane %v1471, 4
      %v1474 = vrot.slane %v375, 5
      %v1475 = vsel %vm1370, %v1473, %v1474
      %v1476 = vrot.slane %v1335, 5
      %v1477 = vrot.slane %v1476, 4
      %v1478 = vrot.slane %v359, 5
      %v1479 = vsel %vm1370, %v1477, %v1478
      %v1480 = vrot.slane %v1478, 4
      %v1481 = vrot.slane %v376, 5
      %v1482 = vsel %vm1370, %v1480, %v1481
      %s1483 = scalar_lea.vmem [#allocation2], 4
      %v1484 = vld [vmem:[%s1483] sm:$0x3]
      %v1485 = vunpack.c.l.b16 %v1374
      %v1486 = vunpack.c.l.b16 %v1377
      %v1487 = vunpack.c.l.b16 %v1381
      %v1488 = vunpack.c.l.b16 %v1384
      %v1489 = vunpack.c.l.b16 %v1388
      %v1490 = vunpack.c.l.b16 %v1391
      %v1491 = vunpack.c.l.b16 %v1395
      %v1492 = vunpack.c.l.b16 %v1398
      %v1493 = vunpack.c.l.b16 %v1402
      %v1494 = vunpack.c.l.b16 %v1405
      %v1495 = vunpack.c.l.b16 %v1409
      %v1496 = vunpack.c.l.b16 %v1412
      %v1497 = vunpack.c.l.b16 %v1416
      %v1498 = vunpack.c.l.b16 %v1419
      %v1499 = vunpack.c.l.b16 %v1423
      %v1500 = vunpack.c.l.b16 %v1426
      %v1501 = vunpack.c.l.b16 %v1430
      %v1502 = vunpack.c.l.b16 %v1433
      %v1503 = vunpack.c.l.b16 %v1437
      %v1504 = vunpack.c.l.b16 %v1440
      %v1505 = vunpack.c.l.b16 %v1444
      %v1506 = vunpack.c.l.b16 %v1447
      %v1507 = vunpack.c.l.b16 %v1451
      %v1508 = vunpack.c.l.b16 %v1454
      %v1509 = vunpack.c.l.b16 %v1458
      %v1510 = vunpack.c.l.b16 %v1461
      %v1511 = vunpack.c.l.b16 %v1465
      %v1512 = vunpack.c.l.b16 %v1468
      %v1513 = vunpack.c.l.b16 %v1472
      %v1514 = vunpack.c.l.b16 %v1475
      %v1515 = vunpack.c.l.b16 %v1479
      %v1516 = vunpack.c.l.b16 %v1482
      %v1517 = vpack.c.b16 %v1486, %v1485
      %v1518 = vpack.c.b16 %v1488, %v1487
      %v1519 = vpack.c.b16 %v1490, %v1489
      %v1520 = vpack.c.b16 %v1492, %v1491
      %v1521 = vpack.c.b16 %v1494, %v1493
      %v1522 = vpack.c.b16 %v1496, %v1495
      %v1523 = vpack.c.b16 %v1498, %v1497
      %v1524 = vpack.c.b16 %v1500, %v1499
      %v1525 = vpack.c.b16 %v1502, %v1501
      %v1526 = vpack.c.b16 %v1504, %v1503
      %v1527 = vpack.c.b16 %v1506, %v1505
      %v1528 = vpack.c.b16 %v1508, %v1507
      %v1529 = vpack.c.b16 %v1510, %v1509
      %v1530 = vpack.c.b16 %v1512, %v1511
      %v1531 = vpack.c.b16 %v1514, %v1513
      %v1532 = vpack.c.b16 %v1516, %v1515
      %v1534 = vsel %vm814, %v1517, 0
      %v1537 = vsel %vm814, %v1518, 0
      %v1540 = vsel %vm814, %v1519, 0
      %v1543 = vsel %vm814, %v1520, 0
      %v1546 = vsel %vm814, %v1521, 0
      %v1549 = vsel %vm814, %v1522, 0
      %v1552 = vsel %vm814, %v1523, 0
      %v1555 = vsel %vm814, %v1524, 0
      %v1558 = vsel %vm814, %v1525, 0
      %v1561 = vsel %vm814, %v1526, 0
      %v1564 = vsel %vm814, %v1527, 0
      %v1567 = vsel %vm814, %v1528, 0
      %v1570 = vsel %vm814, %v1529, 0
      %v1573 = vsel %vm814, %v1530, 0
      %v1576 = vsel %vm814, %v1531, 0
      %v1579 = vsel %vm814, %v1532, 0
      %v1582 = vsel %vm863, %v1484, 0
      %1584 = vmatprep.subr.bf16.mxu0 0
      %1585 = vmatpush1.bf16.msra.mxu0 %v1582
      %1586 = vmatprep.subr.bf16.mxu0 0
      %1587 = vmatpush1.bf16.msra.mxu0 0
      %1588 = vmatprep.subr.bf16.mxu0 0
      %1589 = vmatpush1.bf16.msra.mxu0 0
      %1590 = vmatprep.subr.bf16.mxu0 0
      %1591 = vmatpush1.bf16.msra.mxu0 0
      %1592 = vmatprep.subr.bf16.mxu0 0
      %1593 = vmatpush1.bf16.msra.mxu0 0
      %1594 = vmatprep.subr.bf16.mxu0 0
      %1595 = vmatpush1.bf16.msra.mxu0 0
      %1596 = vmatprep.subr.bf16.mxu0 0
      %1597 = vmatpush1.bf16.msra.mxu0 0
      %1598 = vmatprep.subr.bf16.mxu0 0
      %1599 = vmatpush1.bf16.msra.mxu0 0
      %1600 = vmatprep.subr.bf16.mxu0 0
      %1601 = vmatpush1.bf16.msra.mxu0 0
      %1602 = vmatprep.subr.bf16.mxu0 0
      %1603 = vmatpush1.bf16.msra.mxu0 0
      %1604 = vmatprep.subr.bf16.mxu0 0
      %1605 = vmatpush1.bf16.msra.mxu0 0
      %1606 = vmatprep.subr.bf16.mxu0 0
      %1607 = vmatpush1.bf16.msra.mxu0 0
      %1608 = vmatprep.subr.bf16.mxu0 0
      %1609 = vmatpush1.bf16.msra.mxu0 0
      %1610 = vmatprep.subr.bf16.mxu0 0
      %1611 = vmatpush1.bf16.msra.mxu0 0
      %1612 = vmatprep.subr.bf16.mxu0 0
      %1613 = vmatpush1.bf16.msra.mxu0 0
      %1614 = vmatprep.subr.bf16.mxu0 0
      %1615 = vmatpush1.bf16.msra.mxu0 0
      %1616 = vmatprep.mubr.bf16.mxu0 0
      %1617 = vmatmul.mubr.bf16.gmra.mrb[0].mxu0 %v1534
      %v1618 = vpop.f32.mrb[0].mxu0
      %v1619 = vadd.f32 0.0, %v1618
      %v1620 = vpop.f32.mrb[0].mxu0
      %v1621 = vpop.f32.mrb[0].mxu0
      %v1622 = vadd.f32 0.0, %v1621
      %v1623 = vpop.f32.mrb[0].mxu0
      %1624 = vmatprep.mubr.bf16.mxu0 0
      %1625 = vmatmul.mubr.bf16.gmra.mrb[0].mxu0 %v1537
      %v1626 = vpop.f32.mrb[0].mxu0
      %v1627 = vadd.f32 0.0, %v1626
      %v1628 = vpop.f32.mrb[0].mxu0
      %v1629 = vpop.f32.mrb[0].mxu0
      %v1630 = vadd.f32 0.0, %v1629
      %v1631 = vpop.f32.mrb[0].mxu0
      %1632 = vmatprep.mubr.bf16.mxu0 0
      %1633 = vmatmul.mubr.bf16.gmra.mrb[0].mxu0 %v1540
      %v1634 = vpop.f32.mrb[0].mxu0
      %v1635 = vadd.f32 0.0, %v1634
      %v1636 = vpop.f32.mrb[0].mxu0
      %v1637 = vpop.f32.mrb[0].mxu0
      %v1638 = vadd.f32 0.0, %v1637
      %v1639 = vpop.f32.mrb[0].mxu0
      %1640 = vmatprep.mubr.bf16.mxu0 0
      %1641 = vmatmul.mubr.bf16.gmra.mrb[0].mxu0 %v1543
      %v1642 = vpop.f32.mrb[0].mxu0
      %v1643 = vadd.f32 0.0, %v1642
      %v1644 = vpop.f32.mrb[0].mxu0
      %v1645 = vpop.f32.mrb[0].mxu0
      %v1646 = vadd.f32 0.0, %v1645
      %v1647 = vpop.f32.mrb[0].mxu0
      %1648 = vmatprep.mubr.bf16.mxu0 0
      %1649 = vmatmul.mubr.bf16.gmra.mrb[0].mxu0 %v1546
      %v1650 = vpop.f32.mrb[0].mxu0
      %v1651 = vadd.f32 0.0, %v1650
      %v1652 = vpop.f32.mrb[0].mxu0
      %v1653 = vpop.f32.mrb[0].mxu0
      %v1654 = vadd.f32 0.0, %v1653
      %v1655 = vpop.f32.mrb[0].mxu0
      %1656 = vmatprep.mubr.bf16.mxu0 0
      %1657 = vmatmul.mubr.bf16.gmra.mrb[0].mxu0 %v1549
      %v1658 = vpop.f32.mrb[0].mxu0
      %v1659 = vadd.f32 0.0, %v1658
      %v1660 = vpop.f32.mrb[0].mxu0
      %v1661 = vpop.f32.mrb[0].mxu0
      %v1662 = vadd.f32 0.0, %v1661
      %v1663 = vpop.f32.mrb[0].mxu0
      %1664 = vmatprep.mubr.bf16.mxu0 0
      %1665 = vmatmul.mubr.bf16.gmra.mrb[0].mxu0 %v1552
      %v1666 = vpop.f32.mrb[0].mxu0
      %v1667 = vadd.f32 0.0, %v1666
      %v1668 = vpop.f32.mrb[0].mxu0
      %v1669 = vpop.f32.mrb[0].mxu0
      %v1670 = vadd.f32 0.0, %v1669
      %v1671 = vpop.f32.mrb[0].mxu0
      %1672 = vmatprep.mubr.bf16.mxu0 0
      %1673 = vmatmul.mubr.bf16.gmra.mrb[0].mxu0 %v1555
      %v1674 = vpop.f32.mrb[0].mxu0
      %v1675 = vadd.f32 0.0, %v1674
      %v1676 = vpop.f32.mrb[0].mxu0
      %v1677 = vpop.f32.mrb[0].mxu0
      %v1678 = vadd.f32 0.0, %v1677
      %v1679 = vpop.f32.mrb[0].mxu0
      %1680 = vmatprep.mubr.bf16.mxu0 0
      %1681 = vmatmul.mubr.bf16.gmra.mrb[0].mxu0 %v1558
      %v1682 = vpop.f32.mrb[0].mxu0
      %v1683 = vadd.f32 0.0, %v1682
      %v1684 = vpop.f32.mrb[0].mxu0
      %v1685 = vpop.f32.mrb[0].mxu0
      %v1686 = vadd.f32 0.0, %v1685
      %v1687 = vpop.f32.mrb[0].mxu0
      %1688 = vmatprep.mubr.bf16.mxu0 0
      %1689 = vmatmul.mubr.bf16.gmra.mrb[0].mxu0 %v1561
      %v1690 = vpop.f32.mrb[0].mxu0
      %v1691 = vadd.f32 0.0, %v1690
      %v1692 = vpop.f32.mrb[0].mxu0
      %v1693 = vpop.f32.mrb[0].mxu0
      %v1694 = vadd.f32 0.0, %v1693
      %v1695 = vpop.f32.mrb[0].mxu0
      %1696 = vmatprep.mubr.bf16.mxu0 0
      %1697 = vmatmul.mubr.bf16.gmra.mrb[0].mxu0 %v1564
      %v1698 = vpop.f32.mrb[0].mxu0
      %v1699 = vadd.f32 0.0, %v1698
      %v1700 = vpop.f32.mrb[0].mxu0
      %v1701 = vpop.f32.mrb[0].mxu0
      %v1702 = vadd.f32 0.0, %v1701
      %v1703 = vpop.f32.mrb[0].mxu0
      %1704 = vmatprep.mubr.bf16.mxu0 0
      %1705 = vmatmul.mubr.bf16.gmra.mrb[0].mxu0 %v1567
      %v1706 = vpop.f32.mrb[0].mxu0
      %v1707 = vadd.f32 0.0, %v1706
      %v1708 = vpop.f32.mrb[0].mxu0
      %v1709 = vpop.f32.mrb[0].mxu0
      %v1710 = vadd.f32 0.0, %v1709
      %v1711 = vpop.f32.mrb[0].mxu0
      %1712 = vmatprep.mubr.bf16.mxu0 0
      %1713 = vmatmul.mubr.bf16.gmra.mrb[0].mxu0 %v1570
      %v1714 = vpop.f32.mrb[0].mxu0
      %v1715 = vadd.f32 0.0, %v1714
      %v1716 = vpop.f32.mrb[0].mxu0
      %v1717 = vpop.f32.mrb[0].mxu0
      %v1718 = vadd.f32 0.0, %v1717
      %v1719 = vpop.f32.mrb[0].mxu0
      %1720 = vmatprep.mubr.bf16.mxu0 0
      %1721 = vmatmul.mubr.bf16.gmra.mrb[0].mxu0 %v1573
      %v1722 = vpop.f32.mrb[0].mxu0
      %v1723 = vadd.f32 0.0, %v1722
      %v1724 = vpop.f32.mrb[0].mxu0
      %v1725 = vpop.f32.mrb[0].mxu0
      %v1726 = vadd.f32 0.0, %v1725
      %v1727 = vpop.f32.mrb[0].mxu0
      %1728 = vmatprep.mubr.bf16.mxu0 0
      %1729 = vmatmul.mubr.bf16.gmra.mrb[0].mxu0 %v1576
      %v1730 = vpop.f32.mrb[0].mxu0
      %v1731 = vadd.f32 0.0, %v1730
      %v1732 = vpop.f32.mrb[0].mxu0
      %v1733 = vpop.f32.mrb[0].mxu0
      %v1734 = vadd.f32 0.0, %v1733
      %v1735 = vpop.f32.mrb[0].mxu0
      %1736 = vmatprep.mubr.bf16.mxu0 0
      %1737 = vmatmul.mubr.bf16.gmra.mrb[0].mxu0 %v1579
      %v1738 = vpop.f32.mrb[0].mxu0
      %v1739 = vadd.f32 0.0, %v1738
      %v1740 = vpop.f32.mrb[0].mxu0
      %v1741 = vpop.f32.mrb[0].mxu0
      %v1742 = vadd.f32 0.0, %v1741
      %v1743 = vpop.f32.mrb[0].mxu0
      %1744 = vdwg.mxu0
      %v1745 = vadd.f32 %v1194, %v1619
      %v1746 = vadd.f32 %v1197, %v1622
      %v1747 = vadd.f32 %v1202, %v1627
      %v1748 = vadd.f32 %v1205, %v1630
      %v1749 = vadd.f32 %v1210, %v1635
      %v1750 = vadd.f32 %v1213, %v1638
      %v1751 = vadd.f32 %v1218, %v1643
      %v1752 = vadd.f32 %v1221, %v1646
      %v1753 = vadd.f32 %v1226, %v1651
      %v1754 = vadd.f32 %v1229, %v1654
      %v1755 = vadd.f32 %v1234, %v1659
      %v1756 = vadd.f32 %v1237, %v1662
      %v1757 = vadd.f32 %v1242, %v1667
      %v1758 = vadd.f32 %v1245, %v1670
      %v1759 = vadd.f32 %v1250, %v1675
      %v1760 = vadd.f32 %v1253, %v1678
      %v1761 = vadd.f32 %v1258, %v1683
      %v1762 = vadd.f32 %v1261, %v1686
      %v1763 = vadd.f32 %v1266, %v1691
      %v1764 = vadd.f32 %v1269, %v1694
      %v1765 = vadd.f32 %v1274, %v1699
      %v1766 = vadd.f32 %v1277, %v1702
      %v1767 = vadd.f32 %v1282, %v1707
      %v1768 = vadd.f32 %v1285, %v1710
      %v1769 = vadd.f32 %v1290, %v1715
      %v1770 = vadd.f32 %v1293, %v1718
      %v1771 = vadd.f32 %v1298, %v1723
      %v1772 = vadd.f32 %v1301, %v1726
      %v1773 = vadd.f32 %v1306, %v1731
      %v1774 = vadd.f32 %v1309, %v1734
      %v1775 = vadd.f32 %v1314, %v1739
      %v1776 = vadd.f32 %v1317, %v1742
      %s1777 = scalar_lea.vmem %s215, 12
      %v1778 = vld [vmem:[%s1777] sm:$0xf]
      %v1779 = vld [vmem:[%s1777 + $0x4] sm:$0xf]
      %v1780 = vld [vmem:[%s1777 + $0xc] sm:$0xf]
      %v1781 = vld [vmem:[%s1777 + $0x10] sm:$0xf]
      %v1782 = vld [vmem:[%s1777 + $0x18] sm:$0xf]
      %v1783 = vld [vmem:[%s1777 + $0x1c] sm:$0xf]
      %v1784 = vld [vmem:[%s1777 + $0x24] sm:$0xf]
      %v1785 = vld [vmem:[%s1777 + $0x28] sm:$0xf]
      %v1786 = vld [vmem:[%s1777 + $0x30] sm:$0xf]
      %v1787 = vld [vmem:[%s1777 + $0x34] sm:$0xf]
      %v1788 = vld [vmem:[%s1777 + $0x3c] sm:$0xf]
      %v1789 = vld [vmem:[%s1777 + $0x40] sm:$0xf]
      %v1790 = vld [vmem:[%s1777 + $0x48] sm:$0xf]
      %v1791 = vld [vmem:[%s1777 + $0x4c] sm:$0xf]
      %v1792 = vld [vmem:[%s1777 + $0x54] sm:$0xf]
      %v1793 = vld [vmem:[%s1777 + $0x58] sm:$0xf]
      %v1794 = vld [vmem:[%s1777 + $0x60] sm:$0xf]
      %v1795 = vld [vmem:[%s1777 + $0x64] sm:$0xf]
      %v1796 = vld [vmem:[%s1777 + $0x6c] sm:$0xf]
      %v1797 = vld [vmem:[%s1777 + $0x70] sm:$0xf]
      %v1798 = vld [vmem:[%s1777 + $0x78] sm:$0xf]
      %v1799 = vld [vmem:[%s1777 + $0x7c] sm:$0xf]
      %v1800 = vld [vmem:[%s1777 + $0x84] sm:$0xf]
      %v1801 = vld [vmem:[%s1777 + $0x88] sm:$0xf]
      %v1802 = vld [vmem:[%s1777 + $0x90] sm:$0xf]
      %v1803 = vld [vmem:[%s1777 + $0x94] sm:$0xf]
      %v1804 = vld [vmem:[%s1777 + $0x9c] sm:$0xf]
      %v1805 = vld [vmem:[%s1777 + $0xa0] sm:$0xf]
      %v1806 = vld [vmem:[%s1777 + $0xa8] sm:$0xf]
      %v1807 = vld [vmem:[%s1777 + $0xac] sm:$0xf]
      %v1808 = vld [vmem:[%s1777 + $0xb4] sm:$0xf]
      %v1809 = vld [vmem:[%s1777 + $0xb8] sm:$0xf]
      %s1810 = scalar_lea.vmem [#allocation2], 6
      %v1811 = vld [vmem:[%s1810] sm:$0x3]
      %v1844 = vunpack.c.l.b16 %v1778
      %v1845 = vunpack.c.l.b16 %v1779
      %v1846 = vunpack.c.l.b16 %v1780
      %v1847 = vunpack.c.l.b16 %v1781
      %v1848 = vunpack.c.l.b16 %v1782
      %v1849 = vunpack.c.l.b16 %v1783
      %v1850 = vunpack.c.l.b16 %v1784
      %v1851 = vunpack.c.l.b16 %v1785
      %v1852 = vunpack.c.l.b16 %v1786
      %v1853 = vunpack.c.l.b16 %v1787
      %v1854 = vunpack.c.l.b16 %v1788
      %v1855 = vunpack.c.l.b16 %v1789
      %v1856 = vunpack.c.l.b16 %v1790
      %v1857 = vunpack.c.l.b16 %v1791
      %v1858 = vunpack.c.l.b16 %v1792
      %v1859 = vunpack.c.l.b16 %v1793
      %v1860 = vunpack.c.l.b16 %v1794
      %v1861 = vunpack.c.l.b16 %v1795
      %v1862 = vunpack.c.l.b16 %v1796
      %v1863 = vunpack.c.l.b16 %v1797
      %v1864 = vunpack.c.l.b16 %v1798
      %v1865 = vunpack.c.l.b16 %v1799
      %v1866 = vunpack.c.l.b16 %v1800
      %v1867 = vunpack.c.l.b16 %v1801
      %v1868 = vunpack.c.l.b16 %v1802
      %v1869 = vunpack.c.l.b16 %v1803
      %v1870 = vunpack.c.l.b16 %v1804
      %v1871 = vunpack.c.l.b16 %v1805
      %v1872 = vunpack.c.l.b16 %v1806
      %v1873 = vunpack.c.l.b16 %v1807
      %v1874 = vunpack.c.l.b16 %v1808
      %v1875 = vunpack.c.l.b16 %v1809
      %v1876 = vpack.c.b16 %v1845, %v1844
      %v1877 = vpack.c.b16 %v1847, %v1846
      %v1878 = vpack.c.b16 %v1849, %v1848
      %v1879 = vpack.c.b16 %v1851, %v1850
      %v1880 = vpack.c.b16 %v1853, %v1852
      %v1881 = vpack.c.b16 %v1855, %v1854
      %v1882 = vpack.c.b16 %v1857, %v1856
      %v1883 = vpack.c.b16 %v1859, %v1858
      %v1884 = vpack.c.b16 %v1861, %v1860
      %v1885 = vpack.c.b16 %v1863, %v1862
      %v1886 = vpack.c.b16 %v1865, %v1864
      %v1887 = vpack.c.b16 %v1867, %v1866
      %v1888 = vpack.c.b16 %v1869, %v1868
      %v1889 = vpack.c.b16 %v1871, %v1870
      %v1890 = vpack.c.b16 %v1873, %v1872
      %v1891 = vpack.c.b16 %v1875, %v1874
      %v1893 = vsel %vm814, %v1876, 0
      %v1896 = vsel %vm814, %v1877, 0
      %v1899 = vsel %vm814, %v1878, 0
      %v1902 = vsel %vm814, %v1879, 0
      %v1905 = vsel %vm814, %v1880, 0
      %v1908 = vsel %vm814, %v1881, 0
      %v1911 = vsel %vm814, %v1882, 0
      %v1914 = vsel %vm814, %v1883, 0
      %v1917 = vsel %vm814, %v1884, 0
      %v1920 = vsel %vm814, %v1885, 0
      %v1923 = vsel %vm814, %v1886, 0
      %v1926 = vsel %vm814, %v1887, 0
      %v1929 = vsel %vm814, %v1888, 0
      %v1932 = vsel %vm814, %v1889, 0
      %v1935 = vsel %vm814, %v1890, 0
      %v1938 = vsel %vm814, %v1891, 0
      %v1941 = vsel %vm863, %v1811, 0
      %1943 = vmatprep.subr.bf16.mxu0 0
      %1944 = vmatpush1.bf16.msra.mxu0 %v1941
      %1945 = vmatprep.subr.bf16.mxu0 0
      %1946 = vmatpush1.bf16.msra.mxu0 0
      %1947 = vmatprep.subr.bf16.mxu0 0
      %1948 = vmatpush1.bf16.msra.mxu0 0
      %1949 = vmatprep.subr.bf16.mxu0 0
      %1950 = vmatpush1.bf16.msra.mxu0 0
      %1951 = vmatprep.subr.bf16.mxu0 0
      %1952 = vmatpush1.bf16.msra.mxu0 0
      %1953 = vmatprep.subr.bf16.mxu0 0
      %1954 = vmatpush1.bf16.msra.mxu0 0
      %1955 = vmatprep.subr.bf16.mxu0 0
      %1956 = vmatpush1.bf16.msra.mxu0 0
      %1957 = vmatprep.subr.bf16.mxu0 0
      %1958 = vmatpush1.bf16.msra.mxu0 0
      %1959 = vmatprep.subr.bf16.mxu0 0
      %1960 = vmatpush1.bf16.msra.mxu0 0
      %1961 = vmatprep.subr.bf16.mxu0 0
      %1962 = vmatpush1.bf16.msra.mxu0 0
      %1963 = vmatprep.subr.bf16.mxu0 0
      %1964 = vmatpush1.bf16.msra.mxu0 0
      %1965 = vmatprep.subr.bf16.mxu0 0
      %1966 = vmatpush1.bf16.msra.mxu0 0
      %1967 = vmatprep.subr.bf16.mxu0 0
      %1968 = vmatpush1.bf16.msra.mxu0 0
      %1969 = vmatprep.subr.bf16.mxu0 0
      %1970 = vmatpush1.bf16.msra.mxu0 0
      %1971 = vmatprep.subr.bf16.mxu0 0
      %1972 = vmatpush1.bf16.msra.mxu0 0
      %1973 = vmatprep.subr.bf16.mxu0 0
      %1974 = vmatpush1.bf16.msra.mxu0 0
      %1975 = vmatprep.mubr.bf16.mxu0 0
      %1976 = vmatmul.mubr.bf16.gmra.mrb[0].mxu0 %v1893
      %v1977 = vpop.f32.mrb[0].mxu0
      %v1978 = vadd.f32 0.0, %v1977
      %v1979 = vpop.f32.mrb[0].mxu0
      %v1980 = vpop.f32.mrb[0].mxu0
      %v1981 = vadd.f32 0.0, %v1980
      %v1982 = vpop.f32.mrb[0].mxu0
      %1983 = vmatprep.mubr.bf16.mxu0 0
      %1984 = vmatmul.mubr.bf16.gmra.mrb[0].mxu0 %v1896
      %v1985 = vpop.f32.mrb[0].mxu0
      %v1986 = vadd.f32 0.0, %v1985
      %v1987 = vpop.f32.mrb[0].mxu0
      %v1988 = vpop.f32.mrb[0].mxu0
      %v1989 = vadd.f32 0.0, %v1988
      %v1990 = vpop.f32.mrb[0].mxu0
      %1991 = vmatprep.mubr.bf16.mxu0 0
      %1992 = vmatmul.mubr.bf16.gmra.mrb[0].mxu0 %v1899
      %v1993 = vpop.f32.mrb[0].mxu0
      %v1994 = vadd.f32 0.0, %v1993
      %v1995 = vpop.f32.mrb[0].mxu0
      %v1996 = vpop.f32.mrb[0].mxu0
      %v1997 = vadd.f32 0.0, %v1996
      %v1998 = vpop.f32.mrb[0].mxu0
      %1999 = vmatprep.mubr.bf16.mxu0 0
      %2000 = vmatmul.mubr.bf16.gmra.mrb[0].mxu0 %v1902
      %v2001 = vpop.f32.mrb[0].mxu0
      %v2002 = vadd.f32 0.0, %v2001
      %v2003 = vpop.f32.mrb[0].mxu0
      %v2004 = vpop.f32.mrb[0].mxu0
      %v2005 = vadd.f32 0.0, %v2004
      %v2006 = vpop.f32.mrb[0].mxu0
      %2007 = vmatprep.mubr.bf16.mxu0 0
      %2008 = vmatmul.mubr.bf16.gmra.mrb[0].mxu0 %v1905
      %v2009 = vpop.f32.mrb[0].mxu0
      %v2010 = vadd.f32 0.0, %v2009
      %v2011 = vpop.f32.mrb[0].mxu0
      %v2012 = vpop.f32.mrb[0].mxu0
      %v2013 = vadd.f32 0.0, %v2012
      %v2014 = vpop.f32.mrb[0].mxu0
      %2015 = vmatprep.mubr.bf16.mxu0 0
      %2016 = vmatmul.mubr.bf16.gmra.mrb[0].mxu0 %v1908
      %v2017 = vpop.f32.mrb[0].mxu0
      %v2018 = vadd.f32 0.0, %v2017
      %v2019 = vpop.f32.mrb[0].mxu0
      %v2020 = vpop.f32.mrb[0].mxu0
      %v2021 = vadd.f32 0.0, %v2020
      %v2022 = vpop.f32.mrb[0].mxu0
      %2023 = vmatprep.mubr.bf16.mxu0 0
      %2024 = vmatmul.mubr.bf16.gmra.mrb[0].mxu0 %v1911
      %v2025 = vpop.f32.mrb[0].mxu0
      %v2026 = vadd.f32 0.0, %v2025
      %v2027 = vpop.f32.mrb[0].mxu0
      %v2028 = vpop.f32.mrb[0].mxu0
      %v2029 = vadd.f32 0.0, %v2028
      %v2030 = vpop.f32.mrb[0].mxu0
      %2031 = vmatprep.mubr.bf16.mxu0 0
      %2032 = vmatmul.mubr.bf16.gmra.mrb[0].mxu0 %v1914
      %v2033 = vpop.f32.mrb[0].mxu0
      %v2034 = vadd.f32 0.0, %v2033
      %v2035 = vpop.f32.mrb[0].mxu0
      %v2036 = vpop.f32.mrb[0].mxu0
      %v2037 = vadd.f32 0.0, %v2036
      %v2038 = vpop.f32.mrb[0].mxu0
      %2039 = vmatprep.mubr.bf16.mxu0 0
      %2040 = vmatmul.mubr.bf16.gmra.mrb[0].mxu0 %v1917
      %v2041 = vpop.f32.mrb[0].mxu0
      %v2042 = vadd.f32 0.0, %v2041
      %v2043 = vpop.f32.mrb[0].mxu0
      %v2044 = vpop.f32.mrb[0].mxu0
      %v2045 = vadd.f32 0.0, %v2044
      %v2046 = vpop.f32.mrb[0].mxu0
      %2047 = vmatprep.mubr.bf16.mxu0 0
      %2048 = vmatmul.mubr.bf16.gmra.mrb[0].mxu0 %v1920
      %v2049 = vpop.f32.mrb[0].mxu0
      %v2050 = vadd.f32 0.0, %v2049
      %v2051 = vpop.f32.mrb[0].mxu0
      %v2052 = vpop.f32.mrb[0].mxu0
      %v2053 = vadd.f32 0.0, %v2052
      %v2054 = vpop.f32.mrb[0].mxu0
      %2055 = vmatprep.mubr.bf16.mxu0 0
      %2056 = vmatmul.mubr.bf16.gmra.mrb[0].mxu0 %v1923
      %v2057 = vpop.f32.mrb[0].mxu0
      %v2058 = vadd.f32 0.0, %v2057
      %v2059 = vpop.f32.mrb[0].mxu0
      %v2060 = vpop.f32.mrb[0].mxu0
      %v2061 = vadd.f32 0.0, %v2060
      %v2062 = vpop.f32.mrb[0].mxu0
      %2063 = vmatprep.mubr.bf16.mxu0 0
      %2064 = vmatmul.mubr.bf16.gmra.mrb[0].mxu0 %v1926
      %v2065 = vpop.f32.mrb[0].mxu0
      %v2066 = vadd.f32 0.0, %v2065
      %v2067 = vpop.f32.mrb[0].mxu0
      %v2068 = vpop.f32.mrb[0].mxu0
      %v2069 = vadd.f32 0.0, %v2068
      %v2070 = vpop.f32.mrb[0].mxu0
      %2071 = vmatprep.mubr.bf16.mxu0 0
      %2072 = vmatmul.mubr.bf16.gmra.mrb[0].mxu0 %v1929
      %v2073 = vpop.f32.mrb[0].mxu0
      %v2074 = vadd.f32 0.0, %v2073
      %v2075 = vpop.f32.mrb[0].mxu0
      %v2076 = vpop.f32.mrb[0].mxu0
      %v2077 = vadd.f32 0.0, %v2076
      %v2078 = vpop.f32.mrb[0].mxu0
      %2079 = vmatprep.mubr.bf16.mxu0 0
      %2080 = vmatmul.mubr.bf16.gmra.mrb[0].mxu0 %v1932
      %v2081 = vpop.f32.mrb[0].mxu0
      %v2082 = vadd.f32 0.0, %v2081
      %v2083 = vpop.f32.mrb[0].mxu0
      %v2084 = vpop.f32.mrb[0].mxu0
      %v2085 = vadd.f32 0.0, %v2084
      %v2086 = vpop.f32.mrb[0].mxu0
      %2087 = vmatprep.mubr.bf16.mxu0 0
      %2088 = vmatmul.mubr.bf16.gmra.mrb[0].mxu0 %v1935
      %v2089 = vpop.f32.mrb[0].mxu0
      %v2090 = vadd.f32 0.0, %v2089
      %v2091 = vpop.f32.mrb[0].mxu0
      %v2092 = vpop.f32.mrb[0].mxu0
      %v2093 = vadd.f32 0.0, %v2092
      %v2094 = vpop.f32.mrb[0].mxu0
      %2095 = vmatprep.mubr.bf16.mxu0 0
      %2096 = vmatmul.mubr.bf16.gmra.mrb[0].mxu0 %v1938
      %v2097 = vpop.f32.mrb[0].mxu0
      %v2098 = vadd.f32 0.0, %v2097
      %v2099 = vpop.f32.mrb[0].mxu0
      %v2100 = vpop.f32.mrb[0].mxu0
      %v2101 = vadd.f32 0.0, %v2100
      %v2102 = vpop.f32.mrb[0].mxu0
      %2103 = vdwg.mxu0
      %v2104 = vadd.f32 %v1745, %v1978
      %v2105 = vadd.f32 %v1746, %v1981
      %v2106 = vadd.f32 %v1747, %v1986
      %v2107 = vadd.f32 %v1748, %v1989
      %v2108 = vadd.f32 %v1749, %v1994
      %v2109 = vadd.f32 %v1750, %v1997
      %v2110 = vadd.f32 %v1751, %v2002
      %v2111 = vadd.f32 %v1752, %v2005
      %v2112 = vadd.f32 %v1753, %v2010
      %v2113 = vadd.f32 %v1754, %v2013
      %v2114 = vadd.f32 %v1755, %v2018
      %v2115 = vadd.f32 %v1756, %v2021
      %v2116 = vadd.f32 %v1757, %v2026
      %v2117 = vadd.f32 %v1758, %v2029
      %v2118 = vadd.f32 %v1759, %v2034
      %v2119 = vadd.f32 %v1760, %v2037
      %v2120 = vadd.f32 %v1761, %v2042
      %v2121 = vadd.f32 %v1762, %v2045
      %v2122 = vadd.f32 %v1763, %v2050
      %v2123 = vadd.f32 %v1764, %v2053
      %v2124 = vadd.f32 %v1765, %v2058
      %v2125 = vadd.f32 %v1766, %v2061
      %v2126 = vadd.f32 %v1767, %v2066
      %v2127 = vadd.f32 %v1768, %v2069
      %v2128 = vadd.f32 %v1769, %v2074
      %v2129 = vadd.f32 %v1770, %v2077
      %v2130 = vadd.f32 %v1771, %v2082
      %v2131 = vadd.f32 %v1772, %v2085
      %v2132 = vadd.f32 %v1773, %v2090
      %v2133 = vadd.f32 %v1774, %v2093
      %v2134 = vadd.f32 %v1775, %v2098
      %v2135 = vadd.f32 %v1776, %v2101
      %v2136 = vld [vmem:[%s1777] sm:$0xf]
      %v2137 = vld [vmem:[%s1777 + $0x4] sm:$0xf]
      %v2138 = vld [vmem:[%s1777 + $0x8] sm:$0x1]
      %v2139 = vld [vmem:[%s1777 + $0xc] sm:$0xf]
      %v2140 = vld [vmem:[%s1777 + $0x10] sm:$0xf]
      %v2141 = vld [vmem:[%s1777 + $0x14] sm:$0x1]
      %v2142 = vld [vmem:[%s1777 + $0x18] sm:$0xf]
      %v2143 = vld [vmem:[%s1777 + $0x1c] sm:$0xf]
      %v2144 = vld [vmem:[%s1777 + $0x20] sm:$0x1]
      %v2145 = vld [vmem:[%s1777 + $0x24] sm:$0xf]
      %v2146 = vld [vmem:[%s1777 + $0x28] sm:$0xf]
      %v2147 = vld [vmem:[%s1777 + $0x2c] sm:$0x1]
      %v2148 = vld [vmem:[%s1777 + $0x30] sm:$0xf]
      %v2149 = vld [vmem:[%s1777 + $0x34] sm:$0xf]
      %v2150 = vld [vmem:[%s1777 + $0x38] sm:$0x1]
      %v2151 = vld [vmem:[%s1777 + $0x3c] sm:$0xf]
      %v2152 = vld [vmem:[%s1777 + $0x40] sm:$0xf]
      %v2153 = vld [vmem:[%s1777 + $0x44] sm:$0x1]
      %v2154 = vld [vmem:[%s1777 + $0x48] sm:$0xf]
      %v2155 = vld [vmem:[%s1777 + $0x4c] sm:$0xf]
      %v2156 = vld [vmem:[%s1777 + $0x50] sm:$0x1]
      %v2157 = vld [vmem:[%s1777 + $0x54] sm:$0xf]
      %v2158 = vld [vmem:[%s1777 + $0x58] sm:$0xf]
      %v2159 = vld [vmem:[%s1777 + $0x5c] sm:$0x1]
      %v2160 = vld [vmem:[%s1777 + $0x60] sm:$0xf]
      %v2161 = vld [vmem:[%s1777 + $0x64] sm:$0xf]
      %v2162 = vld [vmem:[%s1777 + $0x68] sm:$0x1]
      %v2163 = vld [vmem:[%s1777 + $0x6c] sm:$0xf]
      %v2164 = vld [vmem:[%s1777 + $0x70] sm:$0xf]
      %v2165 = vld [vmem:[%s1777 + $0x74] sm:$0x1]
      %v2166 = vld [vmem:[%s1777 + $0x78] sm:$0xf]
      %v2167 = vld [vmem:[%s1777 + $0x7c] sm:$0xf]
      %v2168 = vld [vmem:[%s1777 + $0x80] sm:$0x1]
      %v2169 = vld [vmem:[%s1777 + $0x84] sm:$0xf]
      %v2170 = vld [vmem:[%s1777 + $0x88] sm:$0xf]
      %v2171 = vld [vmem:[%s1777 + $0x8c] sm:$0x1]
      %v2172 = vld [vmem:[%s1777 + $0x90] sm:$0xf]
      %v2173 = vld [vmem:[%s1777 + $0x94] sm:$0xf]
      %v2174 = vld [vmem:[%s1777 + $0x98] sm:$0x1]
      %v2175 = vld [vmem:[%s1777 + $0x9c] sm:$0xf]
      %v2176 = vld [vmem:[%s1777 + $0xa0] sm:$0xf]
      %v2177 = vld [vmem:[%s1777 + $0xa4] sm:$0x1]
      %v2178 = vld [vmem:[%s1777 + $0xa8] sm:$0xf]
      %v2179 = vld [vmem:[%s1777 + $0xac] sm:$0xf]
      %v2180 = vld [vmem:[%s1777 + $0xb0] sm:$0x1]
      %v2181 = vld [vmem:[%s1777 + $0xb4] sm:$0xf]
      %v2182 = vld [vmem:[%s1777 + $0xb8] sm:$0xf]
      %v2183 = vld [vmem:[%s1777 + $0xbc] sm:$0x1]
      %v2185 = vshrl.u32 %v2136, 16
      %v2187 = vrot.slane %v2185, 4
      %v2188 = vshll.u32 %v2136, 16
      %v2190 = vrot.slane %v2188, 5
      %v2191 = vor.u32 %v2187, %v2190
      %v2192 = vrot.slane %v2191, 4
      %v2194 = vshll.u32 %v2137, 16
      %v2196 = vrot.slane %v2194, 5
      %v2197 = vsel %vm379, %v2192, %v2196
      %v2198 = vshrl.u32 %v2137, 16
      %v2200 = vrot.slane %v2198, 4
      %v2201 = vor.u32 %v2200, %v2196
      %v2202 = vrot.slane %v2201, 4
      %v2204 = vshll.u32 %v2138, 16
      %v2206 = vrot.slane %v2204, 5
      %v2207 = vsel %vm379, %v2202, %v2206
      %v2209 = vshrl.u32 %v2139, 16
      %v2211 = vrot.slane %v2209, 4
      %v2212 = vshll.u32 %v2139, 16
      %v2214 = vrot.slane %v2212, 5
      %v2215 = vor.u32 %v2211, %v2214
      %v2216 = vrot.slane %v2215, 4
      %v2218 = vshll.u32 %v2140, 16
      %v2220 = vrot.slane %v2218, 5
      %v2221 = vsel %vm379, %v2216, %v2220
      %v2222 = vshrl.u32 %v2140, 16
      %v2224 = vrot.slane %v2222, 4
      %v2225 = vor.u32 %v2224, %v2220
      %v2226 = vrot.slane %v2225, 4
      %v2228 = vshll.u32 %v2141, 16
      %v2230 = vrot.slane %v2228, 5
      %v2231 = vsel %vm379, %v2226, %v2230
      %v2233 = vshrl.u32 %v2142, 16
      %v2235 = vrot.slane %v2233, 4
      %v2236 = vshll.u32 %v2142, 16
      %v2238 = vrot.slane %v2236, 5
      %v2239 = vor.u32 %v2235, %v2238
      %v2240 = vrot.slane %v2239, 4
      %v2242 = vshll.u32 %v2143, 16
      %v2244 = vrot.slane %v2242, 5
      %v2245 = vsel %vm379, %v2240, %v2244
      %v2246 = vshrl.u32 %v2143, 16
      %v2248 = vrot.slane %v2246, 4
      %v2249 = vor.u32 %v2248, %v2244
      %v2250 = vrot.slane %v2249, 4
      %v2252 = vshll.u32 %v2144, 16
      %v2254 = vrot.slane %v2252, 5
      %v2255 = vsel %vm379, %v2250, %v2254
      %v2257 = vshrl.u32 %v2145, 16
      %v2259 = vrot.slane %v2257, 4
      %v2260 = vshll.u32 %v2145, 16
      %v2262 = vrot.slane %v2260, 5
      %v2263 = vor.u32 %v2259, %v2262
      %v2264 = vrot.slane %v2263, 4
      %v2266 = vshll.u32 %v2146, 16
      %v2268 = vrot.slane %v2266, 5
      %v2269 = vsel %vm379, %v2264, %v2268
      %v2270 = vshrl.u32 %v2146, 16
      %v2272 = vrot.slane %v2270, 4
      %v2273 = vor.u32 %v2272, %v2268
      %v2274 = vrot.slane %v2273, 4
      %v2276 = vshll.u32 %v2147, 16
      %v2278 = vrot.slane %v2276, 5
      %v2279 = vsel %vm379, %v2274, %v2278
      %v2281 = vshrl.u32 %v2148, 16
      %v2283 = vrot.slane %v2281, 4
      %v2284 = vshll.u32 %v2148, 16
      %v2286 = vrot.slane %v2284, 5
      %v2287 = vor.u32 %v2283, %v2286
      %v2288 = vrot.slane %v2287, 4
      %v2290 = vshll.u32 %v2149, 16
      %v2292 = vrot.slane %v2290, 5
      %v2293 = vsel %vm379, %v2288, %v2292
      %v2294 = vshrl.u32 %v2149, 16
      %v2296 = vrot.slane %v2294, 4
      %v2297 = vor.u32 %v2296, %v2292
      %v2298 = vrot.slane %v2297, 4
      %v2300 = vshll.u32 %v2150, 16
      %v2302 = vrot.slane %v2300, 5
      %v2303 = vsel %vm379, %v2298, %v2302
      %v2305 = vshrl.u32 %v2151, 16
      %v2307 = vrot.slane %v2305, 4
      %v2308 = vshll.u32 %v2151, 16
      %v2310 = vrot.slane %v2308, 5
      %v2311 = vor.u32 %v2307, %v2310
      %v2312 = vrot.slane %v2311, 4
      %v2314 = vshll.u32 %v2152, 16
      %v2316 = vrot.slane %v2314, 5
      %v2317 = vsel %vm379, %v2312, %v2316
      %v2318 = vshrl.u32 %v2152, 16
      %v2320 = vrot.slane %v2318, 4
      %v2321 = vor.u32 %v2320, %v2316
      %v2322 = vrot.slane %v2321, 4
      %v2324 = vshll.u32 %v2153, 16
      %v2326 = vrot.slane %v2324, 5
      %v2327 = vsel %vm379, %v2322, %v2326
      %v2329 = vshrl.u32 %v2154, 16
      %v2331 = vrot.slane %v2329, 4
      %v2332 = vshll.u32 %v2154, 16
      %v2334 = vrot.slane %v2332, 5
      %v2335 = vor.u32 %v2331, %v2334
      %v2336 = vrot.slane %v2335, 4
      %v2338 = vshll.u32 %v2155, 16
      %v2340 = vrot.slane %v2338, 5
      %v2341 = vsel %vm379, %v2336, %v2340
      %v2342 = vshrl.u32 %v2155, 16
      %v2344 = vrot.slane %v2342, 4
      %v2345 = vor.u32 %v2344, %v2340
      %v2346 = vrot.slane %v2345, 4
      %v2348 = vshll.u32 %v2156, 16
      %v2350 = vrot.slane %v2348, 5
      %v2351 = vsel %vm379, %v2346, %v2350
      %v2353 = vshrl.u32 %v2157, 16
      %v2355 = vrot.slane %v2353, 4
      %v2356 = vshll.u32 %v2157, 16
      %v2358 = vrot.slane %v2356, 5
      %v2359 = vor.u32 %v2355, %v2358
      %v2360 = vrot.slane %v2359, 4
      %v2362 = vshll.u32 %v2158, 16
      %v2364 = vrot.slane %v2362, 5
      %v2365 = vsel %vm379, %v2360, %v2364
      %v2366 = vshrl.u32 %v2158, 16
      %v2368 = vrot.slane %v2366, 4
      %v2369 = vor.u32 %v2368, %v2364
      %v2370 = vrot.slane %v2369, 4
      %v2372 = vshll.u32 %v2159, 16
      %v2374 = vrot.slane %v2372, 5
      %v2375 = vsel %vm379, %v2370, %v2374
      %v2377 = vshrl.u32 %v2160, 16
      %v2379 = vrot.slane %v2377, 4
      %v2380 = vshll.u32 %v2160, 16
      %v2382 = vrot.slane %v2380, 5
      %v2383 = vor.u32 %v2379, %v2382
      %v2384 = vrot.slane %v2383, 4
      %v2386 = vshll.u32 %v2161, 16
      %v2388 = vrot.slane %v2386, 5
      %v2389 = vsel %vm379, %v2384, %v2388
      %v2390 = vshrl.u32 %v2161, 16
      %v2392 = vrot.slane %v2390, 4
      %v2393 = vor.u32 %v2392, %v2388
      %v2394 = vrot.slane %v2393, 4
      %v2396 = vshll.u32 %v2162, 16
      %v2398 = vrot.slane %v2396, 5
      %v2399 = vsel %vm379, %v2394, %v2398
      %v2401 = vshrl.u32 %v2163, 16
      %v2403 = vrot.slane %v2401, 4
      %v2404 = vshll.u32 %v2163, 16
      %v2406 = vrot.slane %v2404, 5
      %v2407 = vor.u32 %v2403, %v2406
      %v2408 = vrot.slane %v2407, 4
      %v2410 = vshll.u32 %v2164, 16
      %v2412 = vrot.slane %v2410, 5
      %v2413 = vsel %vm379, %v2408, %v2412
      %v2414 = vshrl.u32 %v2164, 16
      %v2416 = vrot.slane %v2414, 4
      %v2417 = vor.u32 %v2416, %v2412
      %v2418 = vrot.slane %v2417, 4
      %v2420 = vshll.u32 %v2165, 16
      %v2422 = vrot.slane %v2420, 5
      %v2423 = vsel %vm379, %v2418, %v2422
      %v2425 = vshrl.u32 %v2166, 16
      %v2427 = vrot.slane %v2425, 4
      %v2428 = vshll.u32 %v2166, 16
      %v2430 = vrot.slane %v2428, 5
      %v2431 = vor.u32 %v2427, %v2430
      %v2432 = vrot.slane %v2431, 4
      %v2434 = vshll.u32 %v2167, 16
      %v2436 = vrot.slane %v2434, 5
      %v2437 = vsel %vm379, %v2432, %v2436
      %v2438 = vshrl.u32 %v2167, 16
      %v2440 = vrot.slane %v2438, 4
      %v2441 = vor.u32 %v2440, %v2436
      %v2442 = vrot.slane %v2441, 4
      %v2444 = vshll.u32 %v2168, 16
      %v2446 = vrot.slane %v2444, 5
      %v2447 = vsel %vm379, %v2442, %v2446
      %v2449 = vshrl.u32 %v2169, 16
      %v2451 = vrot.slane %v2449, 4
      %v2452 = vshll.u32 %v2169, 16
      %v2454 = vrot.slane %v2452, 5
      %v2455 = vor.u32 %v2451, %v2454
      %v2456 = vrot.slane %v2455, 4
      %v2458 = vshll.u32 %v2170, 16
      %v2460 = vrot.slane %v2458, 5
      %v2461 = vsel %vm379, %v2456, %v2460
      %v2462 = vshrl.u32 %v2170, 16
      %v2464 = vrot.slane %v2462, 4
      %v2465 = vor.u32 %v2464, %v2460
      %v2466 = vrot.slane %v2465, 4
      %v2468 = vshll.u32 %v2171, 16
      %v2470 = vrot.slane %v2468, 5
      %v2471 = vsel %vm379, %v2466, %v2470
      %v2473 = vshrl.u32 %v2172, 16
      %v2475 = vrot.slane %v2473, 4
      %v2476 = vshll.u32 %v2172, 16
      %v2478 = vrot.slane %v2476, 5
      %v2479 = vor.u32 %v2475, %v2478
      %v2480 = vrot.slane %v2479, 4
      %v2482 = vshll.u32 %v2173, 16
      %v2484 = vrot.slane %v2482, 5
      %v2485 = vsel %vm379, %v2480, %v2484
      %v2486 = vshrl.u32 %v2173, 16
      %v2488 = vrot.slane %v2486, 4
      %v2489 = vor.u32 %v2488, %v2484
      %v2490 = vrot.slane %v2489, 4
      %v2492 = vshll.u32 %v2174, 16
      %v2494 = vrot.slane %v2492, 5
      %v2495 = vsel %vm379, %v2490, %v2494
      %v2497 = vshrl.u32 %v2175, 16
      %v2499 = vrot.slane %v2497, 4
      %v2500 = vshll.u32 %v2175, 16
      %v2502 = vrot.slane %v2500, 5
      %v2503 = vor.u32 %v2499, %v2502
      %v2504 = vrot.slane %v2503, 4
      %v2506 = vshll.u32 %v2176, 16
      %v2508 = vrot.slane %v2506, 5
      %v2509 = vsel %vm379, %v2504, %v2508
      %v2510 = vshrl.u32 %v2176, 16
      %v2512 = vrot.slane %v2510, 4
      %v2513 = vor.u32 %v2512, %v2508
      %v2514 = vrot.slane %v2513, 4
      %v2516 = vshll.u32 %v2177, 16
      %v2518 = vrot.slane %v2516, 5
      %v2519 = vsel %vm379, %v2514, %v2518
      %v2521 = vshrl.u32 %v2178, 16
      %v2523 = vrot.slane %v2521, 4
      %v2524 = vshll.u32 %v2178, 16
      %v2526 = vrot.slane %v2524, 5
      %v2527 = vor.u32 %v2523, %v2526
      %v2528 = vrot.slane %v2527, 4
      %v2530 = vshll.u32 %v2179, 16
      %v2532 = vrot.slane %v2530, 5
      %v2533 = vsel %vm379, %v2528, %v2532
      %v2534 = vshrl.u32 %v2179, 16
      %v2536 = vrot.slane %v2534, 4
      %v2537 = vor.u32 %v2536, %v2532
      %v2538 = vrot.slane %v2537, 4
      %v2540 = vshll.u32 %v2180, 16
      %v2542 = vrot.slane %v2540, 5
      %v2543 = vsel %vm379, %v2538, %v2542
      %v2545 = vshrl.u32 %v2181, 16
      %v2547 = vrot.slane %v2545, 4
      %v2548 = vshll.u32 %v2181, 16
      %v2550 = vrot.slane %v2548, 5
      %v2551 = vor.u32 %v2547, %v2550
      %v2552 = vrot.slane %v2551, 4
      %v2554 = vshll.u32 %v2182, 16
      %v2556 = vrot.slane %v2554, 5
      %v2557 = vsel %vm379, %v2552, %v2556
      %v2558 = vshrl.u32 %v2182, 16
      %v2560 = vrot.slane %v2558, 4
      %v2561 = vor.u32 %v2560, %v2556
      %v2562 = vrot.slane %v2561, 4
      %v2564 = vshll.u32 %v2183, 16
      %v2566 = vrot.slane %v2564, 5
      %v2567 = vsel %vm379, %v2562, %v2566
      %s2568 = scalar_lea.vmem [#allocation2], 8
      %v2569 = vld [vmem:[%s2568] sm:$0x3]
      %v2570 = vunpack.c.l.b16 %v2197
      %v2571 = vunpack.c.l.b16 %v2207
      %v2572 = vunpack.c.l.b16 %v2221
      %v2573 = vunpack.c.l.b16 %v2231
      %v2574 = vunpack.c.l.b16 %v2245
      %v2575 = vunpack.c.l.b16 %v2255
      %v2576 = vunpack.c.l.b16 %v2269
      %v2577 = vunpack.c.l.b16 %v2279
      %v2578 = vunpack.c.l.b16 %v2293
      %v2579 = vunpack.c.l.b16 %v2303
      %v2580 = vunpack.c.l.b16 %v2317
      %v2581 = vunpack.c.l.b16 %v2327
      %v2582 = vunpack.c.l.b16 %v2341
      %v2583 = vunpack.c.l.b16 %v2351
      %v2584 = vunpack.c.l.b16 %v2365
      %v2585 = vunpack.c.l.b16 %v2375
      %v2586 = vunpack.c.l.b16 %v2389
      %v2587 = vunpack.c.l.b16 %v2399
      %v2588 = vunpack.c.l.b16 %v2413
      %v2589 = vunpack.c.l.b16 %v2423
      %v2590 = vunpack.c.l.b16 %v2437
      %v2591 = vunpack.c.l.b16 %v2447
      %v2592 = vunpack.c.l.b16 %v2461
      %v2593 = vunpack.c.l.b16 %v2471
      %v2594 = vunpack.c.l.b16 %v2485
      %v2595 = vunpack.c.l.b16 %v2495
      %v2596 = vunpack.c.l.b16 %v2509
      %v2597 = vunpack.c.l.b16 %v2519
      %v2598 = vunpack.c.l.b16 %v2533
      %v2599 = vunpack.c.l.b16 %v2543
      %v2600 = vunpack.c.l.b16 %v2557
      %v2601 = vunpack.c.l.b16 %v2567
      %v2602 = vpack.c.b16 %v2571, %v2570
      %v2603 = vpack.c.b16 %v2573, %v2572
      %v2604 = vpack.c.b16 %v2575, %v2574
      %v2605 = vpack.c.b16 %v2577, %v2576
      %v2606 = vpack.c.b16 %v2579, %v2578
      %v2607 = vpack.c.b16 %v2581, %v2580
      %v2608 = vpack.c.b16 %v2583, %v2582
      %v2609 = vpack.c.b16 %v2585, %v2584
      %v2610 = vpack.c.b16 %v2587, %v2586
      %v2611 = vpack.c.b16 %v2589, %v2588
      %v2612 = vpack.c.b16 %v2591, %v2590
      %v2613 = vpack.c.b16 %v2593, %v2592
      %v2614 = vpack.c.b16 %v2595, %v2594
      %v2615 = vpack.c.b16 %v2597, %v2596
      %v2616 = vpack.c.b16 %v2599, %v2598
      %v2617 = vpack.c.b16 %v2601, %v2600
      %v2619 = vsel %vm814, %v2602, 0
      %v2622 = vsel %vm814, %v2603, 0
      %v2625 = vsel %vm814, %v2604, 0
      %v2628 = vsel %vm814, %v2605, 0
      %v2631 = vsel %vm814, %v2606, 0
      %v2634 = vsel %vm814, %v2607, 0
      %v2637 = vsel %vm814, %v2608, 0
      %v2640 = vsel %vm814, %v2609, 0
      %v2643 = vsel %vm814, %v2610, 0
      %v2646 = vsel %vm814, %v2611, 0
      %v2649 = vsel %vm814, %v2612, 0
      %v2652 = vsel %vm814, %v2613, 0
      %v2655 = vsel %vm814, %v2614, 0
      %v2658 = vsel %vm814, %v2615, 0
      %v2661 = vsel %vm814, %v2616, 0
      %v2664 = vsel %vm814, %v2617, 0
      %v2667 = vsel %vm863, %v2569, 0
      %2669 = vmatprep.subr.bf16.mxu0 0
      %2670 = vmatpush1.bf16.msra.mxu0 %v2667
      %2671 = vmatprep.subr.bf16.mxu0 0
      %2672 = vmatpush1.bf16.msra.mxu0 0
      %2673 = vmatprep.subr.bf16.mxu0 0
      %2674 = vmatpush1.bf16.msra.mxu0 0
      %2675 = vmatprep.subr.bf16.mxu0 0
      %2676 = vmatpush1.bf16.msra.mxu0 0
      %2677 = vmatprep.subr.bf16.mxu0 0
      %2678 = vmatpush1.bf16.msra.mxu0 0
      %2679 = vmatprep.subr.bf16.mxu0 0
      %2680 = vmatpush1.bf16.msra.mxu0 0
      %2681 = vmatprep.subr.bf16.mxu0 0
      %2682 = vmatpush1.bf16.msra.mxu0 0
      %2683 = vmatprep.subr.bf16.mxu0 0
      %2684 = vmatpush1.bf16.msra.mxu0 0
      %2685 = vmatprep.subr.bf16.mxu0 0
      %2686 = vmatpush1.bf16.msra.mxu0 0
      %2687 = vmatprep.subr.bf16.mxu0 0
      %2688 = vmatpush1.bf16.msra.mxu0 0
      %2689 = vmatprep.subr.bf16.mxu0 0
      %2690 = vmatpush1.bf16.msra.mxu0 0
      %2691 = vmatprep.subr.bf16.mxu0 0
      %2692 = vmatpush1.bf16.msra.mxu0 0
      %2693 = vmatprep.subr.bf16.mxu0 0
      %2694 = vmatpush1.bf16.msra.mxu0 0
      %2695 = vmatprep.subr.bf16.mxu0 0
      %2696 = vmatpush1.bf16.msra.mxu0 0
      %2697 = vmatprep.subr.bf16.mxu0 0
      %2698 = vmatpush1.bf16.msra.mxu0 0
      %2699 = vmatprep.subr.bf16.mxu0 0
      %2700 = vmatpush1.bf16.msra.mxu0 0
      %2701 = vmatprep.mubr.bf16.mxu0 0
      %2702 = vmatmul.mubr.bf16.gmra.mrb[0].mxu0 %v2619
      %v2703 = vpop.f32.mrb[0].mxu0
      %v2704 = vadd.f32 0.0, %v2703
      %v2705 = vpop.f32.mrb[0].mxu0
      %v2706 = vpop.f32.mrb[0].mxu0
      %v2707 = vadd.f32 0.0, %v2706
      %v2708 = vpop.f32.mrb[0].mxu0
      %2709 = vmatprep.mubr.bf16.mxu0 0
      %2710 = vmatmul.mubr.bf16.gmra.mrb[0].mxu0 %v2622
      %v2711 = vpop.f32.mrb[0].mxu0
      %v2712 = vadd.f32 0.0, %v2711
      %v2713 = vpop.f32.mrb[0].mxu0
      %v2714 = vpop.f32.mrb[0].mxu0
      %v2715 = vadd.f32 0.0, %v2714
      %v2716 = vpop.f32.mrb[0].mxu0
      %2717 = vmatprep.mubr.bf16.mxu0 0
      %2718 = vmatmul.mubr.bf16.gmra.mrb[0].mxu0 %v2625
      %v2719 = vpop.f32.mrb[0].mxu0
      %v2720 = vadd.f32 0.0, %v2719
      %v2721 = vpop.f32.mrb[0].mxu0
      %v2722 = vpop.f32.mrb[0].mxu0
      %v2723 = vadd.f32 0.0, %v2722
      %v2724 = vpop.f32.mrb[0].mxu0
      %2725 = vmatprep.mubr.bf16.mxu0 0
      %2726 = vmatmul.mubr.bf16.gmra.mrb[0].mxu0 %v2628
      %v2727 = vpop.f32.mrb[0].mxu0
      %v2728 = vadd.f32 0.0, %v2727
      %v2729 = vpop.f32.mrb[0].mxu0
      %v2730 = vpop.f32.mrb[0].mxu0
      %v2731 = vadd.f32 0.0, %v2730
      %v2732 = vpop.f32.mrb[0].mxu0
      %2733 = vmatprep.mubr.bf16.mxu0 0
      %2734 = vmatmul.mubr.bf16.gmra.mrb[0].mxu0 %v2631
      %v2735 = vpop.f32.mrb[0].mxu0
      %v2736 = vadd.f32 0.0, %v2735
      %v2737 = vpop.f32.mrb[0].mxu0
      %v2738 = vpop.f32.mrb[0].mxu0
      %v2739 = vadd.f32 0.0, %v2738
      %v2740 = vpop.f32.mrb[0].mxu0
      %2741 = vmatprep.mubr.bf16.mxu0 0
      %2742 = vmatmul.mubr.bf16.gmra.mrb[0].mxu0 %v2634
      %v2743 = vpop.f32.mrb[0].mxu0
      %v2744 = vadd.f32 0.0, %v2743
      %v2745 = vpop.f32.mrb[0].mxu0
      %v2746 = vpop.f32.mrb[0].mxu0
      %v2747 = vadd.f32 0.0, %v2746
      %v2748 = vpop.f32.mrb[0].mxu0
      %2749 = vmatprep.mubr.bf16.mxu0 0
      %2750 = vmatmul.mubr.bf16.gmra.mrb[0].mxu0 %v2637
      %v2751 = vpop.f32.mrb[0].mxu0
      %v2752 = vadd.f32 0.0, %v2751
      %v2753 = vpop.f32.mrb[0].mxu0
      %v2754 = vpop.f32.mrb[0].mxu0
      %v2755 = vadd.f32 0.0, %v2754
      %v2756 = vpop.f32.mrb[0].mxu0
      %2757 = vmatprep.mubr.bf16.mxu0 0
      %2758 = vmatmul.mubr.bf16.gmra.mrb[0].mxu0 %v2640
      %v2759 = vpop.f32.mrb[0].mxu0
      %v2760 = vadd.f32 0.0, %v2759
      %v2761 = vpop.f32.mrb[0].mxu0
      %v2762 = vpop.f32.mrb[0].mxu0
      %v2763 = vadd.f32 0.0, %v2762
      %v2764 = vpop.f32.mrb[0].mxu0
      %2765 = vmatprep.mubr.bf16.mxu0 0
      %2766 = vmatmul.mubr.bf16.gmra.mrb[0].mxu0 %v2643
      %v2767 = vpop.f32.mrb[0].mxu0
      %v2768 = vadd.f32 0.0, %v2767
      %v2769 = vpop.f32.mrb[0].mxu0
      %v2770 = vpop.f32.mrb[0].mxu0
      %v2771 = vadd.f32 0.0, %v2770
      %v2772 = vpop.f32.mrb[0].mxu0
      %2773 = vmatprep.mubr.bf16.mxu0 0
      %2774 = vmatmul.mubr.bf16.gmra.mrb[0].mxu0 %v2646
      %v2775 = vpop.f32.mrb[0].mxu0
      %v2776 = vadd.f32 0.0, %v2775
      %v2777 = vpop.f32.mrb[0].mxu0
      %v2778 = vpop.f32.mrb[0].mxu0
      %v2779 = vadd.f32 0.0, %v2778
      %v2780 = vpop.f32.mrb[0].mxu0
      %2781 = vmatprep.mubr.bf16.mxu0 0
      %2782 = vmatmul.mubr.bf16.gmra.mrb[0].mxu0 %v2649
      %v2783 = vpop.f32.mrb[0].mxu0
      %v2784 = vadd.f32 0.0, %v2783
      %v2785 = vpop.f32.mrb[0].mxu0
      %v2786 = vpop.f32.mrb[0].mxu0
      %v2787 = vadd.f32 0.0, %v2786
      %v2788 = vpop.f32.mrb[0].mxu0
      %2789 = vmatprep.mubr.bf16.mxu0 0
      %2790 = vmatmul.mubr.bf16.gmra.mrb[0].mxu0 %v2652
      %v2791 = vpop.f32.mrb[0].mxu0
      %v2792 = vadd.f32 0.0, %v2791
      %v2793 = vpop.f32.mrb[0].mxu0
      %v2794 = vpop.f32.mrb[0].mxu0
      %v2795 = vadd.f32 0.0, %v2794
      %v2796 = vpop.f32.mrb[0].mxu0
      %2797 = vmatprep.mubr.bf16.mxu0 0
      %2798 = vmatmul.mubr.bf16.gmra.mrb[0].mxu0 %v2655
      %v2799 = vpop.f32.mrb[0].mxu0
      %v2800 = vadd.f32 0.0, %v2799
      %v2801 = vpop.f32.mrb[0].mxu0
      %v2802 = vpop.f32.mrb[0].mxu0
      %v2803 = vadd.f32 0.0, %v2802
      %v2804 = vpop.f32.mrb[0].mxu0
      %2805 = vmatprep.mubr.bf16.mxu0 0
      %2806 = vmatmul.mubr.bf16.gmra.mrb[0].mxu0 %v2658
      %v2807 = vpop.f32.mrb[0].mxu0
      %v2808 = vadd.f32 0.0, %v2807
      %v2809 = vpop.f32.mrb[0].mxu0
      %v2810 = vpop.f32.mrb[0].mxu0
      %v2811 = vadd.f32 0.0, %v2810
      %v2812 = vpop.f32.mrb[0].mxu0
      %2813 = vmatprep.mubr.bf16.mxu0 0
      %2814 = vmatmul.mubr.bf16.gmra.mrb[0].mxu0 %v2661
      %v2815 = vpop.f32.mrb[0].mxu0
      %v2816 = vadd.f32 0.0, %v2815
      %v2817 = vpop.f32.mrb[0].mxu0
      %v2818 = vpop.f32.mrb[0].mxu0
      %v2819 = vadd.f32 0.0, %v2818
      %v2820 = vpop.f32.mrb[0].mxu0
      %2821 = vmatprep.mubr.bf16.mxu0 0
      %2822 = vmatmul.mubr.bf16.gmra.mrb[0].mxu0 %v2664
      %v2823 = vpop.f32.mrb[0].mxu0
      %v2824 = vadd.f32 0.0, %v2823
      %v2825 = vpop.f32.mrb[0].mxu0
      %v2826 = vpop.f32.mrb[0].mxu0
      %v2827 = vadd.f32 0.0, %v2826
      %v2828 = vpop.f32.mrb[0].mxu0
      %2829 = vdwg.mxu0
      %v2830 = vadd.f32 %v2104, %v2704
      %v2831 = vadd.f32 %v2105, %v2707
      %v2832 = vadd.f32 %v2106, %v2712
      %v2833 = vadd.f32 %v2107, %v2715
      %v2834 = vadd.f32 %v2108, %v2720
      %v2835 = vadd.f32 %v2109, %v2723
      %v2836 = vadd.f32 %v2110, %v2728
      %v2837 = vadd.f32 %v2111, %v2731
      %v2838 = vadd.f32 %v2112, %v2736
      %v2839 = vadd.f32 %v2113, %v2739
      %v2840 = vadd.f32 %v2114, %v2744
      %v2841 = vadd.f32 %v2115, %v2747
      %v2842 = vadd.f32 %v2116, %v2752
      %v2843 = vadd.f32 %v2117, %v2755
      %v2844 = vadd.f32 %v2118, %v2760
      %v2845 = vadd.f32 %v2119, %v2763
      %v2846 = vadd.f32 %v2120, %v2768
      %v2847 = vadd.f32 %v2121, %v2771
      %v2848 = vadd.f32 %v2122, %v2776
      %v2849 = vadd.f32 %v2123, %v2779
      %v2850 = vadd.f32 %v2124, %v2784
      %v2851 = vadd.f32 %v2125, %v2787
      %v2852 = vadd.f32 %v2126, %v2792
      %v2853 = vadd.f32 %v2127, %v2795
      %v2854 = vadd.f32 %v2128, %v2800
      %v2855 = vadd.f32 %v2129, %v2803
      %v2856 = vadd.f32 %v2130, %v2808
      %v2857 = vadd.f32 %v2131, %v2811
      %v2858 = vadd.f32 %v2132, %v2816
      %v2859 = vadd.f32 %v2133, %v2819
      %v2860 = vadd.f32 %v2134, %v2824
      %v2861 = vadd.f32 %v2135, %v2827
      %v2862 = vld [vmem:[%s1777] sm:$0xe]
      %v2863 = vld [vmem:[%s1777 + $0xc] sm:$0xe]
      %v2864 = vld [vmem:[%s1777 + $0x18] sm:$0xe]
      %v2865 = vld [vmem:[%s1777 + $0x24] sm:$0xe]
      %v2866 = vld [vmem:[%s1777 + $0x30] sm:$0xe]
      %v2867 = vld [vmem:[%s1777 + $0x3c] sm:$0xe]
      %v2868 = vld [vmem:[%s1777 + $0x48] sm:$0xe]
      %v2869 = vld [vmem:[%s1777 + $0x54] sm:$0xe]
      %v2870 = vld [vmem:[%s1777 + $0x60] sm:$0xe]
      %v2871 = vld [vmem:[%s1777 + $0x6c] sm:$0xe]
      %v2872 = vld [vmem:[%s1777 + $0x78] sm:$0xe]
      %v2873 = vld [vmem:[%s1777 + $0x84] sm:$0xe]
      %v2874 = vld [vmem:[%s1777 + $0x90] sm:$0xe]
      %v2875 = vld [vmem:[%s1777 + $0x9c] sm:$0xe]
      %v2876 = vld [vmem:[%s1777 + $0xa8] sm:$0xe]
      %v2877 = vld [vmem:[%s1777 + $0xb4] sm:$0xe]
      %v2926 = vrot.slane %v2862, 5
      %v2927 = vrot.slane %v2926, 4
      %v2928 = vrot.slane %v2137, 5
      %v2929 = vsel %vm1370, %v2927, %v2928
      %v2930 = vrot.slane %v2928, 4
      %v2931 = vrot.slane %v2138, 5
      %v2932 = vsel %vm1370, %v2930, %v2931
      %v2933 = vrot.slane %v2863, 5
      %v2934 = vrot.slane %v2933, 4
      %v2935 = vrot.slane %v2140, 5
      %v2936 = vsel %vm1370, %v2934, %v2935
      %v2937 = vrot.slane %v2935, 4
      %v2938 = vrot.slane %v2141, 5
      %v2939 = vsel %vm1370, %v2937, %v2938
      %v2940 = vrot.slane %v2864, 5
      %v2941 = vrot.slane %v2940, 4
      %v2942 = vrot.slane %v2143, 5
      %v2943 = vsel %vm1370, %v2941, %v2942
      %v2944 = vrot.slane %v2942, 4
      %v2945 = vrot.slane %v2144, 5
      %v2946 = vsel %vm1370, %v2944, %v2945
      %v2947 = vrot.slane %v2865, 5
      %v2948 = vrot.slane %v2947, 4
      %v2949 = vrot.slane %v2146, 5
      %v2950 = vsel %vm1370, %v2948, %v2949
      %v2951 = vrot.slane %v2949, 4
      %v2952 = vrot.slane %v2147, 5
      %v2953 = vsel %vm1370, %v2951, %v2952
      %v2954 = vrot.slane %v2866, 5
      %v2955 = vrot.slane %v2954, 4
      %v2956 = vrot.slane %v2149, 5
      %v2957 = vsel %vm1370, %v2955, %v2956
      %v2958 = vrot.slane %v2956, 4
      %v2959 = vrot.slane %v2150, 5
      %v2960 = vsel %vm1370, %v2958, %v2959
      %v2961 = vrot.slane %v2867, 5
      %v2962 = vrot.slane %v2961, 4
      %v2963 = vrot.slane %v2152, 5
      %v2964 = vsel %vm1370, %v2962, %v2963
      %v2965 = vrot.slane %v2963, 4
      %v2966 = vrot.slane %v2153, 5
      %v2967 = vsel %vm1370, %v2965, %v2966
      %v2968 = vrot.slane %v2868, 5
      %v2969 = vrot.slane %v2968, 4
      %v2970 = vrot.slane %v2155, 5
      %v2971 = vsel %vm1370, %v2969, %v2970
      %v2972 = vrot.slane %v2970, 4
      %v2973 = vrot.slane %v2156, 5
      %v2974 = vsel %vm1370, %v2972, %v2973
      %v2975 = vrot.slane %v2869, 5
      %v2976 = vrot.slane %v2975, 4
      %v2977 = vrot.slane %v2158, 5
      %v2978 = vsel %vm1370, %v2976, %v2977
      %v2979 = vrot.slane %v2977, 4
      %v2980 = vrot.slane %v2159, 5
      %v2981 = vsel %vm1370, %v2979, %v2980
      %v2982 = vrot.slane %v2870, 5
      %v2983 = vrot.slane %v2982, 4
      %v2984 = vrot.slane %v2161, 5
      %v2985 = vsel %vm1370, %v2983, %v2984
      %v2986 = vrot.slane %v2984, 4
      %v2987 = vrot.slane %v2162, 5
      %v2988 = vsel %vm1370, %v2986, %v2987
      %v2989 = vrot.slane %v2871, 5
      %v2990 = vrot.slane %v2989, 4
      %v2991 = vrot.slane %v2164, 5
      %v2992 = vsel %vm1370, %v2990, %v2991
      %v2993 = vrot.slane %v2991, 4
      %v2994 = vrot.slane %v2165, 5
      %v2995 = vsel %vm1370, %v2993, %v2994
      %v2996 = vrot.slane %v2872, 5
      %v2997 = vrot.slane %v2996, 4
      %v2998 = vrot.slane %v2167, 5
      %v2999 = vsel %vm1370, %v2997, %v2998
      %v3000 = vrot.slane %v2998, 4
      %v3001 = vrot.slane %v2168, 5
      %v3002 = vsel %vm1370, %v3000, %v3001
      %v3003 = vrot.slane %v2873, 5
      %v3004 = vrot.slane %v3003, 4
      %v3005 = vrot.slane %v2170, 5
      %v3006 = vsel %vm1370, %v3004, %v3005
      %v3007 = vrot.slane %v3005, 4
      %v3008 = vrot.slane %v2171, 5
      %v3009 = vsel %vm1370, %v3007, %v3008
      %v3010 = vrot.slane %v2874, 5
      %v3011 = vrot.slane %v3010, 4
      %v3012 = vrot.slane %v2173, 5
      %v3013 = vsel %vm1370, %v3011, %v3012
      %v3014 = vrot.slane %v3012, 4
      %v3015 = vrot.slane %v2174, 5
      %v3016 = vsel %vm1370, %v3014, %v3015
      %v3017 = vrot.slane %v2875, 5
      %v3018 = vrot.slane %v3017, 4
      %v3019 = vrot.slane %v2176, 5
      %v3020 = vsel %vm1370, %v3018, %v3019
      %v3021 = vrot.slane %v3019, 4
      %v3022 = vrot.slane %v2177, 5
      %v3023 = vsel %vm1370, %v3021, %v3022
      %v3024 = vrot.slane %v2876, 5
      %v3025 = vrot.slane %v3024, 4
      %v3026 = vrot.slane %v2179, 5
      %v3027 = vsel %vm1370, %v3025, %v3026
      %v3028 = vrot.slane %v3026, 4
      %v3029 = vrot.slane %v2180, 5
      %v3030 = vsel %vm1370, %v3028, %v3029
      %v3031 = vrot.slane %v2877, 5
      %v3032 = vrot.slane %v3031, 4
      %v3033 = vrot.slane %v2182, 5
      %v3034 = vsel %vm1370, %v3032, %v3033
      %v3035 = vrot.slane %v3033, 4
      %v3036 = vrot.slane %v2183, 5
      %v3037 = vsel %vm1370, %v3035, %v3036
      %s3038 = scalar_lea.vmem [#allocation2], 10
      %v3039 = vld [vmem:[%s3038] sm:$0x3]
      %v3040 = vunpack.c.l.b16 %v2929
      %v3041 = vunpack.c.l.b16 %v2932
      %v3042 = vunpack.c.l.b16 %v2936
      %v3043 = vunpack.c.l.b16 %v2939
      %v3044 = vunpack.c.l.b16 %v2943
      %v3045 = vunpack.c.l.b16 %v2946
      %v3046 = vunpack.c.l.b16 %v2950
      %v3047 = vunpack.c.l.b16 %v2953
      %v3048 = vunpack.c.l.b16 %v2957
      %v3049 = vunpack.c.l.b16 %v2960
      %v3050 = vunpack.c.l.b16 %v2964
      %v3051 = vunpack.c.l.b16 %v2967
      %v3052 = vunpack.c.l.b16 %v2971
      %v3053 = vunpack.c.l.b16 %v2974
      %v3054 = vunpack.c.l.b16 %v2978
      %v3055 = vunpack.c.l.b16 %v2981
      %v3056 = vunpack.c.l.b16 %v2985
      %v3057 = vunpack.c.l.b16 %v2988
      %v3058 = vunpack.c.l.b16 %v2992
      %v3059 = vunpack.c.l.b16 %v2995
      %v3060 = vunpack.c.l.b16 %v2999
      %v3061 = vunpack.c.l.b16 %v3002
      %v3062 = vunpack.c.l.b16 %v3006
      %v3063 = vunpack.c.l.b16 %v3009
      %v3064 = vunpack.c.l.b16 %v3013
      %v3065 = vunpack.c.l.b16 %v3016
      %v3066 = vunpack.c.l.b16 %v3020
      %v3067 = vunpack.c.l.b16 %v3023
      %v3068 = vunpack.c.l.b16 %v3027
      %v3069 = vunpack.c.l.b16 %v3030
      %v3070 = vunpack.c.l.b16 %v3034
      %v3071 = vunpack.c.l.b16 %v3037
      %v3072 = vpack.c.b16 %v3041, %v3040
      %v3073 = vpack.c.b16 %v3043, %v3042
      %v3074 = vpack.c.b16 %v3045, %v3044
      %v3075 = vpack.c.b16 %v3047, %v3046
      %v3076 = vpack.c.b16 %v3049, %v3048
      %v3077 = vpack.c.b16 %v3051, %v3050
      %v3078 = vpack.c.b16 %v3053, %v3052
      %v3079 = vpack.c.b16 %v3055, %v3054
      %v3080 = vpack.c.b16 %v3057, %v3056
      %v3081 = vpack.c.b16 %v3059, %v3058
      %v3082 = vpack.c.b16 %v3061, %v3060
      %v3083 = vpack.c.b16 %v3063, %v3062
      %v3084 = vpack.c.b16 %v3065, %v3064
      %v3085 = vpack.c.b16 %v3067, %v3066
      %v3086 = vpack.c.b16 %v3069, %v3068
      %v3087 = vpack.c.b16 %v3071, %v3070
      %v3089 = vsel %vm814, %v3072, 0
      %v3092 = vsel %vm814, %v3073, 0
      %v3095 = vsel %vm814, %v3074, 0
      %v3098 = vsel %vm814, %v3075, 0
      %v3101 = vsel %vm814, %v3076, 0
      %v3104 = vsel %vm814, %v3077, 0
      %v3107 = vsel %vm814, %v3078, 0
      %v3110 = vsel %vm814, %v3079, 0
      %v3113 = vsel %vm814, %v3080, 0
      %v3116 = vsel %vm814, %v3081, 0
      %v3119 = vsel %vm814, %v3082, 0
      %v3122 = vsel %vm814, %v3083, 0
      %v3125 = vsel %vm814, %v3084, 0
      %v3128 = vsel %vm814, %v3085, 0
      %v3131 = vsel %vm814, %v3086, 0
      %v3134 = vsel %vm814, %v3087, 0
      %v3137 = vsel %vm863, %v3039, 0
      %3139 = vmatprep.subr.bf16.mxu0 0
      %3140 = vmatpush1.bf16.msra.mxu0 %v3137
      %3141 = vmatprep.subr.bf16.mxu0 0
      %3142 = vmatpush1.bf16.msra.mxu0 0
      %3143 = vmatprep.subr.bf16.mxu0 0
      %3144 = vmatpush1.bf16.msra.mxu0 0
      %3145 = vmatprep.subr.bf16.mxu0 0
      %3146 = vmatpush1.bf16.msra.mxu0 0
      %3147 = vmatprep.subr.bf16.mxu0 0
      %3148 = vmatpush1.bf16.msra.mxu0 0
      %3149 = vmatprep.subr.bf16.mxu0 0
      %3150 = vmatpush1.bf16.msra.mxu0 0
      %3151 = vmatprep.subr.bf16.mxu0 0
      %3152 = vmatpush1.bf16.msra.mxu0 0
      %3153 = vmatprep.subr.bf16.mxu0 0
      %3154 = vmatpush1.bf16.msra.mxu0 0
      %3155 = vmatprep.subr.bf16.mxu0 0
      %3156 = vmatpush1.bf16.msra.mxu0 0
      %3157 = vmatprep.subr.bf16.mxu0 0
      %3158 = vmatpush1.bf16.msra.mxu0 0
      %3159 = vmatprep.subr.bf16.mxu0 0
      %3160 = vmatpush1.bf16.msra.mxu0 0
      %3161 = vmatprep.subr.bf16.mxu0 0
      %3162 = vmatpush1.bf16.msra.mxu0 0
      %3163 = vmatprep.subr.bf16.mxu0 0
      %3164 = vmatpush1.bf16.msra.mxu0 0
      %3165 = vmatprep.subr.bf16.mxu0 0
      %3166 = vmatpush1.bf16.msra.mxu0 0
      %3167 = vmatprep.subr.bf16.mxu0 0
      %3168 = vmatpush1.bf16.msra.mxu0 0
      %3169 = vmatprep.subr.bf16.mxu0 0
      %3170 = vmatpush1.bf16.msra.mxu0 0
      %3171 = vmatprep.mubr.bf16.mxu0 0
      %3172 = vmatmul.mubr.bf16.gmra.mrb[0].mxu0 %v3089
      %v3173 = vpop.f32.mrb[0].mxu0
      %v3174 = vadd.f32 0.0, %v3173
      %v3175 = vpop.f32.mrb[0].mxu0
      %v3176 = vpop.f32.mrb[0].mxu0
      %v3177 = vadd.f32 0.0, %v3176
      %v3178 = vpop.f32.mrb[0].mxu0
      %3179 = vmatprep.mubr.bf16.mxu0 0
      %3180 = vmatmul.mubr.bf16.gmra.mrb[0].mxu0 %v3092
      %v3181 = vpop.f32.mrb[0].mxu0
      %v3182 = vadd.f32 0.0, %v3181
      %v3183 = vpop.f32.mrb[0].mxu0
      %v3184 = vpop.f32.mrb[0].mxu0
      %v3185 = vadd.f32 0.0, %v3184
      %v3186 = vpop.f32.mrb[0].mxu0
      %3187 = vmatprep.mubr.bf16.mxu0 0
      %3188 = vmatmul.mubr.bf16.gmra.mrb[0].mxu0 %v3095
      %v3189 = vpop.f32.mrb[0].mxu0
      %v3190 = vadd.f32 0.0, %v3189
      %v3191 = vpop.f32.mrb[0].mxu0
      %v3192 = vpop.f32.mrb[0].mxu0
      %v3193 = vadd.f32 0.0, %v3192
      %v3194 = vpop.f32.mrb[0].mxu0
      %3195 = vmatprep.mubr.bf16.mxu0 0
      %3196 = vmatmul.mubr.bf16.gmra.mrb[0].mxu0 %v3098
      %v3197 = vpop.f32.mrb[0].mxu0
      %v3198 = vadd.f32 0.0, %v3197
      %v3199 = vpop.f32.mrb[0].mxu0
      %v3200 = vpop.f32.mrb[0].mxu0
      %v3201 = vadd.f32 0.0, %v3200
      %v3202 = vpop.f32.mrb[0].mxu0
      %3203 = vmatprep.mubr.bf16.mxu0 0
      %3204 = vmatmul.mubr.bf16.gmra.mrb[0].mxu0 %v3101
      %v3205 = vpop.f32.mrb[0].mxu0
      %v3206 = vadd.f32 0.0, %v3205
      %v3207 = vpop.f32.mrb[0].mxu0
      %v3208 = vpop.f32.mrb[0].mxu0
      %v3209 = vadd.f32 0.0, %v3208
      %v3210 = vpop.f32.mrb[0].mxu0
      %3211 = vmatprep.mubr.bf16.mxu0 0
      %3212 = vmatmul.mubr.bf16.gmra.mrb[0].mxu0 %v3104
      %v3213 = vpop.f32.mrb[0].mxu0
      %v3214 = vadd.f32 0.0, %v3213
      %v3215 = vpop.f32.mrb[0].mxu0
      %v3216 = vpop.f32.mrb[0].mxu0
      %v3217 = vadd.f32 0.0, %v3216
      %v3218 = vpop.f32.mrb[0].mxu0
      %3219 = vmatprep.mubr.bf16.mxu0 0
      %3220 = vmatmul.mubr.bf16.gmra.mrb[0].mxu0 %v3107
      %v3221 = vpop.f32.mrb[0].mxu0
      %v3222 = vadd.f32 0.0, %v3221
      %v3223 = vpop.f32.mrb[0].mxu0
      %v3224 = vpop.f32.mrb[0].mxu0
      %v3225 = vadd.f32 0.0, %v3224
      %v3226 = vpop.f32.mrb[0].mxu0
      %3227 = vmatprep.mubr.bf16.mxu0 0
      %3228 = vmatmul.mubr.bf16.gmra.mrb[0].mxu0 %v3110
      %v3229 = vpop.f32.mrb[0].mxu0
      %v3230 = vadd.f32 0.0, %v3229
      %v3231 = vpop.f32.mrb[0].mxu0
      %v3232 = vpop.f32.mrb[0].mxu0
      %v3233 = vadd.f32 0.0, %v3232
      %v3234 = vpop.f32.mrb[0].mxu0
      %3235 = vmatprep.mubr.bf16.mxu0 0
      %3236 = vmatmul.mubr.bf16.gmra.mrb[0].mxu0 %v3113
      %v3237 = vpop.f32.mrb[0].mxu0
      %v3238 = vadd.f32 0.0, %v3237
      %v3239 = vpop.f32.mrb[0].mxu0
      %v3240 = vpop.f32.mrb[0].mxu0
      %v3241 = vadd.f32 0.0, %v3240
      %v3242 = vpop.f32.mrb[0].mxu0
      %3243 = vmatprep.mubr.bf16.mxu0 0
      %3244 = vmatmul.mubr.bf16.gmra.mrb[0].mxu0 %v3116
      %v3245 = vpop.f32.mrb[0].mxu0
      %v3246 = vadd.f32 0.0, %v3245
      %v3247 = vpop.f32.mrb[0].mxu0
      %v3248 = vpop.f32.mrb[0].mxu0
      %v3249 = vadd.f32 0.0, %v3248
      %v3250 = vpop.f32.mrb[0].mxu0
      %3251 = vmatprep.mubr.bf16.mxu0 0
      %3252 = vmatmul.mubr.bf16.gmra.mrb[0].mxu0 %v3119
      %v3253 = vpop.f32.mrb[0].mxu0
      %v3254 = vadd.f32 0.0, %v3253
      %v3255 = vpop.f32.mrb[0].mxu0
      %v3256 = vpop.f32.mrb[0].mxu0
      %v3257 = vadd.f32 0.0, %v3256
      %v3258 = vpop.f32.mrb[0].mxu0
      %3259 = vmatprep.mubr.bf16.mxu0 0
      %3260 = vmatmul.mubr.bf16.gmra.mrb[0].mxu0 %v3122
      %v3261 = vpop.f32.mrb[0].mxu0
      %v3262 = vadd.f32 0.0, %v3261
      %v3263 = vpop.f32.mrb[0].mxu0
      %v3264 = vpop.f32.mrb[0].mxu0
      %v3265 = vadd.f32 0.0, %v3264
      %v3266 = vpop.f32.mrb[0].mxu0
      %3267 = vmatprep.mubr.bf16.mxu0 0
      %3268 = vmatmul.mubr.bf16.gmra.mrb[0].mxu0 %v3125
      %v3269 = vpop.f32.mrb[0].mxu0
      %v3270 = vadd.f32 0.0, %v3269
      %v3271 = vpop.f32.mrb[0].mxu0
      %v3272 = vpop.f32.mrb[0].mxu0
      %v3273 = vadd.f32 0.0, %v3272
      %v3274 = vpop.f32.mrb[0].mxu0
      %3275 = vmatprep.mubr.bf16.mxu0 0
      %3276 = vmatmul.mubr.bf16.gmra.mrb[0].mxu0 %v3128
      %v3277 = vpop.f32.mrb[0].mxu0
      %v3278 = vadd.f32 0.0, %v3277
      %v3279 = vpop.f32.mrb[0].mxu0
      %v3280 = vpop.f32.mrb[0].mxu0
      %v3281 = vadd.f32 0.0, %v3280
      %v3282 = vpop.f32.mrb[0].mxu0
      %3283 = vmatprep.mubr.bf16.mxu0 0
      %3284 = vmatmul.mubr.bf16.gmra.mrb[0].mxu0 %v3131
      %v3285 = vpop.f32.mrb[0].mxu0
      %v3286 = vadd.f32 0.0, %v3285
      %v3287 = vpop.f32.mrb[0].mxu0
      %v3288 = vpop.f32.mrb[0].mxu0
      %v3289 = vadd.f32 0.0, %v3288
      %v3290 = vpop.f32.mrb[0].mxu0
      %3291 = vmatprep.mubr.bf16.mxu0 0
      %3292 = vmatmul.mubr.bf16.gmra.mrb[0].mxu0 %v3134
      %v3293 = vpop.f32.mrb[0].mxu0
      %v3294 = vadd.f32 0.0, %v3293
      %v3295 = vpop.f32.mrb[0].mxu0
      %v3296 = vpop.f32.mrb[0].mxu0
      %v3297 = vadd.f32 0.0, %v3296
      %v3298 = vpop.f32.mrb[0].mxu0
      %3299 = vdwg.mxu0
      %v3300 = vadd.f32 %v2830, %v3174
      %v3301 = vadd.f32 %v2831, %v3177
      %v3302 = vadd.f32 %v2832, %v3182
      %v3303 = vadd.f32 %v2833, %v3185
      %v3304 = vadd.f32 %v2834, %v3190
      %v3305 = vadd.f32 %v2835, %v3193
      %v3306 = vadd.f32 %v2836, %v3198
      %v3307 = vadd.f32 %v2837, %v3201
      %v3308 = vadd.f32 %v2838, %v3206
      %v3309 = vadd.f32 %v2839, %v3209
      %v3310 = vadd.f32 %v2840, %v3214
      %v3311 = vadd.f32 %v2841, %v3217
      %v3312 = vadd.f32 %v2842, %v3222
      %v3313 = vadd.f32 %v2843, %v3225
      %v3314 = vadd.f32 %v2844, %v3230
      %v3315 = vadd.f32 %v2845, %v3233
      %v3316 = vadd.f32 %v2846, %v3238
      %v3317 = vadd.f32 %v2847, %v3241
      %v3318 = vadd.f32 %v2848, %v3246
      %v3319 = vadd.f32 %v2849, %v3249
      %v3320 = vadd.f32 %v2850, %v3254
      %v3321 = vadd.f32 %v2851, %v3257
      %v3322 = vadd.f32 %v2852, %v3262
      %v3323 = vadd.f32 %v2853, %v3265
      %v3324 = vadd.f32 %v2854, %v3270
      %v3325 = vadd.f32 %v2855, %v3273
      %v3326 = vadd.f32 %v2856, %v3278
      %v3327 = vadd.f32 %v2857, %v3281
      %v3328 = vadd.f32 %v2858, %v3286
      %v3329 = vadd.f32 %v2859, %v3289
      %v3330 = vadd.f32 %v2860, %v3294
      %v3331 = vadd.f32 %v2861, %v3297
      %s3332 = scalar_lea.vmem %s215, 24
      %v3333 = vld [vmem:[%s3332] sm:$0xf]
      %v3334 = vld [vmem:[%s3332 + $0x4] sm:$0xf]
      %v3335 = vld [vmem:[%s3332 + $0xc] sm:$0xf]
      %v3336 = vld [vmem:[%s3332 + $0x10] sm:$0xf]
      %v3337 = vld [vmem:[%s3332 + $0x18] sm:$0xf]
      %v3338 = vld [vmem:[%s3332 + $0x1c] sm:$0xf]
      %v3339 = vld [vmem:[%s3332 + $0x24] sm:$0xf]
      %v3340 = vld [vmem:[%s3332 + $0x28] sm:$0xf]
      %v3341 = vld [vmem:[%s3332 + $0x30] sm:$0xf]
      %v3342 = vld [vmem:[%s3332 + $0x34] sm:$0xf]
      %v3343 = vld [vmem:[%s3332 + $0x3c] sm:$0xf]
      %v3344 = vld [vmem:[%s3332 + $0x40] sm:$0xf]
      %v3345 = vld [vmem:[%s3332 + $0x48] sm:$0xf]
      %v3346 = vld [vmem:[%s3332 + $0x4c] sm:$0xf]
      %v3347 = vld [vmem:[%s3332 + $0x54] sm:$0xf]
      %v3348 = vld [vmem:[%s3332 + $0x58] sm:$0xf]
      %v3349 = vld [vmem:[%s3332 + $0x60] sm:$0xf]
      %v3350 = vld [vmem:[%s3332 + $0x64] sm:$0xf]
      %v3351 = vld [vmem:[%s3332 + $0x6c] sm:$0xf]
      %v3352 = vld [vmem:[%s3332 + $0x70] sm:$0xf]
      %v3353 = vld [vmem:[%s3332 + $0x78] sm:$0xf]
      %v3354 = vld [vmem:[%s3332 + $0x7c] sm:$0xf]
      %v3355 = vld [vmem:[%s3332 + $0x84] sm:$0xf]
      %v3356 = vld [vmem:[%s3332 + $0x88] sm:$0xf]
      %v3357 = vld [vmem:[%s3332 + $0x90] sm:$0xf]
      %v3358 = vld [vmem:[%s3332 + $0x94] sm:$0xf]
      %v3359 = vld [vmem:[%s3332 + $0x9c] sm:$0xf]
      %v3360 = vld [vmem:[%s3332 + $0xa0] sm:$0xf]
      %v3361 = vld [vmem:[%s3332 + $0xa8] sm:$0xf]
      %v3362 = vld [vmem:[%s3332 + $0xac] sm:$0xf]
      %v3363 = vld [vmem:[%s3332 + $0xb4] sm:$0xf]
      %v3364 = vld [vmem:[%s3332 + $0xb8] sm:$0xf]
      %s3365 = scalar_lea.vmem [#allocation2], 12
      %v3366 = vld [vmem:[%s3365] sm:$0x3]
      %v3399 = vunpack.c.l.b16 %v3333
      %v3400 = vunpack.c.l.b16 %v3334
      %v3401 = vunpack.c.l.b16 %v3335
      %v3402 = vunpack.c.l.b16 %v3336
      %v3403 = vunpack.c.l.b16 %v3337
      %v3404 = vunpack.c.l.b16 %v3338
      %v3405 = vunpack.c.l.b16 %v3339
      %v3406 = vunpack.c.l.b16 %v3340
      %v3407 = vunpack.c.l.b16 %v3341
      %v3408 = vunpack.c.l.b16 %v3342
      %v3409 = vunpack.c.l.b16 %v3343
      %v3410 = vunpack.c.l.b16 %v3344
      %v3411 = vunpack.c.l.b16 %v3345
      %v3412 = vunpack.c.l.b16 %v3346
      %v3413 = vunpack.c.l.b16 %v3347
      %v3414 = vunpack.c.l.b16 %v3348
      %v3415 = vunpack.c.l.b16 %v3349
      %v3416 = vunpack.c.l.b16 %v3350
      %v3417 = vunpack.c.l.b16 %v3351
      %v3418 = vunpack.c.l.b16 %v3352
      %v3419 = vunpack.c.l.b16 %v3353
      %v3420 = vunpack.c.l.b16 %v3354
      %v3421 = vunpack.c.l.b16 %v3355
      %v3422 = vunpack.c.l.b16 %v3356
      %v3423 = vunpack.c.l.b16 %v3357
      %v3424 = vunpack.c.l.b16 %v3358
      %v3425 = vunpack.c.l.b16 %v3359
      %v3426 = vunpack.c.l.b16 %v3360
      %v3427 = vunpack.c.l.b16 %v3361
      %v3428 = vunpack.c.l.b16 %v3362
      %v3429 = vunpack.c.l.b16 %v3363
      %v3430 = vunpack.c.l.b16 %v3364
      %v3431 = vpack.c.b16 %v3400, %v3399
      %v3432 = vpack.c.b16 %v3402, %v3401
      %v3433 = vpack.c.b16 %v3404, %v3403
      %v3434 = vpack.c.b16 %v3406, %v3405
      %v3435 = vpack.c.b16 %v3408, %v3407
      %v3436 = vpack.c.b16 %v3410, %v3409
      %v3437 = vpack.c.b16 %v3412, %v3411
      %v3438 = vpack.c.b16 %v3414, %v3413
      %v3439 = vpack.c.b16 %v3416, %v3415
      %v3440 = vpack.c.b16 %v3418, %v3417
      %v3441 = vpack.c.b16 %v3420, %v3419
      %v3442 = vpack.c.b16 %v3422, %v3421
      %v3443 = vpack.c.b16 %v3424, %v3423
      %v3444 = vpack.c.b16 %v3426, %v3425
      %v3445 = vpack.c.b16 %v3428, %v3427
      %v3446 = vpack.c.b16 %v3430, %v3429
      %v3448 = vsel %vm814, %v3431, 0
      %v3451 = vsel %vm814, %v3432, 0
      %v3454 = vsel %vm814, %v3433, 0
      %v3457 = vsel %vm814, %v3434, 0
      %v3460 = vsel %vm814, %v3435, 0
      %v3463 = vsel %vm814, %v3436, 0
      %v3466 = vsel %vm814, %v3437, 0
      %v3469 = vsel %vm814, %v3438, 0
      %v3472 = vsel %vm814, %v3439, 0
      %v3475 = vsel %vm814, %v3440, 0
      %v3478 = vsel %vm814, %v3441, 0
      %v3481 = vsel %vm814, %v3442, 0
      %v3484 = vsel %vm814, %v3443, 0
      %v3487 = vsel %vm814, %v3444, 0
      %v3490 = vsel %vm814, %v3445, 0
      %v3493 = vsel %vm814, %v3446, 0
      %v3496 = vsel %vm863, %v3366, 0
      %3498 = vmatprep.subr.bf16.mxu0 0
      %3499 = vmatpush1.bf16.msra.mxu0 %v3496
      %3500 = vmatprep.subr.bf16.mxu0 0
      %3501 = vmatpush1.bf16.msra.mxu0 0
      %3502 = vmatprep.subr.bf16.mxu0 0
      %3503 = vmatpush1.bf16.msra.mxu0 0
      %3504 = vmatprep.subr.bf16.mxu0 0
      %3505 = vmatpush1.bf16.msra.mxu0 0
      %3506 = vmatprep.subr.bf16.mxu0 0
      %3507 = vmatpush1.bf16.msra.mxu0 0
      %3508 = vmatprep.subr.bf16.mxu0 0
      %3509 = vmatpush1.bf16.msra.mxu0 0
      %3510 = vmatprep.subr.bf16.mxu0 0
      %3511 = vmatpush1.bf16.msra.mxu0 0
      %3512 = vmatprep.subr.bf16.mxu0 0
      %3513 = vmatpush1.bf16.msra.mxu0 0
      %3514 = vmatprep.subr.bf16.mxu0 0
      %3515 = vmatpush1.bf16.msra.mxu0 0
      %3516 = vmatprep.subr.bf16.mxu0 0
      %3517 = vmatpush1.bf16.msra.mxu0 0
      %3518 = vmatprep.subr.bf16.mxu0 0
      %3519 = vmatpush1.bf16.msra.mxu0 0
      %3520 = vmatprep.subr.bf16.mxu0 0
      %3521 = vmatpush1.bf16.msra.mxu0 0
      %3522 = vmatprep.subr.bf16.mxu0 0
      %3523 = vmatpush1.bf16.msra.mxu0 0
      %3524 = vmatprep.subr.bf16.mxu0 0
      %3525 = vmatpush1.bf16.msra.mxu0 0
      %3526 = vmatprep.subr.bf16.mxu0 0
      %3527 = vmatpush1.bf16.msra.mxu0 0
      %3528 = vmatprep.subr.bf16.mxu0 0
      %3529 = vmatpush1.bf16.msra.mxu0 0
      %3530 = vmatprep.mubr.bf16.mxu0 0
      %3531 = vmatmul.mubr.bf16.gmra.mrb[0].mxu0 %v3448
      %v3532 = vpop.f32.mrb[0].mxu0
      %v3533 = vadd.f32 0.0, %v3532
      %v3534 = vpop.f32.mrb[0].mxu0
      %v3535 = vpop.f32.mrb[0].mxu0
      %v3536 = vadd.f32 0.0, %v3535
      %v3537 = vpop.f32.mrb[0].mxu0
      %3538 = vmatprep.mubr.bf16.mxu0 0
      %3539 = vmatmul.mubr.bf16.gmra.mrb[0].mxu0 %v3451
      %v3540 = vpop.f32.mrb[0].mxu0
      %v3541 = vadd.f32 0.0, %v3540
      %v3542 = vpop.f32.mrb[0].mxu0
      %v3543 = vpop.f32.mrb[0].mxu0
      %v3544 = vadd.f32 0.0, %v3543
      %v3545 = vpop.f32.mrb[0].mxu0
      %3546 = vmatprep.mubr.bf16.mxu0 0
      %3547 = vmatmul.mubr.bf16.gmra.mrb[0].mxu0 %v3454
      %v3548 = vpop.f32.mrb[0].mxu0
      %v3549 = vadd.f32 0.0, %v3548
      %v3550 = vpop.f32.mrb[0].mxu0
      %v3551 = vpop.f32.mrb[0].mxu0
      %v3552 = vadd.f32 0.0, %v3551
      %v3553 = vpop.f32.mrb[0].mxu0
      %3554 = vmatprep.mubr.bf16.mxu0 0
      %3555 = vmatmul.mubr.bf16.gmra.mrb[0].mxu0 %v3457
      %v3556 = vpop.f32.mrb[0].mxu0
      %v3557 = vadd.f32 0.0, %v3556
      %v3558 = vpop.f32.mrb[0].mxu0
      %v3559 = vpop.f32.mrb[0].mxu0
      %v3560 = vadd.f32 0.0, %v3559
      %v3561 = vpop.f32.mrb[0].mxu0
      %3562 = vmatprep.mubr.bf16.mxu0 0
      %3563 = vmatmul.mubr.bf16.gmra.mrb[0].mxu0 %v3460
      %v3564 = vpop.f32.mrb[0].mxu0
      %v3565 = vadd.f32 0.0, %v3564
      %v3566 = vpop.f32.mrb[0].mxu0
      %v3567 = vpop.f32.mrb[0].mxu0
      %v3568 = vadd.f32 0.0, %v3567
      %v3569 = vpop.f32.mrb[0].mxu0
      %3570 = vmatprep.mubr.bf16.mxu0 0
      %3571 = vmatmul.mubr.bf16.gmra.mrb[0].mxu0 %v3463
      %v3572 = vpop.f32.mrb[0].mxu0
      %v3573 = vadd.f32 0.0, %v3572
      %v3574 = vpop.f32.mrb[0].mxu0
      %v3575 = vpop.f32.mrb[0].mxu0
      %v3576 = vadd.f32 0.0, %v3575
      %v3577 = vpop.f32.mrb[0].mxu0
      %3578 = vmatprep.mubr.bf16.mxu0 0
      %3579 = vmatmul.mubr.bf16.gmra.mrb[0].mxu0 %v3466
      %v3580 = vpop.f32.mrb[0].mxu0
      %v3581 = vadd.f32 0.0, %v3580
      %v3582 = vpop.f32.mrb[0].mxu0
      %v3583 = vpop.f32.mrb[0].mxu0
      %v3584 = vadd.f32 0.0, %v3583
      %v3585 = vpop.f32.mrb[0].mxu0
      %3586 = vmatprep.mubr.bf16.mxu0 0
      %3587 = vmatmul.mubr.bf16.gmra.mrb[0].mxu0 %v3469
      %v3588 = vpop.f32.mrb[0].mxu0
      %v3589 = vadd.f32 0.0, %v3588
      %v3590 = vpop.f32.mrb[0].mxu0
      %v3591 = vpop.f32.mrb[0].mxu0
      %v3592 = vadd.f32 0.0, %v3591
      %v3593 = vpop.f32.mrb[0].mxu0
      %3594 = vmatprep.mubr.bf16.mxu0 0
      %3595 = vmatmul.mubr.bf16.gmra.mrb[0].mxu0 %v3472
      %v3596 = vpop.f32.mrb[0].mxu0
      %v3597 = vadd.f32 0.0, %v3596
      %v3598 = vpop.f32.mrb[0].mxu0
      %v3599 = vpop.f32.mrb[0].mxu0
      %v3600 = vadd.f32 0.0, %v3599
      %v3601 = vpop.f32.mrb[0].mxu0
      %3602 = vmatprep.mubr.bf16.mxu0 0
      %3603 = vmatmul.mubr.bf16.gmra.mrb[0].mxu0 %v3475
      %v3604 = vpop.f32.mrb[0].mxu0
      %v3605 = vadd.f32 0.0, %v3604
      %v3606 = vpop.f32.mrb[0].mxu0
      %v3607 = vpop.f32.mrb[0].mxu0
      %v3608 = vadd.f32 0.0, %v3607
      %v3609 = vpop.f32.mrb[0].mxu0
      %3610 = vmatprep.mubr.bf16.mxu0 0
      %3611 = vmatmul.mubr.bf16.gmra.mrb[0].mxu0 %v3478
      %v3612 = vpop.f32.mrb[0].mxu0
      %v3613 = vadd.f32 0.0, %v3612
      %v3614 = vpop.f32.mrb[0].mxu0
      %v3615 = vpop.f32.mrb[0].mxu0
      %v3616 = vadd.f32 0.0, %v3615
      %v3617 = vpop.f32.mrb[0].mxu0
      %3618 = vmatprep.mubr.bf16.mxu0 0
      %3619 = vmatmul.mubr.bf16.gmra.mrb[0].mxu0 %v3481
      %v3620 = vpop.f32.mrb[0].mxu0
      %v3621 = vadd.f32 0.0, %v3620
      %v3622 = vpop.f32.mrb[0].mxu0
      %v3623 = vpop.f32.mrb[0].mxu0
      %v3624 = vadd.f32 0.0, %v3623
      %v3625 = vpop.f32.mrb[0].mxu0
      %3626 = vmatprep.mubr.bf16.mxu0 0
      %3627 = vmatmul.mubr.bf16.gmra.mrb[0].mxu0 %v3484
      %v3628 = vpop.f32.mrb[0].mxu0
      %v3629 = vadd.f32 0.0, %v3628
      %v3630 = vpop.f32.mrb[0].mxu0
      %v3631 = vpop.f32.mrb[0].mxu0
      %v3632 = vadd.f32 0.0, %v3631
      %v3633 = vpop.f32.mrb[0].mxu0
      %3634 = vmatprep.mubr.bf16.mxu0 0
      %3635 = vmatmul.mubr.bf16.gmra.mrb[0].mxu0 %v3487
      %v3636 = vpop.f32.mrb[0].mxu0
      %v3637 = vadd.f32 0.0, %v3636
      %v3638 = vpop.f32.mrb[0].mxu0
      %v3639 = vpop.f32.mrb[0].mxu0
      %v3640 = vadd.f32 0.0, %v3639
      %v3641 = vpop.f32.mrb[0].mxu0
      %3642 = vmatprep.mubr.bf16.mxu0 0
      %3643 = vmatmul.mubr.bf16.gmra.mrb[0].mxu0 %v3490
      %v3644 = vpop.f32.mrb[0].mxu0
      %v3645 = vadd.f32 0.0, %v3644
      %v3646 = vpop.f32.mrb[0].mxu0
      %v3647 = vpop.f32.mrb[0].mxu0
      %v3648 = vadd.f32 0.0, %v3647
      %v3649 = vpop.f32.mrb[0].mxu0
      %3650 = vmatprep.mubr.bf16.mxu0 0
      %3651 = vmatmul.mubr.bf16.gmra.mrb[0].mxu0 %v3493
      %v3652 = vpop.f32.mrb[0].mxu0
      %v3653 = vadd.f32 0.0, %v3652
      %v3654 = vpop.f32.mrb[0].mxu0
      %v3655 = vpop.f32.mrb[0].mxu0
      %v3656 = vadd.f32 0.0, %v3655
      %v3657 = vpop.f32.mrb[0].mxu0
      %3658 = vdwg.mxu0
      %v3659 = vadd.f32 %v3300, %v3533
      %v3660 = vadd.f32 %v3301, %v3536
      %v3661 = vadd.f32 %v3302, %v3541
      %v3662 = vadd.f32 %v3303, %v3544
      %v3663 = vadd.f32 %v3304, %v3549
      %v3664 = vadd.f32 %v3305, %v3552
      %v3665 = vadd.f32 %v3306, %v3557
      %v3666 = vadd.f32 %v3307, %v3560
      %v3667 = vadd.f32 %v3308, %v3565
      %v3668 = vadd.f32 %v3309, %v3568
      %v3669 = vadd.f32 %v3310, %v3573
      %v3670 = vadd.f32 %v3311, %v3576
      %v3671 = vadd.f32 %v3312, %v3581
      %v3672 = vadd.f32 %v3313, %v3584
      %v3673 = vadd.f32 %v3314, %v3589
      %v3674 = vadd.f32 %v3315, %v3592
      %v3675 = vadd.f32 %v3316, %v3597
      %v3676 = vadd.f32 %v3317, %v3600
      %v3677 = vadd.f32 %v3318, %v3605
      %v3678 = vadd.f32 %v3319, %v3608
      %v3679 = vadd.f32 %v3320, %v3613
      %v3680 = vadd.f32 %v3321, %v3616
      %v3681 = vadd.f32 %v3322, %v3621
      %v3682 = vadd.f32 %v3323, %v3624
      %v3683 = vadd.f32 %v3324, %v3629
      %v3684 = vadd.f32 %v3325, %v3632
      %v3685 = vadd.f32 %v3326, %v3637
      %v3686 = vadd.f32 %v3327, %v3640
      %v3687 = vadd.f32 %v3328, %v3645
      %v3688 = vadd.f32 %v3329, %v3648
      %v3689 = vadd.f32 %v3330, %v3653
      %v3690 = vadd.f32 %v3331, %v3656
      %v3691 = vld [vmem:[%s3332] sm:$0xf]
      %v3692 = vld [vmem:[%s3332 + $0x4] sm:$0xf]
      %v3693 = vld [vmem:[%s3332 + $0x8] sm:$0x1]
      %v3694 = vld [vmem:[%s3332 + $0xc] sm:$0xf]
      %v3695 = vld [vmem:[%s3332 + $0x10] sm:$0xf]
      %v3696 = vld [vmem:[%s3332 + $0x14] sm:$0x1]
      %v3697 = vld [vmem:[%s3332 + $0x18] sm:$0xf]
      %v3698 = vld [vmem:[%s3332 + $0x1c] sm:$0xf]
      %v3699 = vld [vmem:[%s3332 + $0x20] sm:$0x1]
      %v3700 = vld [vmem:[%s3332 + $0x24] sm:$0xf]
      %v3701 = vld [vmem:[%s3332 + $0x28] sm:$0xf]
      %v3702 = vld [vmem:[%s3332 + $0x2c] sm:$0x1]
      %v3703 = vld [vmem:[%s3332 + $0x30] sm:$0xf]
      %v3704 = vld [vmem:[%s3332 + $0x34] sm:$0xf]
      %v3705 = vld [vmem:[%s3332 + $0x38] sm:$0x1]
      %v3706 = vld [vmem:[%s3332 + $0x3c] sm:$0xf]
      %v3707 = vld [vmem:[%s3332 + $0x40] sm:$0xf]
      %v3708 = vld [vmem:[%s3332 + $0x44] sm:$0x1]
      %v3709 = vld [vmem:[%s3332 + $0x48] sm:$0xf]
      %v3710 = vld [vmem:[%s3332 + $0x4c] sm:$0xf]
      %v3711 = vld [vmem:[%s3332 + $0x50] sm:$0x1]
      %v3712 = vld [vmem:[%s3332 + $0x54] sm:$0xf]
      %v3713 = vld [vmem:[%s3332 + $0x58] sm:$0xf]
      %v3714 = vld [vmem:[%s3332 + $0x5c] sm:$0x1]
      %v3715 = vld [vmem:[%s3332 + $0x60] sm:$0xf]
      %v3716 = vld [vmem:[%s3332 + $0x64] sm:$0xf]
      %v3717 = vld [vmem:[%s3332 + $0x68] sm:$0x1]
      %v3718 = vld [vmem:[%s3332 + $0x6c] sm:$0xf]
      %v3719 = vld [vmem:[%s3332 + $0x70] sm:$0xf]
      %v3720 = vld [vmem:[%s3332 + $0x74] sm:$0x1]
      %v3721 = vld [vmem:[%s3332 + $0x78] sm:$0xf]
      %v3722 = vld [vmem:[%s3332 + $0x7c] sm:$0xf]
      %v3723 = vld [vmem:[%s3332 + $0x80] sm:$0x1]
      %v3724 = vld [vmem:[%s3332 + $0x84] sm:$0xf]
      %v3725 = vld [vmem:[%s3332 + $0x88] sm:$0xf]
      %v3726 = vld [vmem:[%s3332 + $0x8c] sm:$0x1]
      %v3727 = vld [vmem:[%s3332 + $0x90] sm:$0xf]
      %v3728 = vld [vmem:[%s3332 + $0x94] sm:$0xf]
      %v3729 = vld [vmem:[%s3332 + $0x98] sm:$0x1]
      %v3730 = vld [vmem:[%s3332 + $0x9c] sm:$0xf]
      %v3731 = vld [vmem:[%s3332 + $0xa0] sm:$0xf]
      %v3732 = vld [vmem:[%s3332 + $0xa4] sm:$0x1]
      %v3733 = vld [vmem:[%s3332 + $0xa8] sm:$0xf]
      %v3734 = vld [vmem:[%s3332 + $0xac] sm:$0xf]
      %v3735 = vld [vmem:[%s3332 + $0xb0] sm:$0x1]
      %v3736 = vld [vmem:[%s3332 + $0xb4] sm:$0xf]
      %v3737 = vld [vmem:[%s3332 + $0xb8] sm:$0xf]
      %v3738 = vld [vmem:[%s3332 + $0xbc] sm:$0x1]
      %v3740 = vshrl.u32 %v3691, 16
      %v3742 = vrot.slane %v3740, 4
      %v3743 = vshll.u32 %v3691, 16
      %v3745 = vrot.slane %v3743, 5
      %v3746 = vor.u32 %v3742, %v3745
      %v3747 = vrot.slane %v3746, 4
      %v3749 = vshll.u32 %v3692, 16
      %v3751 = vrot.slane %v3749, 5
      %v3752 = vsel %vm379, %v3747, %v3751
      %v3753 = vshrl.u32 %v3692, 16
      %v3755 = vrot.slane %v3753, 4
      %v3756 = vor.u32 %v3755, %v3751
      %v3757 = vrot.slane %v3756, 4
      %v3759 = vshll.u32 %v3693, 16
      %v3761 = vrot.slane %v3759, 5
      %v3762 = vsel %vm379, %v3757, %v3761
      %v3764 = vshrl.u32 %v3694, 16
      %v3766 = vrot.slane %v3764, 4
      %v3767 = vshll.u32 %v3694, 16
      %v3769 = vrot.slane %v3767, 5
      %v3770 = vor.u32 %v3766, %v3769
      %v3771 = vrot.slane %v3770, 4
      %v3773 = vshll.u32 %v3695, 16
      %v3775 = vrot.slane %v3773, 5
      %v3776 = vsel %vm379, %v3771, %v3775
      %v3777 = vshrl.u32 %v3695, 16
      %v3779 = vrot.slane %v3777, 4
      %v3780 = vor.u32 %v3779, %v3775
      %v3781 = vrot.slane %v3780, 4
      %v3783 = vshll.u32 %v3696, 16
      %v3785 = vrot.slane %v3783, 5
      %v3786 = vsel %vm379, %v3781, %v3785
      %v3788 = vshrl.u32 %v3697, 16
      %v3790 = vrot.slane %v3788, 4
      %v3791 = vshll.u32 %v3697, 16
      %v3793 = vrot.slane %v3791, 5
      %v3794 = vor.u32 %v3790, %v3793
      %v3795 = vrot.slane %v3794, 4
      %v3797 = vshll.u32 %v3698, 16
      %v3799 = vrot.slane %v3797, 5
      %v3800 = vsel %vm379, %v3795, %v3799
      %v3801 = vshrl.u32 %v3698, 16
      %v3803 = vrot.slane %v3801, 4
      %v3804 = vor.u32 %v3803, %v3799
      %v3805 = vrot.slane %v3804, 4
      %v3807 = vshll.u32 %v3699, 16
      %v3809 = vrot.slane %v3807, 5
      %v3810 = vsel %vm379, %v3805, %v3809
      %v3812 = vshrl.u32 %v3700, 16
      %v3814 = vrot.slane %v3812, 4
      %v3815 = vshll.u32 %v3700, 16
      %v3817 = vrot.slane %v3815, 5
      %v3818 = vor.u32 %v3814, %v3817
      %v3819 = vrot.slane %v3818, 4
      %v3821 = vshll.u32 %v3701, 16
      %v3823 = vrot.slane %v3821, 5
      %v3824 = vsel %vm379, %v3819, %v3823
      %v3825 = vshrl.u32 %v3701, 16
      %v3827 = vrot.slane %v3825, 4
      %v3828 = vor.u32 %v3827, %v3823
      %v3829 = vrot.slane %v3828, 4
      %v3831 = vshll.u32 %v3702, 16
      %v3833 = vrot.slane %v3831, 5
      %v3834 = vsel %vm379, %v3829, %v3833
      %v3836 = vshrl.u32 %v3703, 16
      %v3838 = vrot.slane %v3836, 4
      %v3839 = vshll.u32 %v3703, 16
      %v3841 = vrot.slane %v3839, 5
      %v3842 = vor.u32 %v3838, %v3841
      %v3843 = vrot.slane %v3842, 4
      %v3845 = vshll.u32 %v3704, 16
      %v3847 = vrot.slane %v3845, 5
      %v3848 = vsel %vm379, %v3843, %v3847
      %v3849 = vshrl.u32 %v3704, 16
      %v3851 = vrot.slane %v3849, 4
      %v3852 = vor.u32 %v3851, %v3847
      %v3853 = vrot.slane %v3852, 4
      %v3855 = vshll.u32 %v3705, 16
      %v3857 = vrot.slane %v3855, 5
      %v3858 = vsel %vm379, %v3853, %v3857
      %v3860 = vshrl.u32 %v3706, 16
      %v3862 = vrot.slane %v3860, 4
      %v3863 = vshll.u32 %v3706, 16
      %v3865 = vrot.slane %v3863, 5
      %v3866 = vor.u32 %v3862, %v3865
      %v3867 = vrot.slane %v3866, 4
      %v3869 = vshll.u32 %v3707, 16
      %v3871 = vrot.slane %v3869, 5
      %v3872 = vsel %vm379, %v3867, %v3871
      %v3873 = vshrl.u32 %v3707, 16
      %v3875 = vrot.slane %v3873, 4
      %v3876 = vor.u32 %v3875, %v3871
      %v3877 = vrot.slane %v3876, 4
      %v3879 = vshll.u32 %v3708, 16
      %v3881 = vrot.slane %v3879, 5
      %v3882 = vsel %vm379, %v3877, %v3881
      %v3884 = vshrl.u32 %v3709, 16
      %v3886 = vrot.slane %v3884, 4
      %v3887 = vshll.u32 %v3709, 16
      %v3889 = vrot.slane %v3887, 5
      %v3890 = vor.u32 %v3886, %v3889
      %v3891 = vrot.slane %v3890, 4
      %v3893 = vshll.u32 %v3710, 16
      %v3895 = vrot.slane %v3893, 5
      %v3896 = vsel %vm379, %v3891, %v3895
      %v3897 = vshrl.u32 %v3710, 16
      %v3899 = vrot.slane %v3897, 4
      %v3900 = vor.u32 %v3899, %v3895
      %v3901 = vrot.slane %v3900, 4
      %v3903 = vshll.u32 %v3711, 16
      %v3905 = vrot.slane %v3903, 5
      %v3906 = vsel %vm379, %v3901, %v3905
      %v3908 = vshrl.u32 %v3712, 16
      %v3910 = vrot.slane %v3908, 4
      %v3911 = vshll.u32 %v3712, 16
      %v3913 = vrot.slane %v3911, 5
      %v3914 = vor.u32 %v3910, %v3913
      %v3915 = vrot.slane %v3914, 4
      %v3917 = vshll.u32 %v3713, 16
      %v3919 = vrot.slane %v3917, 5
      %v3920 = vsel %vm379, %v3915, %v3919
      %v3921 = vshrl.u32 %v3713, 16
      %v3923 = vrot.slane %v3921, 4
      %v3924 = vor.u32 %v3923, %v3919
      %v3925 = vrot.slane %v3924, 4
      %v3927 = vshll.u32 %v3714, 16
      %v3929 = vrot.slane %v3927, 5
      %v3930 = vsel %vm379, %v3925, %v3929
      %v3932 = vshrl.u32 %v3715, 16
      %v3934 = vrot.slane %v3932, 4
      %v3935 = vshll.u32 %v3715, 16
      %v3937 = vrot.slane %v3935, 5
      %v3938 = vor.u32 %v3934, %v3937
      %v3939 = vrot.slane %v3938, 4
      %v3941 = vshll.u32 %v3716, 16
      %v3943 = vrot.slane %v3941, 5
      %v3944 = vsel %vm379, %v3939, %v3943
      %v3945 = vshrl.u32 %v3716, 16
      %v3947 = vrot.slane %v3945, 4
      %v3948 = vor.u32 %v3947, %v3943
      %v3949 = vrot.slane %v3948, 4
      %v3951 = vshll.u32 %v3717, 16
      %v3953 = vrot.slane %v3951, 5
      %v3954 = vsel %vm379, %v3949, %v3953
      %v3956 = vshrl.u32 %v3718, 16
      %v3958 = vrot.slane %v3956, 4
      %v3959 = vshll.u32 %v3718, 16
      %v3961 = vrot.slane %v3959, 5
      %v3962 = vor.u32 %v3958, %v3961
      %v3963 = vrot.slane %v3962, 4
      %v3965 = vshll.u32 %v3719, 16
      %v3967 = vrot.slane %v3965, 5
      %v3968 = vsel %vm379, %v3963, %v3967
      %v3969 = vshrl.u32 %v3719, 16
      %v3971 = vrot.slane %v3969, 4
      %v3972 = vor.u32 %v3971, %v3967
      %v3973 = vrot.slane %v3972, 4
      %v3975 = vshll.u32 %v3720, 16
      %v3977 = vrot.slane %v3975, 5
      %v3978 = vsel %vm379, %v3973, %v3977
      %v3980 = vshrl.u32 %v3721, 16
      %v3982 = vrot.slane %v3980, 4
      %v3983 = vshll.u32 %v3721, 16
      %v3985 = vrot.slane %v3983, 5
      %v3986 = vor.u32 %v3982, %v3985
      %v3987 = vrot.slane %v3986, 4
      %v3989 = vshll.u32 %v3722, 16
      %v3991 = vrot.slane %v3989, 5
      %v3992 = vsel %vm379, %v3987, %v3991
      %v3993 = vshrl.u32 %v3722, 16
      %v3995 = vrot.slane %v3993, 4
      %v3996 = vor.u32 %v3995, %v3991
      %v3997 = vrot.slane %v3996, 4
      %v3999 = vshll.u32 %v3723, 16
      %v4001 = vrot.slane %v3999, 5
      %v4002 = vsel %vm379, %v3997, %v4001
      %v4004 = vshrl.u32 %v3724, 16
      %v4006 = vrot.slane %v4004, 4
      %v4007 = vshll.u32 %v3724, 16
      %v4009 = vrot.slane %v4007, 5
      %v4010 = vor.u32 %v4006, %v4009
      %v4011 = vrot.slane %v4010, 4
      %v4013 = vshll.u32 %v3725, 16
      %v4015 = vrot.slane %v4013, 5
      %v4016 = vsel %vm379, %v4011, %v4015
      %v4017 = vshrl.u32 %v3725, 16
      %v4019 = vrot.slane %v4017, 4
      %v4020 = vor.u32 %v4019, %v4015
      %v4021 = vrot.slane %v4020, 4
      %v4023 = vshll.u32 %v3726, 16
      %v4025 = vrot.slane %v4023, 5
      %v4026 = vsel %vm379, %v4021, %v4025
      %v4028 = vshrl.u32 %v3727, 16
      %v4030 = vrot.slane %v4028, 4
      %v4031 = vshll.u32 %v3727, 16
      %v4033 = vrot.slane %v4031, 5
      %v4034 = vor.u32 %v4030, %v4033
      %v4035 = vrot.slane %v4034, 4
      %v4037 = vshll.u32 %v3728, 16
      %v4039 = vrot.slane %v4037, 5
      %v4040 = vsel %vm379, %v4035, %v4039
      %v4041 = vshrl.u32 %v3728, 16
      %v4043 = vrot.slane %v4041, 4
      %v4044 = vor.u32 %v4043, %v4039
      %v4045 = vrot.slane %v4044, 4
      %v4047 = vshll.u32 %v3729, 16
      %v4049 = vrot.slane %v4047, 5
      %v4050 = vsel %vm379, %v4045, %v4049
      %v4052 = vshrl.u32 %v3730, 16
      %v4054 = vrot.slane %v4052, 4
      %v4055 = vshll.u32 %v3730, 16
      %v4057 = vrot.slane %v4055, 5
      %v4058 = vor.u32 %v4054, %v4057
      %v4059 = vrot.slane %v4058, 4
      %v4061 = vshll.u32 %v3731, 16
      %v4063 = vrot.slane %v4061, 5
      %v4064 = vsel %vm379, %v4059, %v4063
      %v4065 = vshrl.u32 %v3731, 16
      %v4067 = vrot.slane %v4065, 4
      %v4068 = vor.u32 %v4067, %v4063
      %v4069 = vrot.slane %v4068, 4
      %v4071 = vshll.u32 %v3732, 16
      %v4073 = vrot.slane %v4071, 5
      %v4074 = vsel %vm379, %v4069, %v4073
      %v4076 = vshrl.u32 %v3733, 16
      %v4078 = vrot.slane %v4076, 4
      %v4079 = vshll.u32 %v3733, 16
      %v4081 = vrot.slane %v4079, 5
      %v4082 = vor.u32 %v4078, %v4081
      %v4083 = vrot.slane %v4082, 4
      %v4085 = vshll.u32 %v3734, 16
      %v4087 = vrot.slane %v4085, 5
      %v4088 = vsel %vm379, %v4083, %v4087
      %v4089 = vshrl.u32 %v3734, 16
      %v4091 = vrot.slane %v4089, 4
      %v4092 = vor.u32 %v4091, %v4087
      %v4093 = vrot.slane %v4092, 4
      %v4095 = vshll.u32 %v3735, 16
      %v4097 = vrot.slane %v4095, 5
      %v4098 = vsel %vm379, %v4093, %v4097
      %v4100 = vshrl.u32 %v3736, 16
      %v4102 = vrot.slane %v4100, 4
      %v4103 = vshll.u32 %v3736, 16
      %v4105 = vrot.slane %v4103, 5
      %v4106 = vor.u32 %v4102, %v4105
      %v4107 = vrot.slane %v4106, 4
      %v4109 = vshll.u32 %v3737, 16
      %v4111 = vrot.slane %v4109, 5
      %v4112 = vsel %vm379, %v4107, %v4111
      %v4113 = vshrl.u32 %v3737, 16
      %v4115 = vrot.slane %v4113, 4
      %v4116 = vor.u32 %v4115, %v4111
      %v4117 = vrot.slane %v4116, 4
      %v4119 = vshll.u32 %v3738, 16
      %v4121 = vrot.slane %v4119, 5
      %v4122 = vsel %vm379, %v4117, %v4121
      %s4123 = scalar_lea.vmem [#allocation2], 14
      %v4124 = vld [vmem:[%s4123] sm:$0x3]
      %v4125 = vunpack.c.l.b16 %v3752
      %v4126 = vunpack.c.l.b16 %v3762
      %v4127 = vunpack.c.l.b16 %v3776
      %v4128 = vunpack.c.l.b16 %v3786
      %v4129 = vunpack.c.l.b16 %v3800
      %v4130 = vunpack.c.l.b16 %v3810
      %v4131 = vunpack.c.l.b16 %v3824
      %v4132 = vunpack.c.l.b16 %v3834
      %v4133 = vunpack.c.l.b16 %v3848
      %v4134 = vunpack.c.l.b16 %v3858
      %v4135 = vunpack.c.l.b16 %v3872
      %v4136 = vunpack.c.l.b16 %v3882
      %v4137 = vunpack.c.l.b16 %v3896
      %v4138 = vunpack.c.l.b16 %v3906
      %v4139 = vunpack.c.l.b16 %v3920
      %v4140 = vunpack.c.l.b16 %v3930
      %v4141 = vunpack.c.l.b16 %v3944
      %v4142 = vunpack.c.l.b16 %v3954
      %v4143 = vunpack.c.l.b16 %v3968
      %v4144 = vunpack.c.l.b16 %v3978
      %v4145 = vunpack.c.l.b16 %v3992
      %v4146 = vunpack.c.l.b16 %v4002
      %v4147 = vunpack.c.l.b16 %v4016
      %v4148 = vunpack.c.l.b16 %v4026
      %v4149 = vunpack.c.l.b16 %v4040
      %v4150 = vunpack.c.l.b16 %v4050
      %v4151 = vunpack.c.l.b16 %v4064
      %v4152 = vunpack.c.l.b16 %v4074
      %v4153 = vunpack.c.l.b16 %v4088
      %v4154 = vunpack.c.l.b16 %v4098
      %v4155 = vunpack.c.l.b16 %v4112
      %v4156 = vunpack.c.l.b16 %v4122
      %v4157 = vpack.c.b16 %v4126, %v4125
      %v4158 = vpack.c.b16 %v4128, %v4127
      %v4159 = vpack.c.b16 %v4130, %v4129
      %v4160 = vpack.c.b16 %v4132, %v4131
      %v4161 = vpack.c.b16 %v4134, %v4133
      %v4162 = vpack.c.b16 %v4136, %v4135
      %v4163 = vpack.c.b16 %v4138, %v4137
      %v4164 = vpack.c.b16 %v4140, %v4139
      %v4165 = vpack.c.b16 %v4142, %v4141
      %v4166 = vpack.c.b16 %v4144, %v4143
      %v4167 = vpack.c.b16 %v4146, %v4145
      %v4168 = vpack.c.b16 %v4148, %v4147
      %v4169 = vpack.c.b16 %v4150, %v4149
      %v4170 = vpack.c.b16 %v4152, %v4151
      %v4171 = vpack.c.b16 %v4154, %v4153
      %v4172 = vpack.c.b16 %v4156, %v4155
      %v4174 = vsel %vm814, %v4157, 0
      %v4177 = vsel %vm814, %v4158, 0
      %v4180 = vsel %vm814, %v4159, 0
      %v4183 = vsel %vm814, %v4160, 0
      %v4186 = vsel %vm814, %v4161, 0
      %v4189 = vsel %vm814, %v4162, 0
      %v4192 = vsel %vm814, %v4163, 0
      %v4195 = vsel %vm814, %v4164, 0
      %v4198 = vsel %vm814, %v4165, 0
      %v4201 = vsel %vm814, %v4166, 0
      %v4204 = vsel %vm814, %v4167, 0
      %v4207 = vsel %vm814, %v4168, 0
      %v4210 = vsel %vm814, %v4169, 0
      %v4213 = vsel %vm814, %v4170, 0
      %v4216 = vsel %vm814, %v4171, 0
      %v4219 = vsel %vm814, %v4172, 0
      %v4222 = vsel %vm863, %v4124, 0
      %4224 = vmatprep.subr.bf16.mxu0 0
      %4225 = vmatpush1.bf16.msra.mxu0 %v4222
      %4226 = vmatprep.subr.bf16.mxu0 0
      %4227 = vmatpush1.bf16.msra.mxu0 0
      %4228 = vmatprep.subr.bf16.mxu0 0
      %4229 = vmatpush1.bf16.msra.mxu0 0
      %4230 = vmatprep.subr.bf16.mxu0 0
      %4231 = vmatpush1.bf16.msra.mxu0 0
      %4232 = vmatprep.subr.bf16.mxu0 0
      %4233 = vmatpush1.bf16.msra.mxu0 0
      %4234 = vmatprep.subr.bf16.mxu0 0
      %4235 = vmatpush1.bf16.msra.mxu0 0
      %4236 = vmatprep.subr.bf16.mxu0 0
      %4237 = vmatpush1.bf16.msra.mxu0 0
      %4238 = vmatprep.subr.bf16.mxu0 0
      %4239 = vmatpush1.bf16.msra.mxu0 0
      %4240 = vmatprep.subr.bf16.mxu0 0
      %4241 = vmatpush1.bf16.msra.mxu0 0
      %4242 = vmatprep.subr.bf16.mxu0 0
      %4243 = vmatpush1.bf16.msra.mxu0 0
      %4244 = vmatprep.subr.bf16.mxu0 0
      %4245 = vmatpush1.bf16.msra.mxu0 0
      %4246 = vmatprep.subr.bf16.mxu0 0
      %4247 = vmatpush1.bf16.msra.mxu0 0
      %4248 = vmatprep.subr.bf16.mxu0 0
      %4249 = vmatpush1.bf16.msra.mxu0 0
      %4250 = vmatprep.subr.bf16.mxu0 0
      %4251 = vmatpush1.bf16.msra.mxu0 0
      %4252 = vmatprep.subr.bf16.mxu0 0
      %4253 = vmatpush1.bf16.msra.mxu0 0
      %4254 = vmatprep.subr.bf16.mxu0 0
      %4255 = vmatpush1.bf16.msra.mxu0 0
      %4256 = vmatprep.mubr.bf16.mxu0 0
      %4257 = vmatmul.mubr.bf16.gmra.mrb[0].mxu0 %v4174
      %v4258 = vpop.f32.mrb[0].mxu0
      %v4259 = vadd.f32 0.0, %v4258
      %v4260 = vpop.f32.mrb[0].mxu0
      %v4261 = vpop.f32.mrb[0].mxu0
      %v4262 = vadd.f32 0.0, %v4261
      %v4263 = vpop.f32.mrb[0].mxu0
      %4264 = vmatprep.mubr.bf16.mxu0 0
      %4265 = vmatmul.mubr.bf16.gmra.mrb[0].mxu0 %v4177
      %v4266 = vpop.f32.mrb[0].mxu0
      %v4267 = vadd.f32 0.0, %v4266
      %v4268 = vpop.f32.mrb[0].mxu0
      %v4269 = vpop.f32.mrb[0].mxu0
      %v4270 = vadd.f32 0.0, %v4269
      %v4271 = vpop.f32.mrb[0].mxu0
      %4272 = vmatprep.mubr.bf16.mxu0 0
      %4273 = vmatmul.mubr.bf16.gmra.mrb[0].mxu0 %v4180
      %v4274 = vpop.f32.mrb[0].mxu0
      %v4275 = vadd.f32 0.0, %v4274
      %v4276 = vpop.f32.mrb[0].mxu0
      %v4277 = vpop.f32.mrb[0].mxu0
      %v4278 = vadd.f32 0.0, %v4277
      %v4279 = vpop.f32.mrb[0].mxu0
      %4280 = vmatprep.mubr.bf16.mxu0 0
      %4281 = vmatmul.mubr.bf16.gmra.mrb[0].mxu0 %v4183
      %v4282 = vpop.f32.mrb[0].mxu0
      %v4283 = vadd.f32 0.0, %v4282
      %v4284 = vpop.f32.mrb[0].mxu0
      %v4285 = vpop.f32.mrb[0].mxu0
      %v4286 = vadd.f32 0.0, %v4285
      %v4287 = vpop.f32.mrb[0].mxu0
      %4288 = vmatprep.mubr.bf16.mxu0 0
      %4289 = vmatmul.mubr.bf16.gmra.mrb[0].mxu0 %v4186
      %v4290 = vpop.f32.mrb[0].mxu0
      %v4291 = vadd.f32 0.0, %v4290
      %v4292 = vpop.f32.mrb[0].mxu0
      %v4293 = vpop.f32.mrb[0].mxu0
      %v4294 = vadd.f32 0.0, %v4293
      %v4295 = vpop.f32.mrb[0].mxu0
      %4296 = vmatprep.mubr.bf16.mxu0 0
      %4297 = vmatmul.mubr.bf16.gmra.mrb[0].mxu0 %v4189
      %v4298 = vpop.f32.mrb[0].mxu0
      %v4299 = vadd.f32 0.0, %v4298
      %v4300 = vpop.f32.mrb[0].mxu0
      %v4301 = vpop.f32.mrb[0].mxu0
      %v4302 = vadd.f32 0.0, %v4301
      %v4303 = vpop.f32.mrb[0].mxu0
      %4304 = vmatprep.mubr.bf16.mxu0 0
      %4305 = vmatmul.mubr.bf16.gmra.mrb[0].mxu0 %v4192
      %v4306 = vpop.f32.mrb[0].mxu0
      %v4307 = vadd.f32 0.0, %v4306
      %v4308 = vpop.f32.mrb[0].mxu0
      %v4309 = vpop.f32.mrb[0].mxu0
      %v4310 = vadd.f32 0.0, %v4309
      %v4311 = vpop.f32.mrb[0].mxu0
      %4312 = vmatprep.mubr.bf16.mxu0 0
      %4313 = vmatmul.mubr.bf16.gmra.mrb[0].mxu0 %v4195
      %v4314 = vpop.f32.mrb[0].mxu0
      %v4315 = vadd.f32 0.0, %v4314
      %v4316 = vpop.f32.mrb[0].mxu0
      %v4317 = vpop.f32.mrb[0].mxu0
      %v4318 = vadd.f32 0.0, %v4317
      %v4319 = vpop.f32.mrb[0].mxu0
      %4320 = vmatprep.mubr.bf16.mxu0 0
      %4321 = vmatmul.mubr.bf16.gmra.mrb[0].mxu0 %v4198
      %v4322 = vpop.f32.mrb[0].mxu0
      %v4323 = vadd.f32 0.0, %v4322
      %v4324 = vpop.f32.mrb[0].mxu0
      %v4325 = vpop.f32.mrb[0].mxu0
      %v4326 = vadd.f32 0.0, %v4325
      %v4327 = vpop.f32.mrb[0].mxu0
      %4328 = vmatprep.mubr.bf16.mxu0 0
      %4329 = vmatmul.mubr.bf16.gmra.mrb[0].mxu0 %v4201
      %v4330 = vpop.f32.mrb[0].mxu0
      %v4331 = vadd.f32 0.0, %v4330
      %v4332 = vpop.f32.mrb[0].mxu0
      %v4333 = vpop.f32.mrb[0].mxu0
      %v4334 = vadd.f32 0.0, %v4333
      %v4335 = vpop.f32.mrb[0].mxu0
      %4336 = vmatprep.mubr.bf16.mxu0 0
      %4337 = vmatmul.mubr.bf16.gmra.mrb[0].mxu0 %v4204
      %v4338 = vpop.f32.mrb[0].mxu0
      %v4339 = vadd.f32 0.0, %v4338
      %v4340 = vpop.f32.mrb[0].mxu0
      %v4341 = vpop.f32.mrb[0].mxu0
      %v4342 = vadd.f32 0.0, %v4341
      %v4343 = vpop.f32.mrb[0].mxu0
      %4344 = vmatprep.mubr.bf16.mxu0 0
      %4345 = vmatmul.mubr.bf16.gmra.mrb[0].mxu0 %v4207
      %v4346 = vpop.f32.mrb[0].mxu0
      %v4347 = vadd.f32 0.0, %v4346
      %v4348 = vpop.f32.mrb[0].mxu0
      %v4349 = vpop.f32.mrb[0].mxu0
      %v4350 = vadd.f32 0.0, %v4349
      %v4351 = vpop.f32.mrb[0].mxu0
      %4352 = vmatprep.mubr.bf16.mxu0 0
      %4353 = vmatmul.mubr.bf16.gmra.mrb[0].mxu0 %v4210
      %v4354 = vpop.f32.mrb[0].mxu0
      %v4355 = vadd.f32 0.0, %v4354
      %v4356 = vpop.f32.mrb[0].mxu0
      %v4357 = vpop.f32.mrb[0].mxu0
      %v4358 = vadd.f32 0.0, %v4357
      %v4359 = vpop.f32.mrb[0].mxu0
      %4360 = vmatprep.mubr.bf16.mxu0 0
      %4361 = vmatmul.mubr.bf16.gmra.mrb[0].mxu0 %v4213
      %v4362 = vpop.f32.mrb[0].mxu0
      %v4363 = vadd.f32 0.0, %v4362
      %v4364 = vpop.f32.mrb[0].mxu0
      %v4365 = vpop.f32.mrb[0].mxu0
      %v4366 = vadd.f32 0.0, %v4365
      %v4367 = vpop.f32.mrb[0].mxu0
      %4368 = vmatprep.mubr.bf16.mxu0 0
      %4369 = vmatmul.mubr.bf16.gmra.mrb[0].mxu0 %v4216
      %v4370 = vpop.f32.mrb[0].mxu0
      %v4371 = vadd.f32 0.0, %v4370
      %v4372 = vpop.f32.mrb[0].mxu0
      %v4373 = vpop.f32.mrb[0].mxu0
      %v4374 = vadd.f32 0.0, %v4373
      %v4375 = vpop.f32.mrb[0].mxu0
      %4376 = vmatprep.mubr.bf16.mxu0 0
      %4377 = vmatmul.mubr.bf16.gmra.mrb[0].mxu0 %v4219
      %v4378 = vpop.f32.mrb[0].mxu0
      %v4379 = vadd.f32 0.0, %v4378
      %v4380 = vpop.f32.mrb[0].mxu0
      %v4381 = vpop.f32.mrb[0].mxu0
      %v4382 = vadd.f32 0.0, %v4381
      %v4383 = vpop.f32.mrb[0].mxu0
      %4384 = vdwg.mxu0
      %v4385 = vadd.f32 %v3659, %v4259
      %v4386 = vadd.f32 %v3660, %v4262
      %v4387 = vadd.f32 %v3661, %v4267
      %v4388 = vadd.f32 %v3662, %v4270
      %v4389 = vadd.f32 %v3663, %v4275
      %v4390 = vadd.f32 %v3664, %v4278
      %v4391 = vadd.f32 %v3665, %v4283
      %v4392 = vadd.f32 %v3666, %v4286
      %v4393 = vadd.f32 %v3667, %v4291
      %v4394 = vadd.f32 %v3668, %v4294
      %v4395 = vadd.f32 %v3669, %v4299
      %v4396 = vadd.f32 %v3670, %v4302
      %v4397 = vadd.f32 %v3671, %v4307
      %v4398 = vadd.f32 %v3672, %v4310
      %v4399 = vadd.f32 %v3673, %v4315
      %v4400 = vadd.f32 %v3674, %v4318
      %v4401 = vadd.f32 %v3675, %v4323
      %v4402 = vadd.f32 %v3676, %v4326
      %v4403 = vadd.f32 %v3677, %v4331
      %v4404 = vadd.f32 %v3678, %v4334
      %v4405 = vadd.f32 %v3679, %v4339
      %v4406 = vadd.f32 %v3680, %v4342
      %v4407 = vadd.f32 %v3681, %v4347
      %v4408 = vadd.f32 %v3682, %v4350
      %v4409 = vadd.f32 %v3683, %v4355
      %v4410 = vadd.f32 %v3684, %v4358
      %v4411 = vadd.f32 %v3685, %v4363
      %v4412 = vadd.f32 %v3686, %v4366
      %v4413 = vadd.f32 %v3687, %v4371
      %v4414 = vadd.f32 %v3688, %v4374
      %v4415 = vadd.f32 %v3689, %v4379
      %v4416 = vadd.f32 %v3690, %v4382
      %v4417 = vld [vmem:[%s3332] sm:$0xe]
      %v4418 = vld [vmem:[%s3332 + $0xc] sm:$0xe]
      %v4419 = vld [vmem:[%s3332 + $0x18] sm:$0xe]
      %v4420 = vld [vmem:[%s3332 + $0x24] sm:$0xe]
      %v4421 = vld [vmem:[%s3332 + $0x30] sm:$0xe]
      %v4422 = vld [vmem:[%s3332 + $0x3c] sm:$0xe]
      %v4423 = vld [vmem:[%s3332 + $0x48] sm:$0xe]
      %v4424 = vld [vmem:[%s3332 + $0x54] sm:$0xe]
      %v4425 = vld [vmem:[%s3332 + $0x60] sm:$0xe]
      %v4426 = vld [vmem:[%s3332 + $0x6c] sm:$0xe]
      %v4427 = vld [vmem:[%s3332 + $0x78] sm:$0xe]
      %v4428 = vld [vmem:[%s3332 + $0x84] sm:$0xe]
      %v4429 = vld [vmem:[%s3332 + $0x90] sm:$0xe]
      %v4430 = vld [vmem:[%s3332 + $0x9c] sm:$0xe]
      %v4431 = vld [vmem:[%s3332 + $0xa8] sm:$0xe]
      %v4432 = vld [vmem:[%s3332 + $0xb4] sm:$0xe]
      %v4481 = vrot.slane %v4417, 5
      %v4482 = vrot.slane %v4481, 4
      %v4483 = vrot.slane %v3692, 5
      %v4484 = vsel %vm1370, %v4482, %v4483
      %v4485 = vrot.slane %v4483, 4
      %v4486 = vrot.slane %v3693, 5
      %v4487 = vsel %vm1370, %v4485, %v4486
      %v4488 = vrot.slane %v4418, 5
      %v4489 = vrot.slane %v4488, 4
      %v4490 = vrot.slane %v3695, 5
      %v4491 = vsel %vm1370, %v4489, %v4490
      %v4492 = vrot.slane %v4490, 4
      %v4493 = vrot.slane %v3696, 5
      %v4494 = vsel %vm1370, %v4492, %v4493
      %v4495 = vrot.slane %v4419, 5
      %v4496 = vrot.slane %v4495, 4
      %v4497 = vrot.slane %v3698, 5
      %v4498 = vsel %vm1370, %v4496, %v4497
      %v4499 = vrot.slane %v4497, 4
      %v4500 = vrot.slane %v3699, 5
      %v4501 = vsel %vm1370, %v4499, %v4500
      %v4502 = vrot.slane %v4420, 5
      %v4503 = vrot.slane %v4502, 4
      %v4504 = vrot.slane %v3701, 5
      %v4505 = vsel %vm1370, %v4503, %v4504
      %v4506 = vrot.slane %v4504, 4
      %v4507 = vrot.slane %v3702, 5
      %v4508 = vsel %vm1370, %v4506, %v4507
      %v4509 = vrot.slane %v4421, 5
      %v4510 = vrot.slane %v4509, 4
      %v4511 = vrot.slane %v3704, 5
      %v4512 = vsel %vm1370, %v4510, %v4511
      %v4513 = vrot.slane %v4511, 4
      %v4514 = vrot.slane %v3705, 5
      %v4515 = vsel %vm1370, %v4513, %v4514
      %v4516 = vrot.slane %v4422, 5
      %v4517 = vrot.slane %v4516, 4
      %v4518 = vrot.slane %v3707, 5
      %v4519 = vsel %vm1370, %v4517, %v4518
      %v4520 = vrot.slane %v4518, 4
      %v4521 = vrot.slane %v3708, 5
      %v4522 = vsel %vm1370, %v4520, %v4521
      %v4523 = vrot.slane %v4423, 5
      %v4524 = vrot.slane %v4523, 4
      %v4525 = vrot.slane %v3710, 5
      %v4526 = vsel %vm1370, %v4524, %v4525
      %v4527 = vrot.slane %v4525, 4
      %v4528 = vrot.slane %v3711, 5
      %v4529 = vsel %vm1370, %v4527, %v4528
      %v4530 = vrot.slane %v4424, 5
      %v4531 = vrot.slane %v4530, 4
      %v4532 = vrot.slane %v3713, 5
      %v4533 = vsel %vm1370, %v4531, %v4532
      %v4534 = vrot.slane %v4532, 4
      %v4535 = vrot.slane %v3714, 5
      %v4536 = vsel %vm1370, %v4534, %v4535
      %v4537 = vrot.slane %v4425, 5
      %v4538 = vrot.slane %v4537, 4
      %v4539 = vrot.slane %v3716, 5
      %v4540 = vsel %vm1370, %v4538, %v4539
      %v4541 = vrot.slane %v4539, 4
      %v4542 = vrot.slane %v3717, 5
      %v4543 = vsel %vm1370, %v4541, %v4542
      %v4544 = vrot.slane %v4426, 5
      %v4545 = vrot.slane %v4544, 4
      %v4546 = vrot.slane %v3719, 5
      %v4547 = vsel %vm1370, %v4545, %v4546
      %v4548 = vrot.slane %v4546, 4
      %v4549 = vrot.slane %v3720, 5
      %v4550 = vsel %vm1370, %v4548, %v4549
      %v4551 = vrot.slane %v4427, 5
      %v4552 = vrot.slane %v4551, 4
      %v4553 = vrot.slane %v3722, 5
      %v4554 = vsel %vm1370, %v4552, %v4553
      %v4555 = vrot.slane %v4553, 4
      %v4556 = vrot.slane %v3723, 5
      %v4557 = vsel %vm1370, %v4555, %v4556
      %v4558 = vrot.slane %v4428, 5
      %v4559 = vrot.slane %v4558, 4
      %v4560 = vrot.slane %v3725, 5
      %v4561 = vsel %vm1370, %v4559, %v4560
      %v4562 = vrot.slane %v4560, 4
      %v4563 = vrot.slane %v3726, 5
      %v4564 = vsel %vm1370, %v4562, %v4563
      %v4565 = vrot.slane %v4429, 5
      %v4566 = vrot.slane %v4565, 4
      %v4567 = vrot.slane %v3728, 5
      %v4568 = vsel %vm1370, %v4566, %v4567
      %v4569 = vrot.slane %v4567, 4
      %v4570 = vrot.slane %v3729, 5
      %v4571 = vsel %vm1370, %v4569, %v4570
      %v4572 = vrot.slane %v4430, 5
      %v4573 = vrot.slane %v4572, 4
      %v4574 = vrot.slane %v3731, 5
      %v4575 = vsel %vm1370, %v4573, %v4574
      %v4576 = vrot.slane %v4574, 4
      %v4577 = vrot.slane %v3732, 5
      %v4578 = vsel %vm1370, %v4576, %v4577
      %v4579 = vrot.slane %v4431, 5
      %v4580 = vrot.slane %v4579, 4
      %v4581 = vrot.slane %v3734, 5
      %v4582 = vsel %vm1370, %v4580, %v4581
      %v4583 = vrot.slane %v4581, 4
      %v4584 = vrot.slane %v3735, 5
      %v4585 = vsel %vm1370, %v4583, %v4584
      %v4586 = vrot.slane %v4432, 5
      %v4587 = vrot.slane %v4586, 4
      %v4588 = vrot.slane %v3737, 5
      %v4589 = vsel %vm1370, %v4587, %v4588
      %v4590 = vrot.slane %v4588, 4
      %v4591 = vrot.slane %v3738, 5
      %v4592 = vsel %vm1370, %v4590, %v4591
      %s4593 = scalar_lea.vmem [#allocation2], 16
      %v4594 = vld [vmem:[%s4593] sm:$0x3]
      %v4595 = vunpack.c.l.b16 %v4484
      %v4596 = vunpack.c.l.b16 %v4487
      %v4597 = vunpack.c.l.b16 %v4491
      %v4598 = vunpack.c.l.b16 %v4494
      %v4599 = vunpack.c.l.b16 %v4498
      %v4600 = vunpack.c.l.b16 %v4501
      %v4601 = vunpack.c.l.b16 %v4505
      %v4602 = vunpack.c.l.b16 %v4508
      %v4603 = vunpack.c.l.b16 %v4512
      %v4604 = vunpack.c.l.b16 %v4515
      %v4605 = vunpack.c.l.b16 %v4519
      %v4606 = vunpack.c.l.b16 %v4522
      %v4607 = vunpack.c.l.b16 %v4526
      %v4608 = vunpack.c.l.b16 %v4529
      %v4609 = vunpack.c.l.b16 %v4533
      %v4610 = vunpack.c.l.b16 %v4536
      %v4611 = vunpack.c.l.b16 %v4540
      %v4612 = vunpack.c.l.b16 %v4543
      %v4613 = vunpack.c.l.b16 %v4547
      %v4614 = vunpack.c.l.b16 %v4550
      %v4615 = vunpack.c.l.b16 %v4554
      %v4616 = vunpack.c.l.b16 %v4557
      %v4617 = vunpack.c.l.b16 %v4561
      %v4618 = vunpack.c.l.b16 %v4564
      %v4619 = vunpack.c.l.b16 %v4568
      %v4620 = vunpack.c.l.b16 %v4571
      %v4621 = vunpack.c.l.b16 %v4575
      %v4622 = vunpack.c.l.b16 %v4578
      %v4623 = vunpack.c.l.b16 %v4582
      %v4624 = vunpack.c.l.b16 %v4585
      %v4625 = vunpack.c.l.b16 %v4589
      %v4626 = vunpack.c.l.b16 %v4592
      %v4627 = vpack.c.b16 %v4596, %v4595
      %v4628 = vpack.c.b16 %v4598, %v4597
      %v4629 = vpack.c.b16 %v4600, %v4599
      %v4630 = vpack.c.b16 %v4602, %v4601
      %v4631 = vpack.c.b16 %v4604, %v4603
      %v4632 = vpack.c.b16 %v4606, %v4605
      %v4633 = vpack.c.b16 %v4608, %v4607
      %v4634 = vpack.c.b16 %v4610, %v4609
      %v4635 = vpack.c.b16 %v4612, %v4611
      %v4636 = vpack.c.b16 %v4614, %v4613
      %v4637 = vpack.c.b16 %v4616, %v4615
      %v4638 = vpack.c.b16 %v4618, %v4617
      %v4639 = vpack.c.b16 %v4620, %v4619
      %v4640 = vpack.c.b16 %v4622, %v4621
      %v4641 = vpack.c.b16 %v4624, %v4623
      %v4642 = vpack.c.b16 %v4626, %v4625
      %v4644 = vsel %vm814, %v4627, 0
      %v4647 = vsel %vm814, %v4628, 0
      %v4650 = vsel %vm814, %v4629, 0
      %v4653 = vsel %vm814, %v4630, 0
      %v4656 = vsel %vm814, %v4631, 0
      %v4659 = vsel %vm814, %v4632, 0
      %v4662 = vsel %vm814, %v4633, 0
      %v4665 = vsel %vm814, %v4634, 0
      %v4668 = vsel %vm814, %v4635, 0
      %v4671 = vsel %vm814, %v4636, 0
      %v4674 = vsel %vm814, %v4637, 0
      %v4677 = vsel %vm814, %v4638, 0
      %v4680 = vsel %vm814, %v4639, 0
      %v4683 = vsel %vm814, %v4640, 0
      %v4686 = vsel %vm814, %v4641, 0
      %v4689 = vsel %vm814, %v4642, 0
      %v4692 = vsel %vm863, %v4594, 0
      %4694 = vmatprep.subr.bf16.mxu0 0
      %4695 = vmatpush1.bf16.msra.mxu0 %v4692
      %4696 = vmatprep.subr.bf16.mxu0 0
      %4697 = vmatpush1.bf16.msra.mxu0 0
      %4698 = vmatprep.subr.bf16.mxu0 0
      %4699 = vmatpush1.bf16.msra.mxu0 0
      %4700 = vmatprep.subr.bf16.mxu0 0
      %4701 = vmatpush1.bf16.msra.mxu0 0
      %4702 = vmatprep.subr.bf16.mxu0 0
      %4703 = vmatpush1.bf16.msra.mxu0 0
      %4704 = vmatprep.subr.bf16.mxu0 0
      %4705 = vmatpush1.bf16.msra.mxu0 0
      %4706 = vmatprep.subr.bf16.mxu0 0
      %4707 = vmatpush1.bf16.msra.mxu0 0
      %4708 = vmatprep.subr.bf16.mxu0 0
      %4709 = vmatpush1.bf16.msra.mxu0 0
      %4710 = vmatprep.subr.bf16.mxu0 0
      %4711 = vmatpush1.bf16.msra.mxu0 0
      %4712 = vmatprep.subr.bf16.mxu0 0
      %4713 = vmatpush1.bf16.msra.mxu0 0
      %4714 = vmatprep.subr.bf16.mxu0 0
      %4715 = vmatpush1.bf16.msra.mxu0 0
      %4716 = vmatprep.subr.bf16.mxu0 0
      %4717 = vmatpush1.bf16.msra.mxu0 0
      %4718 = vmatprep.subr.bf16.mxu0 0
      %4719 = vmatpush1.bf16.msra.mxu0 0
      %4720 = vmatprep.subr.bf16.mxu0 0
      %4721 = vmatpush1.bf16.msra.mxu0 0
      %4722 = vmatprep.subr.bf16.mxu0 0
      %4723 = vmatpush1.bf16.msra.mxu0 0
      %4724 = vmatprep.subr.bf16.mxu0 0
      %4725 = vmatpush1.bf16.msra.mxu0 0
      %4726 = vmatprep.mubr.bf16.mxu0 0
      %4727 = vmatmul.mubr.bf16.gmra.mrb[0].mxu0 %v4644
      %v4728 = vpop.f32.mrb[0].mxu0
      %v4729 = vadd.f32 0.0, %v4728
      %v4730 = vpop.f32.mrb[0].mxu0
      %v4731 = vpop.f32.mrb[0].mxu0
      %v4732 = vadd.f32 0.0, %v4731
      %v4733 = vpop.f32.mrb[0].mxu0
      %4734 = vmatprep.mubr.bf16.mxu0 0
      %4735 = vmatmul.mubr.bf16.gmra.mrb[0].mxu0 %v4647
      %v4736 = vpop.f32.mrb[0].mxu0
      %v4737 = vadd.f32 0.0, %v4736
      %v4738 = vpop.f32.mrb[0].mxu0
      %v4739 = vpop.f32.mrb[0].mxu0
      %v4740 = vadd.f32 0.0, %v4739
      %v4741 = vpop.f32.mrb[0].mxu0
      %4742 = vmatprep.mubr.bf16.mxu0 0
      %4743 = vmatmul.mubr.bf16.gmra.mrb[0].mxu0 %v4650
      %v4744 = vpop.f32.mrb[0].mxu0
      %v4745 = vadd.f32 0.0, %v4744
      %v4746 = vpop.f32.mrb[0].mxu0
      %v4747 = vpop.f32.mrb[0].mxu0
      %v4748 = vadd.f32 0.0, %v4747
      %v4749 = vpop.f32.mrb[0].mxu0
      %4750 = vmatprep.mubr.bf16.mxu0 0
      %4751 = vmatmul.mubr.bf16.gmra.mrb[0].mxu0 %v4653
      %v4752 = vpop.f32.mrb[0].mxu0
      %v4753 = vadd.f32 0.0, %v4752
      %v4754 = vpop.f32.mrb[0].mxu0
      %v4755 = vpop.f32.mrb[0].mxu0
      %v4756 = vadd.f32 0.0, %v4755
      %v4757 = vpop.f32.mrb[0].mxu0
      %4758 = vmatprep.mubr.bf16.mxu0 0
      %4759 = vmatmul.mubr.bf16.gmra.mrb[0].mxu0 %v4656
      %v4760 = vpop.f32.mrb[0].mxu0
      %v4761 = vadd.f32 0.0, %v4760
      %v4762 = vpop.f32.mrb[0].mxu0
      %v4763 = vpop.f32.mrb[0].mxu0
      %v4764 = vadd.f32 0.0, %v4763
      %v4765 = vpop.f32.mrb[0].mxu0
      %4766 = vmatprep.mubr.bf16.mxu0 0
      %4767 = vmatmul.mubr.bf16.gmra.mrb[0].mxu0 %v4659
      %v4768 = vpop.f32.mrb[0].mxu0
      %v4769 = vadd.f32 0.0, %v4768
      %v4770 = vpop.f32.mrb[0].mxu0
      %v4771 = vpop.f32.mrb[0].mxu0
      %v4772 = vadd.f32 0.0, %v4771
      %v4773 = vpop.f32.mrb[0].mxu0
      %4774 = vmatprep.mubr.bf16.mxu0 0
      %4775 = vmatmul.mubr.bf16.gmra.mrb[0].mxu0 %v4662
      %v4776 = vpop.f32.mrb[0].mxu0
      %v4777 = vadd.f32 0.0, %v4776
      %v4778 = vpop.f32.mrb[0].mxu0
      %v4779 = vpop.f32.mrb[0].mxu0
      %v4780 = vadd.f32 0.0, %v4779
      %v4781 = vpop.f32.mrb[0].mxu0
      %4782 = vmatprep.mubr.bf16.mxu0 0
      %4783 = vmatmul.mubr.bf16.gmra.mrb[0].mxu0 %v4665
      %v4784 = vpop.f32.mrb[0].mxu0
      %v4785 = vadd.f32 0.0, %v4784
      %v4786 = vpop.f32.mrb[0].mxu0
      %v4787 = vpop.f32.mrb[0].mxu0
      %v4788 = vadd.f32 0.0, %v4787
      %v4789 = vpop.f32.mrb[0].mxu0
      %4790 = vmatprep.mubr.bf16.mxu0 0
      %4791 = vmatmul.mubr.bf16.gmra.mrb[0].mxu0 %v4668
      %v4792 = vpop.f32.mrb[0].mxu0
      %v4793 = vadd.f32 0.0, %v4792
      %v4794 = vpop.f32.mrb[0].mxu0
      %v4795 = vpop.f32.mrb[0].mxu0
      %v4796 = vadd.f32 0.0, %v4795
      %v4797 = vpop.f32.mrb[0].mxu0
      %4798 = vmatprep.mubr.bf16.mxu0 0
      %4799 = vmatmul.mubr.bf16.gmra.mrb[0].mxu0 %v4671
      %v4800 = vpop.f32.mrb[0].mxu0
      %v4801 = vadd.f32 0.0, %v4800
      %v4802 = vpop.f32.mrb[0].mxu0
      %v4803 = vpop.f32.mrb[0].mxu0
      %v4804 = vadd.f32 0.0, %v4803
      %v4805 = vpop.f32.mrb[0].mxu0
      %4806 = vmatprep.mubr.bf16.mxu0 0
      %4807 = vmatmul.mubr.bf16.gmra.mrb[0].mxu0 %v4674
      %v4808 = vpop.f32.mrb[0].mxu0
      %v4809 = vadd.f32 0.0, %v4808
      %v4810 = vpop.f32.mrb[0].mxu0
      %v4811 = vpop.f32.mrb[0].mxu0
      %v4812 = vadd.f32 0.0, %v4811
      %v4813 = vpop.f32.mrb[0].mxu0
      %4814 = vmatprep.mubr.bf16.mxu0 0
      %4815 = vmatmul.mubr.bf16.gmra.mrb[0].mxu0 %v4677
      %v4816 = vpop.f32.mrb[0].mxu0
      %v4817 = vadd.f32 0.0, %v4816
      %v4818 = vpop.f32.mrb[0].mxu0
      %v4819 = vpop.f32.mrb[0].mxu0
      %v4820 = vadd.f32 0.0, %v4819
      %v4821 = vpop.f32.mrb[0].mxu0
      %4822 = vmatprep.mubr.bf16.mxu0 0
      %4823 = vmatmul.mubr.bf16.gmra.mrb[0].mxu0 %v4680
      %v4824 = vpop.f32.mrb[0].mxu0
      %v4825 = vadd.f32 0.0, %v4824
      %v4826 = vpop.f32.mrb[0].mxu0
      %v4827 = vpop.f32.mrb[0].mxu0
      %v4828 = vadd.f32 0.0, %v4827
      %v4829 = vpop.f32.mrb[0].mxu0
      %4830 = vmatprep.mubr.bf16.mxu0 0
      %4831 = vmatmul.mubr.bf16.gmra.mrb[0].mxu0 %v4683
      %v4832 = vpop.f32.mrb[0].mxu0
      %v4833 = vadd.f32 0.0, %v4832
      %v4834 = vpop.f32.mrb[0].mxu0
      %v4835 = vpop.f32.mrb[0].mxu0
      %v4836 = vadd.f32 0.0, %v4835
      %v4837 = vpop.f32.mrb[0].mxu0
      %4838 = vmatprep.mubr.bf16.mxu0 0
      %4839 = vmatmul.mubr.bf16.gmra.mrb[0].mxu0 %v4686
      %v4840 = vpop.f32.mrb[0].mxu0
      %v4841 = vadd.f32 0.0, %v4840
      %v4842 = vpop.f32.mrb[0].mxu0
      %v4843 = vpop.f32.mrb[0].mxu0
      %v4844 = vadd.f32 0.0, %v4843
      %v4845 = vpop.f32.mrb[0].mxu0
      %4846 = vmatprep.mubr.bf16.mxu0 0
      %4847 = vmatmul.mubr.bf16.gmra.mrb[0].mxu0 %v4689
      %v4848 = vpop.f32.mrb[0].mxu0
      %v4849 = vadd.f32 0.0, %v4848
      %v4850 = vpop.f32.mrb[0].mxu0
      %v4851 = vpop.f32.mrb[0].mxu0
      %v4852 = vadd.f32 0.0, %v4851
      %v4853 = vpop.f32.mrb[0].mxu0
      %4854 = vdwg.mxu0
      %v4855 = vadd.f32 %v4385, %v4729
      %v4856 = vadd.f32 %v4386, %v4732
      %v4857 = vadd.f32 %v4387, %v4737
      %v4858 = vadd.f32 %v4388, %v4740
      %v4859 = vadd.f32 %v4389, %v4745
      %v4860 = vadd.f32 %v4390, %v4748
      %v4861 = vadd.f32 %v4391, %v4753
      %v4862 = vadd.f32 %v4392, %v4756
      %v4863 = vadd.f32 %v4393, %v4761
      %v4864 = vadd.f32 %v4394, %v4764
      %v4865 = vadd.f32 %v4395, %v4769
      %v4866 = vadd.f32 %v4396, %v4772
      %v4867 = vadd.f32 %v4397, %v4777
      %v4868 = vadd.f32 %v4398, %v4780
      %v4869 = vadd.f32 %v4399, %v4785
      %v4870 = vadd.f32 %v4400, %v4788
      %v4871 = vadd.f32 %v4401, %v4793
      %v4872 = vadd.f32 %v4402, %v4796
      %v4873 = vadd.f32 %v4403, %v4801
      %v4874 = vadd.f32 %v4404, %v4804
      %v4875 = vadd.f32 %v4405, %v4809
      %v4876 = vadd.f32 %v4406, %v4812
      %v4877 = vadd.f32 %v4407, %v4817
      %v4878 = vadd.f32 %v4408, %v4820
      %v4879 = vadd.f32 %v4409, %v4825
      %v4880 = vadd.f32 %v4410, %v4828
      %v4881 = vadd.f32 %v4411, %v4833
      %v4882 = vadd.f32 %v4412, %v4836
      %v4883 = vadd.f32 %v4413, %v4841
      %v4884 = vadd.f32 %v4414, %v4844
      %v4885 = vadd.f32 %v4415, %v4849
      %v4886 = vadd.f32 %v4416, %v4852
      %vm4887 = vcmask 64512
      %4888 = vst.msk [vmem:[%s225] sm:$0xff] %vm4887, %v4855
      %4889 = vst.msk [vmem:[%s225 + $0x8] sm:$0xff] %vm4887, %v4856
      %4890 = vst.msk [vmem:[%s225 + $0x10] sm:$0xff] %vm4887, %v4857
      %4891 = vst.msk [vmem:[%s225 + $0x18] sm:$0xff] %vm4887, %v4858
      %4892 = vst.msk [vmem:[%s225 + $0x20] sm:$0xff] %vm4887, %v4859
      %4893 = vst.msk [vmem:[%s225 + $0x28] sm:$0xff] %vm4887, %v4860
      %4894 = vst.msk [vmem:[%s225 + $0x30] sm:$0xff] %vm4887, %v4861
      %4895 = vst.msk [vmem:[%s225 + $0x38] sm:$0xff] %vm4887, %v4862
      %4896 = vst.msk [vmem:[%s225 + $0x40] sm:$0xff] %vm4887, %v4863
      %4897 = vst.msk [vmem:[%s225 + $0x48] sm:$0xff] %vm4887, %v4864
      %4898 = vst.msk [vmem:[%s225 + $0x50] sm:$0xff] %vm4887, %v4865
      %4899 = vst.msk [vmem:[%s225 + $0x58] sm:$0xff] %vm4887, %v4866
      %4900 = vst.msk [vmem:[%s225 + $0x60] sm:$0xff] %vm4887, %v4867
      %4901 = vst.msk [vmem:[%s225 + $0x68] sm:$0xff] %vm4887, %v4868
      %4902 = vst.msk [vmem:[%s225 + $0x70] sm:$0xff] %vm4887, %v4869
      %4903 = vst.msk [vmem:[%s225 + $0x78] sm:$0xff] %vm4887, %v4870
      %4904 = vst.msk [vmem:[%s225 + $0x80] sm:$0xff] %vm4887, %v4871
      %4905 = vst.msk [vmem:[%s225 + $0x88] sm:$0xff] %vm4887, %v4872
      %4906 = vst.msk [vmem:[%s225 + $0x90] sm:$0xff] %vm4887, %v4873
      %4907 = vst.msk [vmem:[%s225 + $0x98] sm:$0xff] %vm4887, %v4874
      %4908 = vst.msk [vmem:[%s225 + $0xa0] sm:$0xff] %vm4887, %v4875
      %4909 = vst.msk [vmem:[%s225 + $0xa8] sm:$0xff] %vm4887, %v4876
      %4910 = vst.msk [vmem:[%s225 + $0xb0] sm:$0xff] %vm4887, %v4877
      %4911 = vst.msk [vmem:[%s225 + $0xb8] sm:$0xff] %vm4887, %v4878
      %4912 = vst.msk [vmem:[%s225 + $0xc0] sm:$0xff] %vm4887, %v4879
      %4913 = vst.msk [vmem:[%s225 + $0xc8] sm:$0xff] %vm4887, %v4880
      %4914 = vst.msk [vmem:[%s225 + $0xd0] sm:$0xff] %vm4887, %v4881
      %4915 = vst.msk [vmem:[%s225 + $0xd8] sm:$0xff] %vm4887, %v4882
      %4916 = vst.msk [vmem:[%s225 + $0xe0] sm:$0xff] %vm4887, %v4883
      %4917 = vst.msk [vmem:[%s225 + $0xe8] sm:$0xff] %vm4887, %v4884
      %4918 = vst.msk [vmem:[%s225 + $0xf0] sm:$0xff] %vm4887, %v4885
      %4919 = vst.msk [vmem:[%s225 + $0xf8] sm:$0xff] %vm4887, %v4886
      %s4920 = smul.u32 16, %s19
      %p4921 = scmp.lt.s32.totalorder %s18, 1
      %s4922 = scalar_select %p4921, %s18, 1
      %p4923 = scmp.lt.s32.totalorder %s4920, 15
      %s4924 = scalar_select %p4923, %s4920, 15
      %s4925 = smul.addr %s4924, 2
      %s4926 = smul.addr %s4922, 32
      %s4927 = sadd.s32 %s4925, %s4926
      %s4928 = smul.addr %s4927, 8
      %s4929 = scalar_lea.vmem %s3, %s4928
      // Predicated region
      $region37: #{tpu_custom_call.1} parent=31 // pred_check
        %p4930 = pneg %p121
      $region38: #{tpu_custom_call.1} parent=31 // pred_check_branch
        %4932 = sbr.rel (%p4930) target = $region40
      $region39: #{tpu_custom_call.1} parent=31 // pred_region
        %s4933 = smul.u32 16, %s19
      $region40: #{tpu_custom_call.1} parent=31 // pred_fallthru
        _
    $region32: #{tpu_custom_call.1} parent=5 // pred_fallthru
      _
    %p4934 = scmp.le.s32.totalorder 2, %s9
    // Predicated region
    $region41: #{tpu_custom_call.1} parent=5 // pred_check
      %p4935 = pneg %p4934
    $region42: #{tpu_custom_call.1} parent=5 // pred_check_branch
      %4937 = sbr.rel (%p4935) target = $region44
    $region43: #{tpu_custom_call.1} parent=5 // pred_region
      %s4938 = ssub.s32 %s9, 2
      // Predicated region
      $region45: #{tpu_custom_call.1} parent=43 // pred_check
        %p4939 = pneg %p127
      $region46: #{tpu_custom_call.1} parent=43 // pred_check_branch
        %4941 = sbr.rel (%p4939) target = $region48
      $region47: #{tpu_custom_call.1} parent=43 // pred_region
        %s4942 = smul.u32 16, %s21
        %p4943 = scmp.lt.s32.totalorder %s20, 1
        %s4944 = scalar_select %p4943, %s20, 1
        %p4945 = scmp.lt.s32.totalorder %s4942, 15
        %s4946 = scalar_select %p4945, %s4942, 15
        %s4947 = smul.addr %s4946, 2
        %s4948 = smul.addr %s4944, 32
        %s4949 = sadd.s32 %s4947, %s4948
        %s4950 = smul.addr %s4949, 8
        %s4951 = scalar_lea.vmem %s3, %s4950
      $region48: #{tpu_custom_call.1} parent=43 // pred_fallthru
        _
    $region44: #{tpu_custom_call.1} parent=5 // pred_fallthru
      _
  $region6: #{tpu_custom_call.1} parent=0 // loop_footer
    %s13 = sadd.s32 1, %s9
  $region7: #{tpu_custom_call.1} parent=0 // loop_footer_branch
    %8 = sbr.rel target = $region3
  $region8: #{tpu_custom_call.1} parent=0 // loop_exit
    _

</llo_original>
